<compile_context>
chip_gen: v5e
topology: v5e:2x2
jax: 0.10.0
libtpu: 0.0.40
codegen_flags: <defaults>
</compile_context>

<pallas_src>
import functools

import jax
import jax.numpy as jnp
from jax.experimental import pallas as pl
from jax.experimental.pallas import tpu as pltpu

EPS = 1e-5
_LANE = 128
_VMEM_LIMIT = 48 * 1024 * 1024    # <= ~48 MiB: safe on v7x (64 MiB physical);
                                  # v5e/v6e (128 MiB) have ample headroom.
_TILE_BUDGET = 24 * 1024 * 1024   # target for the double-buffered working set
_MAX_TILE_M = 1024                # mem-bound kernels want the biggest tile


def _rup(x, m):
    return (x + m - 1) // m * m


def _pick_tile_m(m, row_bytes, resident_bytes=0):
    """Largest row tile (multiple of 8, <= _MAX_TILE_M) whose pipelined
    working set (row_bytes already includes double buffering) plus resident
    weights fits the VMEM budget."""
    avail = max(_TILE_BUDGET - resident_bytes, 8 * row_bytes)
    tm = min(_MAX_TILE_M, avail // max(row_bytes, 1))
    tm = max(8, (tm // 8) * 8)
    return int(min(tm, _rup(m, 8)))


# ----------------------------------------------------------------------------
# Pallas kernels
# ----------------------------------------------------------------------------
def _stats8(yf):
    """Pack per-channel sum (row 0) and sum-of-squares (row 1) over all
    leading axes into an (8, C) tile (sublane/lane aligned stats block)."""
    s, q = yf, yf * yf
    while s.ndim > 2:
        s = jnp.sum(s, axis=0)
        q = jnp.sum(q, axis=0)
    s = jnp.sum(s, axis=0, keepdims=True)
    q = jnp.sum(q, axis=0, keepdims=True)
    rowid = jax.lax.broadcasted_iota(jnp.int32, (8, s.shape[-1]), 0)
    return jnp.where(rowid == 0, s, jnp.where(rowid == 1, q, 0.0))


def matmul_stats_kernel(*refs, apply_affine, tile_m, rows_valid):
    """One M-tile of   y = [relu(x*scale+bias)] @ w   (bf16 MXU, f32 acc),
    plus per-tile per-channel BN partial statistics."""
    if apply_affine:
        x_ref, w_ref, s_ref, b_ref, y_ref, st_ref = refs
        lhs = jnp.maximum(
            x_ref[...].astype(jnp.float32) * s_ref[...] + b_ref[...], 0.0
        ).astype(jnp.bfloat16)
    else:
        x_ref, w_ref, y_ref, st_ref = refs
        lhs = x_ref[...]
    y = jnp.dot(lhs, w_ref[...], preferred_element_type=jnp.float32)
    yb = y.astype(jnp.bfloat16)
    y_ref[...] = yb
    yf = yb.astype(jnp.float32)
    st_ref[0] = _stats8(yf)
    if rows_valid is not None:
        # Only the last M-tile contains padded rows; mask them out of the BN
        # partial statistics there (runs on one tile only).
        @pl.when(pl.program_id(0) == pl.num_programs(0) - 1)
        def _():
            rows = pl.program_id(0) * tile_m + jax.lax.broadcasted_iota(
                jnp.int32, (tile_m, 1), 0)
            st_ref[0] = _stats8(jnp.where(rows < rows_valid, yf, 0.0))


def conv3x3_kernel(y_ref, w_ref, s_ref, b_ref, o_ref, st_ref, pad_ref, *,
                   hh, ww, c, ho, wo, wpe, rows, tt, stride):
    """Per-image 3x3 conv (pad=1, stride 1 or 2) over the raw conv1 output.

    BN1 affine + ReLU are fused on the input.  The zero-padded image lives in
    a flat (rows, c) VMEM scratch so every tap is a single contiguous (stride
    1) or sublane-strided (stride 2) load feeding the MXU directly.  Only the
    halo (pad border) is re-zeroed each step; the interior is overwritten.
    """
    zeros = lambda r: jnp.zeros((r, c), pad_ref.dtype)
    # BN1 affine + ReLU (f32), then store image rows into the padded plane.
    h = jnp.maximum(
        y_ref[0].astype(jnp.float32) * s_ref[...] + b_ref[...], 0.0
    ).astype(pad_ref.dtype)
    pad_ref[0:wpe + 1, :] = zeros(wpe + 1)                 # top pad + left pad
    for r in range(hh):
        base = (r + 1) * wpe + 1
        pad_ref[base:base + ww, :] = h[r]
        if r < hh - 1:                                     # right + next left pad
            pad_ref[base + ww:base + wpe, :] = zeros(wpe - ww)
    tail = hh * wpe + 1 + ww
    pad_ref[tail:rows, :] = zeros(rows - tail)             # bottom pad rows
    # 9 shifted-tap matmuls over the flat plane; acc rows that do not map to a
    # valid output position are garbage and discarded at extraction time.
    acc = jnp.zeros((tt, c), jnp.float32)
    for kh in range(3):
        for kw in range(3):
            start = kh * wpe + kw
            if stride == 1:
                tap = pad_ref[start:start + tt, :]
            else:
                tap = pad_ref[pl.ds(start, tt, stride=stride), :]
            acc = acc + jnp.dot(tap.astype(jnp.bfloat16), w_ref[kh * 3 + kw],
                                preferred_element_type=jnp.float32)
    for i in range(ho):
        o_ref[0, i] = acc[i * wpe:i * wpe + wo, :].astype(jnp.bfloat16)
    st_ref[0] = _stats8(o_ref[0].astype(jnp.float32))


def bn_add_relu_kernel(y_ref, r_ref, sy_ref, by_ref, sr_ref, br_ref, o_ref):
    y = y_ref[...].astype(jnp.float32) * sy_ref[...] + by_ref[...]
    r = r_ref[...].astype(jnp.float32) * sr_ref[...] + br_ref[...]
    o_ref[...] = jnp.maximum(y + r, 0.0).astype(o_ref.dtype)


# ----------------------------------------------------------------------------
# pallas_call wrappers
# ----------------------------------------------------------------------------
def matmul_bn_stats(x2d, w, in_scale=None, in_bias=None):
    """Row-tiled (M,K)x(K,Cout) matmul with optional fused input-side BN
    affine + ReLU; returns (conv output bf16, per-tile BN partial stats)."""
    m, k = x2d.shape
    cout = w.shape[1]
    row_bytes = 4 * (k + cout)            # double-buffered bf16 in/out rows
    resident = 4 * k * cout               # VMEM-resident bf16 weights (2 bufs)
    tm = _pick_tile_m(m, row_bytes, resident)
    mp = _rup(m, tm)
    if mp != m:
        x2d = jnp.pad(x2d, ((0, mp - m), (0, 0)))
    ntiles = mp // tm
    apply_affine = in_scale is not None
    # Padded (all-zero) input rows only corrupt the BN partial stats when an
    # input-side affine is applied (relu(bias) != 0); mask them on the last
    # tile in that case.  With no affine, zero rows -> zero outputs -> no-op.
    rows_valid = m if (mp != m and apply_affine) else None
    kern = functools.partial(matmul_stats_kernel, apply_affine=apply_affine,
                             tile_m=tm, rows_valid=rows_valid)
    in_specs = [pl.BlockSpec((tm, k), lambda i: (i, 0)),
                pl.BlockSpec((k, cout), lambda i: (0, 0))]    # weights resident
    args = [x2d, w]
    if apply_affine:
        in_specs += [pl.BlockSpec((1, k), lambda i: (0, 0)),
                     pl.BlockSpec((1, k), lambda i: (0, 0))]
        args += [in_scale.reshape(1, k).astype(jnp.float32),
                 in_bias.reshape(1, k).astype(jnp.float32)]
    y, stats = pl.pallas_call(
        kern,
        grid=(ntiles,),
        in_specs=in_specs,
        out_specs=[pl.BlockSpec((tm, cout), lambda i: (i, 0)),
                   pl.BlockSpec((1, 8, cout), lambda i: (i, 0, 0))],
        out_shape=(jax.ShapeDtypeStruct((mp, cout), jnp.bfloat16),
                   jax.ShapeDtypeStruct((ntiles, 8, cout), jnp.float32)),
        compiler_params=pltpu.CompilerParams(
            dimension_semantics=("parallel",),
            vmem_limit_bytes=_VMEM_LIMIT),
        cost_estimate=pl.CostEstimate(
            flops=2 * mp * k * cout, transcendentals=0,
            bytes_accessed=2 * (mp * k + k * cout + mp * cout)),
    )(*args)
    if mp != m:
        y = y[:m]
    return y, stats


def conv3x3_bn_stats(y1r, w2, in_scale, in_bias, stride):
    """3x3 conv (pad=1, stride 1|2) over the raw conv1 output, with BN1 affine
    + ReLU fused on the input.  Per-image grid, taps built in VMEM only."""
    n, hgt, wid, c = y1r.shape
    if stride not in (1, 2):
        # TODO(synk): generic conv2 stride > 2 (ResNet only uses 1 or 2).
        raise NotImplementedError("conv2 stride must be 1 or 2")
    ho = (hgt - 1) // stride + 1
    wo = (wid - 1) // stride + 1
    wpe = wid + 2                      # padded-plane row pitch
    rows = (hgt + 2) * wpe             # flat padded plane rows
    tt = (ho - 1) * wpe + wo           # tap / accumulator length
    # f32 scratch for stride 2 keeps the strided tap loads on unpacked
    # sublanes; bf16 for stride 1 halves the interior-write traffic.
    scratch_dt = jnp.bfloat16 if stride == 1 else jnp.float32
    kern = functools.partial(conv3x3_kernel, hh=hgt, ww=wid, c=c, ho=ho, wo=wo,
                             wpe=wpe, rows=rows, tt=tt, stride=stride)
    s = in_scale.reshape(1, c).astype(jnp.float32)
    b = in_bias.reshape(1, c).astype(jnp.float32)
    return pl.pallas_call(
        kern, grid=(n,),
        in_specs=[pl.BlockSpec((1, hgt, wid, c), lambda i: (i, 0, 0, 0)),
                  pl.BlockSpec((9, c, c), lambda i: (0, 0, 0)),
                  pl.BlockSpec((1, c), lambda i: (0, 0)),
                  pl.BlockSpec((1, c), lambda i: (0, 0))],
        out_specs=[pl.BlockSpec((1, ho, wo, c), lambda i: (i, 0, 0, 0)),
                   pl.BlockSpec((1, 8, c), lambda i: (i, 0, 0))],
        out_shape=(jax.ShapeDtypeStruct((n, ho, wo, c), jnp.bfloat16),
                   jax.ShapeDtypeStruct((n, 8, c), jnp.float32)),
        scratch_shapes=[pltpu.VMEM((rows, c), scratch_dt)],
        compiler_params=pltpu.CompilerParams(
            dimension_semantics=("parallel",),
            vmem_limit_bytes=_VMEM_LIMIT),
    )(y1r, w2, s, b)


def bn_add_relu(y, resid, sy, by, sr, br):
    m, c = y.shape
    row_bytes = (2 * 2 + 2 * resid.dtype.itemsize + 2 * 2) * c
    tm = _pick_tile_m(m, row_bytes)
    mp = _rup(m, tm)
    if mp != m:
        y = jnp.pad(y, ((0, mp - m), (0, 0)))
        resid = jnp.pad(resid, ((0, mp - m), (0, 0)))
    out = pl.pallas_call(
        bn_add_relu_kernel,
        grid=(mp // tm,),
        in_specs=[pl.BlockSpec((tm, c), lambda i: (i, 0)),
                  pl.BlockSpec((tm, c), lambda i: (i, 0)),
                  pl.BlockSpec((1, c), lambda i: (0, 0)),
                  pl.BlockSpec((1, c), lambda i: (0, 0)),
                  pl.BlockSpec((1, c), lambda i: (0, 0)),
                  pl.BlockSpec((1, c), lambda i: (0, 0))],
        out_specs=pl.BlockSpec((tm, c), lambda i: (i, 0)),
        # bf16 output halves the HBM write of the block's largest tensor; the
        # next block's conv1 consumes bf16 anyway.
        out_shape=jax.ShapeDtypeStruct((mp, c), jnp.bfloat16),
        compiler_params=pltpu.CompilerParams(
            dimension_semantics=("parallel",),
            vmem_limit_bytes=_VMEM_LIMIT),
    )(y, resid, sy.reshape(1, c).astype(jnp.float32),
      by.reshape(1, c).astype(jnp.float32),
      sr.reshape(1, c).astype(jnp.float32),
      br.reshape(1, c).astype(jnp.float32))
    return out[:m] if mp != m else out


# ----------------------------------------------------------------------------
# BN finalization (tiny, plain JAX) and parameter padding helpers
# ----------------------------------------------------------------------------
def _bn_affine_from_stats(stats, count, gamma, beta, eps=EPS):
    s = jnp.sum(stats[:, 0, :], axis=0)
    q = jnp.sum(stats[:, 1, :], axis=0)
    mean = s / count
    var = q / count - mean * mean
    scale = gamma * jax.lax.rsqrt(var + eps)
    bias = beta - mean * scale
    return scale, bias


def _pad_vec(v, cp):
    return jnp.pad(v.astype(jnp.float32), (0, cp - v.shape[0]))


def _pad_mat(w, kp, cp):
    k0, c0 = w.shape
    return jnp.pad(w.astype(jnp.float32),
                   ((0, kp - k0), (0, cp - c0))).astype(jnp.bfloat16)


def _pad_w2(w2, cp):
    c_in, c_out = w2.shape[2], w2.shape[3]
    w = jnp.pad(w2.astype(jnp.float32),
                ((0, 0), (0, 0), (0, cp - c_in), (0, cp - c_out)))
    return w.reshape(9, cp, cp).astype(jnp.bfloat16)


def _pad_ch(x, cp):
    return jnp.pad(x, ((0, 0), (0, 0), (0, 0), (0, cp - x.shape[-1])))


# ----------------------------------------------------------------------------
# Bottleneck forward (Pallas path)
# ----------------------------------------------------------------------------
def bottleneck_forward(x_nchw, params, stride, expansion=4):
    # TODO(synk): when chaining Bottleneck blocks keep activations NHWC bf16
    #             (channel-padded) between blocks and drop these transposes.
    x = jnp.transpose(x_nchw, (0, 2, 3, 1)).astype(jnp.float32)   # NHWC
    n, hgt, wid, cin = x.shape
    cmid = params["w1"].shape[1]
    cexp = cmid * expansion
    cinp = _rup(cin, _LANE)
    cmidp = _rup(cmid, _LANE)
    cexpp = _rup(cexp, _LANE)

    w1 = _pad_mat(params["w1"], cinp, cmidp)
    w2 = _pad_w2(params["w2"], cmidp)
    w3 = _pad_mat(params["w3"], cmidp, cexpp)
    g1, b1 = _pad_vec(params["g1"], cmidp), _pad_vec(params["b1"], cmidp)
    g2, b2 = _pad_vec(params["g2"], cmidp), _pad_vec(params["b2"], cmidp)
    g3, b3 = _pad_vec(params["g3"], cexpp), _pad_vec(params["b3"], cexpp)

    x_bf = x.astype(jnp.bfloat16)       # cast before channel padding (bf16 HBM)
    m1 = n * hgt * wid

    # conv1 (1x1): raw output + BN1 partial stats
    y1, st1 = matmul_bn_stats(_pad_ch(x_bf, cinp).reshape(m1, cinp), w1)
    sc1, bi1 = _bn_affine_from_stats(st1, m1, g1, b1)

    # conv2 (3x3, stride, pad=1) with BN1 affine + ReLU fused on its input
    ho = (hgt - 1) // stride + 1
    wo = (wid - 1) // stride + 1
    m2 = n * ho * wo
    y2, st2 = conv3x3_bn_stats(y1.reshape(n, hgt, wid, cmidp), w2, sc1, bi1,
                               stride)
    sc2, bi2 = _bn_affine_from_stats(st2, m2, g2, b2)

    # conv3 (1x1) with BN2 affine + ReLU fused on its input
    y3, st3 = matmul_bn_stats(y2.reshape(m2, cmidp), w3,
                              in_scale=sc2, in_bias=bi2)
    sc3, bi3 = _bn_affine_from_stats(st3, m2, g3, b3)

    # residual branch
    if stride != 1 or cin != cexp:
        wd = _pad_mat(params["wd"], cinp, cexpp)
        gd, bd = _pad_vec(params["gd"], cexpp), _pad_vec(params["bd"], cexpp)
        # Slice spatially and cast to bf16 BEFORE channel padding (one small
        # HBM pass instead of a strided gather on the padded f32 tensor).
        xs = _pad_ch(x_bf[:, ::stride, ::stride, :], cinp).reshape(m2, cinp)
        yd, std_ = matmul_bn_stats(xs, wd)
        scd, bid = _bn_affine_from_stats(std_, m2, gd, bd)
        resid = yd
    else:
        # Identity residual is consumed in f32 (matches PyTorch / reference).
        resid = _pad_ch(x, cexpp).reshape(m2, cexpp)
        scd = jnp.ones((cexpp,), jnp.float32)
        bid = jnp.zeros((cexpp,), jnp.float32)

    # BN3 + BN_down + residual add + ReLU (fused elementwise kernel, bf16 out)
    out = bn_add_relu(y3, resid, sc3, bi3, scd, bid)
    out = out[:, :cexp].reshape(n, ho, wo, cexp)
    return jnp.transpose(out, (0, 3, 1, 2))    # back to NCHW (bf16)


# ----------------------------------------------------------------------------
# Pure-JAX reference (lax.conv) mirroring the kernel's precision policy:
# bf16 conv operands, f32 accumulation, bf16-rounded stored conv outputs,
# training-mode BatchNorm in f32.
# ----------------------------------------------------------------------------
def bottleneck_reference(x_nchw, params, stride, expansion=4):
    f32 = jnp.float32
    x = jnp.transpose(x_nchw, (0, 2, 3, 1)).astype(f32)
    cin = x.shape[-1]
    cmid = params["w1"].shape[1]
    cexp = cmid * expansion
    dn = ("NHWC", "HWIO", "NHWC")

    def conv(inp, w, s, pad):
        return jax.lax.conv_general_dilated(
            inp.astype(jnp.bfloat16), w.astype(jnp.bfloat16),
            window_strides=(s, s), padding=pad, dimension_numbers=dn,
            preferred_element_type=f32)

    def rb(v):
        return v.astype(jnp.bfloat16).astype(f32)

    def bn(y, g, b):
        mean = jnp.mean(y, axis=(0, 1, 2))
        var = jnp.mean(y * y, axis=(0, 1, 2)) - mean * mean
        sc = g * jax.lax.rsqrt(var + EPS)
        return y * sc + (b - mean * sc)

    y1 = rb(conv(x, params["w1"].reshape(1, 1, cin, cmid), 1, "VALID"))
    h1 = jnp.maximum(bn(y1, params["g1"], params["b1"]), 0.0)
    y2 = rb(conv(h1, params["w2"], stride, ((1, 1), (1, 1))))
    h2 = jnp.maximum(bn(y2, params["g2"], params["b2"]), 0.0)
    y3 = rb(conv(h2, params["w3"].reshape(1, 1, cmid, cexp), 1, "VALID"))
    o3 = bn(y3, params["g3"], params["b3"])
    if stride != 1 or cin != cexp:
        yd = rb(conv(x[:, ::stride, ::stride, :],
                     params["wd"].reshape(1, 1, cin, cexp), 1, "VALID"))
        idn = bn(yd, params["gd"], params["bd"])
    else:
        idn = x
    out = jnp.maximum(o3 + idn, 0.0)
    return jnp.transpose(out, (0, 3, 1, 2))


# ----------------------------------------------------------------------------
# Deterministic parameter init
# ----------------------------------------------------------------------------
def init_params(key, cin, cmid, expansion=4):
    cexp = cmid * expansion
    ks = jax.random.split(key, 12)
    nrm = lambda k, s: 0.2 * jax.random.normal(k, s, jnp.float32)
    return {
        "w1": nrm(ks[0], (cin, cmid)),
        "g1": 1.0 + 0.1 * jax.random.normal(ks[1], (cmid,), jnp.float32),
        "b1": 0.1 * jax.random.normal(ks[2], (cmid,), jnp.float32),
        "w2": nrm(ks[3], (3, 3, cmid, cmid)),           # HWIO
        "g2": 1.0 + 0.1 * jax.random.normal(ks[4], (cmid,), jnp.float32),
        "b2": 0.1 * jax.random.normal(ks[5], (cmid,), jnp.float32),
        "w3": nrm(ks[6], (cmid, cexp)),
        "g3": 1.0 + 0.1 * jax.random.normal(ks[7], (cexp,), jnp.float32),
        "b3": 0.1 * jax.random.normal(ks[8], (cexp,), jnp.float32),
        "wd": nrm(ks[9], (cin, cexp)),                  # downsample 1x1
        "gd": 1.0 + 0.1 * jax.random.normal(ks[10], (cexp,), jnp.float32),
        "bd": 0.1 * jax.random.normal(ks[11], (cexp,), jnp.float32),
    }


if __name__ == "__main__":
    key = jax.random.PRNGKey(0)
    kx, kp1, kp2 = jax.random.split(key, 3)

    fwd = jax.jit(bottleneck_forward, static_argnames=("stride", "expansion"))

    # Config A: downsample path (stride=2, 4 -> 16 channels), NCHW input.
    x_a = jax.random.normal(kx, (2, 4, 16, 16), jnp.float32)
    params_a = init_params(kp1, cin=4, cmid=4)
    out_a = jax.block_until_ready(fwd(x_a, params_a, stride=2))
    ref_a = bottleneck_reference(x_a, params_a, stride=2)
    assert out_a.shape == (2, 16, 8, 8), out_a.shape
    assert jnp.allclose(out_a.astype(jnp.float32), ref_a,
                        rtol=2e-2, atol=2e-2), (
        float(jnp.max(jnp.abs(out_a.astype(jnp.float32) - ref_a))))

    # Config B: identity path (stride=1, in_channels == out_channels * 4).
    x_b = jax.random.normal(kx, (2, 16, 16, 16), jnp.float32)
    params_b = init_params(kp2, cin=16, cmid=4)
    out_b = jax.block_until_ready(fwd(x_b, params_b, stride=1))
    ref_b = bottleneck_reference(x_b, params_b, stride=1)
    assert out_b.shape == (2, 16, 16, 16), out_b.shape
    assert jnp.allclose(out_b.astype(jnp.float32), ref_b,
                        rtol=2e-2, atol=2e-2), (
        float(jnp.max(jnp.abs(out_b.astype(jnp.float32) - ref_b))))

    print("KERNEL_OK")
</pallas_src>

<mosaic_0001>
module attributes {stable_mosaic.version = 11 : i64} {
  func.func @matmul_stats_kernel(%arg0: i32, %arg1: memref<512x128xbf16, #tpu.memory_space<vmem>>, %arg2: memref<128x128xbf16, #tpu.memory_space<vmem>>, %arg3: memref<512x128xbf16, #tpu.memory_space<vmem>>, %arg4: memref<1x8x128xf32, #tpu.memory_space<vmem>>) attributes {dimension_semantics = [#tpu.dimension_semantics<parallel>], iteration_bounds = array<i64: 1>, scalar_prefetch = 0 : i64, scratch_operands = 0 : i64, tpu.core_type = #tpu.core_type<tc>, window_params = [{transform_indices = @transform_0, window_bounds = array<i64: 512, 128>}, {pipeline_mode = #tpu.pipeline_mode<synchronous>, transform_indices = @transform_1, window_bounds = array<i64: 128, 128>}, {transform_indices = @transform_2, window_bounds = array<i64: 512, 128>}, {transform_indices = @transform_3, window_bounds = array<i64: 1, 8, 128>}]} {
    %c0 = arith.constant 0 : index
    %c0_0 = arith.constant 0 : index
    %0 = vector.load %arg1[%c0, %c0_0] : memref<512x128xbf16, #tpu.memory_space<vmem>>, vector<512x128xbf16>
    %c0_1 = arith.constant 0 : index
    %c0_2 = arith.constant 0 : index
    %1 = vector.load %arg2[%c0_1, %c0_2] : memref<128x128xbf16, #tpu.memory_space<vmem>>, vector<128x128xbf16>
    %cst = arith.constant dense<0.000000e+00> : vector<512x128xf32>
    %2 = tpu.matmul %0, %1, %cst {dimension_numbers = #tpu.dot_dimension_numbers<[1], [0], [0], [1], [0, 0, 1, 1], [], []>} : vector<512x128xbf16>, vector<128x128xbf16>, vector<512x128xf32> -> vector<512x128xf32>
    %3 = arith.truncf %2 : vector<512x128xf32> to vector<512x128xbf16>
    %c0_3 = arith.constant 0 : index
    %c0_4 = arith.constant 0 : index
    %4 = vector.load %arg3[%c0_3, %c0_4] : memref<512x128xbf16, #tpu.memory_space<vmem>>, vector<512x128xbf16>
    tpu.vector_store %arg3[%c0_3, %c0_4], %3 {strides = array<i32>} : memref<512x128xbf16, #tpu.memory_space<vmem>>, vector<512x128xbf16>,
    %5 = arith.extf %3 : vector<512x128xbf16> to vector<512x128xf32>
    %6 = arith.mulf %5, %5 : vector<512x128xf32>
    %cst_5 = arith.constant dense<0.000000e+00> : vector<128xf32>
    %7 = vector.multi_reduction <add>, %5, %cst_5 [0] : vector<512x128xf32> to vector<128xf32>
    %8 = vector.shape_cast %7 : vector<128xf32> to vector<1x128xf32>
    %cst_6 = arith.constant dense<0.000000e+00> : vector<128xf32>
    %9 = vector.multi_reduction <add>, %6, %cst_6 [0] : vector<512x128xf32> to vector<128xf32>
    %10 = vector.shape_cast %9 : vector<128xf32> to vector<1x128xf32>
    %11 = tpu.iota {dimensions = array<i32: 0>} : vector<8x128xi32>
    %c0_i32 = arith.constant 0 : i32
    %12 = vector.broadcast %c0_i32 : i32 to vector<8x128xi32>
    %13 = arith.cmpi eq, %11, %12 : vector<8x128xi32>
    %c1_i32 = arith.constant 1 : i32
    %14 = vector.broadcast %c1_i32 : i32 to vector<8x128xi32>
    %15 = arith.cmpi eq, %11, %14 : vector<8x128xi32>
    %cst_7 = arith.constant 0.000000e+00 : f32
    %16 = vector.shape_cast %10 : vector<1x128xf32> to vector<1x128xf32>
    %17 = vector.broadcast %16 : vector<1x128xf32> to vector<8x128xf32>
    %18 = vector.broadcast %cst_7 : f32 to vector<8x128xf32>
    %19 = arith.select %15, %17, %18 : vector<8x128xi1>, vector<8x128xf32>
    %20 = vector.shape_cast %8 : vector<1x128xf32> to vector<1x128xf32>
    %21 = vector.broadcast %20 : vector<1x128xf32> to vector<8x128xf32>
    %22 = arith.select %13, %21, %19 : vector<8x128xi1>, vector<8x128xf32>
    %c0_8 = arith.constant 0 : index
    %c0_9 = arith.constant 0 : index
    %c0_10 = arith.constant 0 : index
    %23 = vector.load %arg4[%c0_8, %c0_9, %c0_10] : memref<1x8x128xf32, #tpu.memory_space<vmem>>, vector<1x8x128xf32>
    %24 = vector.shape_cast %23 : vector<1x8x128xf32> to vector<8x128xf32>
    %25 = vector.shape_cast %22 : vector<8x128xf32> to vector<1x8x128xf32>
    tpu.vector_store %arg4[%c0_8, %c0_9, %c0_10], %25 {strides = array<i32>} : memref<1x8x128xf32, #tpu.memory_space<vmem>>, vector<1x8x128xf32>,
    return
  }
  func.func @transform_0(%arg0: i32) -> (i32, i32) {
    %c0_i32 = arith.constant 0 : i32
    %c0_i32_0 = arith.constant 0 : i32
    return %arg0, %c0_i32 : i32, i32
  }
  func.func @transform_1(%arg0: i32) -> (i32, i32) {
    %c0_i32 = arith.constant 0 : i32
    %c0_i32_0 = arith.constant 0 : i32
    %c0_i32_1 = arith.constant 0 : i32
    return %c0_i32, %c0_i32_0 : i32, i32
  }
  func.func @transform_2(%arg0: i32) -> (i32, i32) {
    %c0_i32 = arith.constant 0 : i32
    %c0_i32_0 = arith.constant 0 : i32
    return %arg0, %c0_i32 : i32, i32
  }
  func.func @transform_3(%arg0: i32) -> (i32, i32, i32) {
    %c0_i32 = arith.constant 0 : i32
    %c0_i32_0 = arith.constant 0 : i32
    %c0_i32_1 = arith.constant 0 : i32
    return %arg0, %c0_i32, %c0_i32_0 : i32, i32, i32
  }
}

module attributes {stable_mosaic.version = 11 : i64} {
  func.func @matmul_stats_kernel(%arg0: i32, %arg1: memref<128x128xbf16, #tpu.memory_space<vmem>>, %arg2: memref<128x128xbf16, #tpu.memory_space<vmem>>, %arg3: memref<1x128xf32, #tpu.memory_space<vmem>>, %arg4: memref<1x128xf32, #tpu.memory_space<vmem>>, %arg5: memref<128x128xbf16, #tpu.memory_space<vmem>>, %arg6: memref<1x8x128xf32, #tpu.memory_space<vmem>>) attributes {dimension_semantics = [#tpu.dimension_semantics<parallel>], iteration_bounds = array<i64: 1>, scalar_prefetch = 0 : i64, scratch_operands = 0 : i64, tpu.core_type = #tpu.core_type<tc>, window_params = [{transform_indices = @transform_0, window_bounds = array<i64: 128, 128>}, {pipeline_mode = #tpu.pipeline_mode<synchronous>, transform_indices = @transform_1, window_bounds = array<i64: 128, 128>}, {pipeline_mode = #tpu.pipeline_mode<synchronous>, transform_indices = @transform_2, window_bounds = array<i64: 1, 128>}, {pipeline_mode = #tpu.pipeline_mode<synchronous>, transform_indices = @transform_3, window_bounds = array<i64: 1, 128>}, {transform_indices = @transform_4, window_bounds = array<i64: 128, 128>}, {transform_indices = @transform_5, window_bounds = array<i64: 1, 8, 128>}]} {
    %c0 = arith.constant 0 : index
    %c0_0 = arith.constant 0 : index
    %0 = vector.load %arg1[%c0, %c0_0] : memref<128x128xbf16, #tpu.memory_space<vmem>>, vector<128x128xbf16>
    %1 = arith.extf %0 : vector<128x128xbf16> to vector<128x128xf32>
    %c0_1 = arith.constant 0 : index
    %c0_2 = arith.constant 0 : index
    %2 = vector.load %arg3[%c0_1, %c0_2] : memref<1x128xf32, #tpu.memory_space<vmem>>, vector<1x128xf32>
    %3 = vector.broadcast %2 : vector<1x128xf32> to vector<128x128xf32>
    %4 = arith.mulf %1, %3 : vector<128x128xf32>
    %c0_3 = arith.constant 0 : index
    %c0_4 = arith.constant 0 : index
    %5 = vector.load %arg4[%c0_3, %c0_4] : memref<1x128xf32, #tpu.memory_space<vmem>>, vector<1x128xf32>
    %6 = vector.broadcast %5 : vector<1x128xf32> to vector<128x128xf32>
    %7 = arith.addf %4, %6 : vector<128x128xf32>
    %cst = arith.constant 0.000000e+00 : f32
    %8 = vector.broadcast %cst : f32 to vector<128x128xf32>
    %9 = arith.maximumf %7, %8 : vector<128x128xf32>
    %10 = arith.truncf %9 : vector<128x128xf32> to vector<128x128xbf16>
    %c0_5 = arith.constant 0 : index
    %c0_6 = arith.constant 0 : index
    %11 = vector.load %arg2[%c0_5, %c0_6] : memref<128x128xbf16, #tpu.memory_space<vmem>>, vector<128x128xbf16>
    %cst_7 = arith.constant dense<0.000000e+00> : vector<128x128xf32>
    %12 = tpu.matmul %10, %11, %cst_7 {dimension_numbers = #tpu.dot_dimension_numbers<[1], [0], [0], [1], [0, 0, 1, 1], [], []>} : vector<128x128xbf16>, vector<128x128xbf16>, vector<128x128xf32> -> vector<128x128xf32>
    %13 = arith.truncf %12 : vector<128x128xf32> to vector<128x128xbf16>
    %c0_8 = arith.constant 0 : index
    %c0_9 = arith.constant 0 : index
    %14 = vector.load %arg5[%c0_8, %c0_9] : memref<128x128xbf16, #tpu.memory_space<vmem>>, vector<128x128xbf16>
    tpu.vector_store %arg5[%c0_8, %c0_9], %13 {strides = array<i32>} : memref<128x128xbf16, #tpu.memory_space<vmem>>, vector<128x128xbf16>,
    %15 = arith.extf %13 : vector<128x128xbf16> to vector<128x128xf32>
    %16 = arith.mulf %15, %15 : vector<128x128xf32>
    %cst_10 = arith.constant dense<0.000000e+00> : vector<128xf32>
    %17 = vector.multi_reduction <add>, %15, %cst_10 [0] : vector<128x128xf32> to vector<128xf32>
    %18 = vector.shape_cast %17 : vector<128xf32> to vector<1x128xf32>
    %cst_11 = arith.constant dense<0.000000e+00> : vector<128xf32>
    %19 = vector.multi_reduction <add>, %16, %cst_11 [0] : vector<128x128xf32> to vector<128xf32>
    %20 = vector.shape_cast %19 : vector<128xf32> to vector<1x128xf32>
    %21 = tpu.iota {dimensions = array<i32: 0>} : vector<8x128xi32>
    %c0_i32 = arith.constant 0 : i32
    %22 = vector.broadcast %c0_i32 : i32 to vector<8x128xi32>
    %23 = arith.cmpi eq, %21, %22 : vector<8x128xi32>
    %c1_i32 = arith.constant 1 : i32
    %24 = vector.broadcast %c1_i32 : i32 to vector<8x128xi32>
    %25 = arith.cmpi eq, %21, %24 : vector<8x128xi32>
    %cst_12 = arith.constant 0.000000e+00 : f32
    %26 = vector.shape_cast %20 : vector<1x128xf32> to vector<1x128xf32>
    %27 = vector.broadcast %26 : vector<1x128xf32> to vector<8x128xf32>
    %28 = vector.broadcast %cst_12 : f32 to vector<8x128xf32>
    %29 = arith.select %25, %27, %28 : vector<8x128xi1>, vector<8x128xf32>
    %30 = vector.shape_cast %18 : vector<1x128xf32> to vector<1x128xf32>
    %31 = vector.broadcast %30 : vector<1x128xf32> to vector<8x128xf32>
    %32 = arith.select %23, %31, %29 : vector<8x128xi1>, vector<8x128xf32>
    %c0_13 = arith.constant 0 : index
    %c0_14 = arith.constant 0 : index
    %c0_15 = arith.constant 0 : index
    %33 = vector.load %arg6[%c0_13, %c0_14, %c0_15] : memref<1x8x128xf32, #tpu.memory_space<vmem>>, vector<1x8x128xf32>
    %34 = vector.shape_cast %33 : vector<1x8x128xf32> to vector<8x128xf32>
    %35 = vector.shape_cast %32 : vector<8x128xf32> to vector<1x8x128xf32>
    tpu.vector_store %arg6[%c0_13, %c0_14, %c0_15], %35 {strides = array<i32>} : memref<1x8x128xf32, #tpu.memory_space<vmem>>, vector<1x8x128xf32>,
    return
  }
  func.func @transform_0(%arg0: i32) -> (i32, i32) {
    %c0_i32 = arith.constant 0 : i32
    %c0_i32_0 = arith.constant 0 : i32
    return %arg0, %c0_i32 : i32, i32
  }
  func.func @transform_1(%arg0: i32) -> (i32, i32) {
    %c0_i32 = arith.constant 0 : i32
    %c0_i32_0 = arith.constant 0 : i32
    %c0_i32_1 = arith.constant 0 : i32
    return %c0_i32, %c0_i32_0 : i32, i32
  }
  func.func @transform_2(%arg0: i32) -> (i32, i32) {
    %c0_i32 = arith.constant 0 : i32
    %c0_i32_0 = arith.constant 0 : i32
    %c0_i32_1 = arith.constant 0 : i32
    return %c0_i32, %c0_i32_0 : i32, i32
  }
  func.func @transform_3(%arg0: i32) -> (i32, i32) {
    %c0_i32 = arith.constant 0 : i32
    %c0_i32_0 = arith.constant 0 : i32
    %c0_i32_1 = arith.constant 0 : i32
    return %c0_i32, %c0_i32_0 : i32, i32
  }
  func.func @transform_4(%arg0: i32) -> (i32, i32) {
    %c0_i32 = arith.constant 0 : i32
    %c0_i32_0 = arith.constant 0 : i32
    return %arg0, %c0_i32 : i32, i32
  }
  func.func @transform_5(%arg0: i32) -> (i32, i32, i32) {
    %c0_i32 = arith.constant 0 : i32
    %c0_i32_0 = arith.constant 0 : i32
    %c0_i32_1 = arith.constant 0 : i32
    return %arg0, %c0_i32, %c0_i32_0 : i32, i32, i32
  }
}

module attributes {stable_mosaic.version = 11 : i64} {
  func.func @conv3x3_kernel(%arg0: i32, %arg1: memref<1x16x16x128xbf16, #tpu.memory_space<vmem>>, %arg2: memref<9x128x128xbf16, #tpu.memory_space<vmem>>, %arg3: memref<1x128xf32, #tpu.memory_space<vmem>>, %arg4: memref<1x128xf32, #tpu.memory_space<vmem>>, %arg5: memref<1x8x8x128xbf16, #tpu.memory_space<vmem>>, %arg6: memref<1x8x128xf32, #tpu.memory_space<vmem>>, %arg7: memref<324x128xf32, #tpu.memory_space<vmem>>) attributes {dimension_semantics = [#tpu.dimension_semantics<parallel>], iteration_bounds = array<i64: 2>, scalar_prefetch = 0 : i64, scratch_operands = 1 : i64, tpu.core_type = #tpu.core_type<tc>, window_params = [{transform_indices = @transform_0, window_bounds = array<i64: 1, 16, 16, 128>}, {pipeline_mode = #tpu.pipeline_mode<synchronous>, transform_indices = @transform_1, window_bounds = array<i64: 9, 128, 128>}, {pipeline_mode = #tpu.pipeline_mode<synchronous>, transform_indices = @transform_2, window_bounds = array<i64: 1, 128>}, {pipeline_mode = #tpu.pipeline_mode<synchronous>, transform_indices = @transform_3, window_bounds = array<i64: 1, 128>}, {transform_indices = @transform_4, window_bounds = array<i64: 1, 8, 8, 128>}, {transform_indices = @transform_5, window_bounds = array<i64: 1, 8, 128>}]} {
    %c0 = arith.constant 0 : index
    %c0_0 = arith.constant 0 : index
    %c0_1 = arith.constant 0 : index
    %c0_2 = arith.constant 0 : index
    %0 = vector.load %arg1[%c0, %c0_0, %c0_1, %c0_2] : memref<1x16x16x128xbf16, #tpu.memory_space<vmem>>, vector<1x16x16x128xbf16>
    %1 = vector.shape_cast %0 : vector<1x16x16x128xbf16> to vector<16x16x128xbf16>
    %2 = arith.extf %1 : vector<16x16x128xbf16> to vector<16x16x128xf32>
    %c0_3 = arith.constant 0 : index
    %c0_4 = arith.constant 0 : index
    %3 = vector.load %arg3[%c0_3, %c0_4] : memref<1x128xf32, #tpu.memory_space<vmem>>, vector<1x128xf32>
    %4 = vector.shape_cast %3 : vector<1x128xf32> to vector<1x1x128xf32>
    %5 = vector.broadcast %4 : vector<1x1x128xf32> to vector<16x16x128xf32>
    %6 = arith.mulf %2, %5 : vector<16x16x128xf32>
    %c0_5 = arith.constant 0 : index
    %c0_6 = arith.constant 0 : index
    %7 = vector.load %arg4[%c0_5, %c0_6] : memref<1x128xf32, #tpu.memory_space<vmem>>, vector<1x128xf32>
    %8 = vector.shape_cast %7 : vector<1x128xf32> to vector<1x1x128xf32>
    %9 = vector.broadcast %8 : vector<1x1x128xf32> to vector<16x16x128xf32>
    %10 = arith.addf %6, %9 : vector<16x16x128xf32>
    %cst = arith.constant 0.000000e+00 : f32
    %11 = vector.broadcast %cst : f32 to vector<16x16x128xf32>
    %12 = arith.maximumf %10, %11 : vector<16x16x128xf32>
    %cst_7 = arith.constant 0.000000e+00 : f32
    %13 = vector.broadcast %cst_7 : f32 to vector<19x128xf32>
    %c0_8 = arith.constant 0 : index
    %c0_9 = arith.constant 0 : index
    %14 = vector.load %arg7[%c0_8, %c0_9] : memref<324x128xf32, #tpu.memory_space<vmem>>, vector<19x128xf32>
    tpu.vector_store %arg7[%c0_8, %c0_9], %13 {strides = array<i32>} : memref<324x128xf32, #tpu.memory_space<vmem>>, vector<19x128xf32>,
    %15 = vector.extract_strided_slice %12 {offsets = [0, 0, 0], sizes = [1, 16, 128], strides = [1, 1, 1]} : vector<16x16x128xf32> to vector<1x16x128xf32>
    %16 = vector.shape_cast %15 : vector<1x16x128xf32> to vector<16x128xf32>
    %c19 = arith.constant 19 : index
    %c0_10 = arith.constant 0 : index
    %17 = vector.load %arg7[%c19, %c0_10] : memref<324x128xf32, #tpu.memory_space<vmem>>, vector<16x128xf32>
    tpu.vector_store %arg7[%c19, %c0_10], %16 {strides = array<i32>} : memref<324x128xf32, #tpu.memory_space<vmem>>, vector<16x128xf32>,
    %cst_11 = arith.constant 0.000000e+00 : f32
    %18 = vector.broadcast %cst_11 : f32 to vector<2x128xf32>
    %c35 = arith.constant 35 : index
    %c0_12 = arith.constant 0 : index
    %19 = vector.load %arg7[%c35, %c0_12] : memref<324x128xf32, #tpu.memory_space<vmem>>, vector<2x128xf32>
    tpu.vector_store %arg7[%c35, %c0_12], %18 {strides = array<i32>} : memref<324x128xf32, #tpu.memory_space<vmem>>, vector<2x128xf32>,
    %20 = vector.extract_strided_slice %12 {offsets = [1, 0, 0], sizes = [1, 16, 128], strides = [1, 1, 1]} : vector<16x16x128xf32> to vector<1x16x128xf32>
    %21 = vector.shape_cast %20 : vector<1x16x128xf32> to vector<16x128xf32>
    %c37 = arith.constant 37 : index
    %c0_13 = arith.constant 0 : index
    %22 = vector.load %arg7[%c37, %c0_13] : memref<324x128xf32, #tpu.memory_space<vmem>>, vector<16x128xf32>
    tpu.vector_store %arg7[%c37, %c0_13], %21 {strides = array<i32>} : memref<324x128xf32, #tpu.memory_space<vmem>>, vector<16x128xf32>,
    %cst_14 = arith.constant 0.000000e+00 : f32
    %23 = vector.broadcast %cst_14 : f32 to vector<2x128xf32>
    %c53 = arith.constant 53 : index
    %c0_15 = arith.constant 0 : index
    %24 = vector.load %arg7[%c53, %c0_15] : memref<324x128xf32, #tpu.memory_space<vmem>>, vector<2x128xf32>
    tpu.vector_store %arg7[%c53, %c0_15], %23 {strides = array<i32>} : memref<324x128xf32, #tpu.memory_space<vmem>>, vector<2x128xf32>,
    %25 = vector.extract_strided_slice %12 {offsets = [2, 0, 0], sizes = [1, 16, 128], strides = [1, 1, 1]} : vector<16x16x128xf32> to vector<1x16x128xf32>
    %26 = vector.shape_cast %25 : vector<1x16x128xf32> to vector<16x128xf32>
    %c55 = arith.constant 55 : index
    %c0_16 = arith.constant 0 : index
    %27 = vector.load %arg7[%c55, %c0_16] : memref<324x128xf32, #tpu.memory_space<vmem>>, vector<16x128xf32>
    tpu.vector_store %arg7[%c55, %c0_16], %26 {strides = array<i32>} : memref<324x128xf32, #tpu.memory_space<vmem>>, vector<16x128xf32>,
    %cst_17 = arith.constant 0.000000e+00 : f32
    %28 = vector.broadcast %cst_17 : f32 to vector<2x128xf32>
    %c71 = arith.constant 71 : index
    %c0_18 = arith.constant 0 : index
    %29 = vector.load %arg7[%c71, %c0_18] : memref<324x128xf32, #tpu.memory_space<vmem>>, vector<2x128xf32>
    tpu.vector_store %arg7[%c71, %c0_18], %28 {strides = array<i32>} : memref<324x128xf32, #tpu.memory_space<vmem>>, vector<2x128xf32>,
    %30 = vector.extract_strided_slice %12 {offsets = [3, 0, 0], sizes = [1, 16, 128], strides = [1, 1, 1]} : vector<16x16x128xf32> to vector<1x16x128xf32>
    %31 = vector.shape_cast %30 : vector<1x16x128xf32> to vector<16x128xf32>
    %c73 = arith.constant 73 : index
    %c0_19 = arith.constant 0 : index
    %32 = vector.load %arg7[%c73, %c0_19] : memref<324x128xf32, #tpu.memory_space<vmem>>, vector<16x128xf32>
    tpu.vector_store %arg7[%c73, %c0_19], %31 {strides = array<i32>} : memref<324x128xf32, #tpu.memory_space<vmem>>, vector<16x128xf32>,
    %cst_20 = arith.constant 0.000000e+00 : f32
    %33 = vector.broadcast %cst_20 : f32 to vector<2x128xf32>
    %c89 = arith.constant 89 : index
    %c0_21 = arith.constant 0 : index
    %34 = vector.load %arg7[%c89, %c0_21] : memref<324x128xf32, #tpu.memory_space<vmem>>, vector<2x128xf32>
    tpu.vector_store %arg7[%c89, %c0_21], %33 {strides = array<i32>} : memref<324x128xf32, #tpu.memory_space<vmem>>, vector<2x128xf32>,
    %35 = vector.extract_strided_slice %12 {offsets = [4, 0, 0], sizes = [1, 16, 128], strides = [1, 1, 1]} : vector<16x16x128xf32> to vector<1x16x128xf32>
    %36 = vector.shape_cast %35 : vector<1x16x128xf32> to vector<16x128xf32>
    %c91 = arith.constant 91 : index
    %c0_22 = arith.constant 0 : index
    %37 = vector.load %arg7[%c91, %c0_22] : memref<324x128xf32, #tpu.memory_space<vmem>>, vector<16x128xf32>
    tpu.vector_store %arg7[%c91, %c0_22], %36 {strides = array<i32>} : memref<324x128xf32, #tpu.memory_space<vmem>>, vector<16x128xf32>,
    %cst_23 = arith.constant 0.000000e+00 : f32
    %38 = vector.broadcast %cst_23 : f32 to vector<2x128xf32>
    %c107 = arith.constant 107 : index
    %c0_24 = arith.constant 0 : index
    %39 = vector.load %arg7[%c107, %c0_24] : memref<324x128xf32, #tpu.memory_space<vmem>>, vector<2x128xf32>
    tpu.vector_store %arg7[%c107, %c0_24], %38 {strides = array<i32>} : memref<324x128xf32, #tpu.memory_space<vmem>>, vector<2x128xf32>,
    %40 = vector.extract_strided_slice %12 {offsets = [5, 0, 0], sizes = [1, 16, 128], strides = [1, 1, 1]} : vector<16x16x128xf32> to vector<1x16x128xf32>
    %41 = vector.shape_cast %40 : vector<1x16x128xf32> to vector<16x128xf32>
    %c109 = arith.constant 109 : index
    %c0_25 = arith.constant 0 : index
    %42 = vector.load %arg7[%c109, %c0_25] : memref<324x128xf32, #tpu.memory_space<vmem>>, vector<16x128xf32>
    tpu.vector_store %arg7[%c109, %c0_25], %41 {strides = array<i32>} : memref<324x128xf32, #tpu.memory_space<vmem>>, vector<16x128xf32>,
    %cst_26 = arith.constant 0.000000e+00 : f32
    %43 = vector.broadcast %cst_26 : f32 to vector<2x128xf32>
    %c125 = arith.constant 125 : index
    %c0_27 = arith.constant 0 : index
    %44 = vector.load %arg7[%c125, %c0_27] : memref<324x128xf32, #tpu.memory_space<vmem>>, vector<2x128xf32>
    tpu.vector_store %arg7[%c125, %c0_27], %43 {strides = array<i32>} : memref<324x128xf32, #tpu.memory_space<vmem>>, vector<2x128xf32>,
    %45 = vector.extract_strided_slice %12 {offsets = [6, 0, 0], sizes = [1, 16, 128], strides = [1, 1, 1]} : vector<16x16x128xf32> to vector<1x16x128xf32>
    %46 = vector.shape_cast %45 : vector<1x16x128xf32> to vector<16x128xf32>
    %c127 = arith.constant 127 : index
    %c0_28 = arith.constant 0 : index
    %47 = vector.load %arg7[%c127, %c0_28] : memref<324x128xf32, #tpu.memory_space<vmem>>, vector<16x128xf32>
    tpu.vector_store %arg7[%c127, %c0_28], %46 {strides = array<i32>} : memref<324x128xf32, #tpu.memory_space<vmem>>, vector<16x128xf32>,
    %cst_29 = arith.constant 0.000000e+00 : f32
    %48 = vector.broadcast %cst_29 : f32 to vector<2x128xf32>
    %c143 = arith.constant 143 : index
    %c0_30 = arith.constant 0 : index
    %49 = vector.load %arg7[%c143, %c0_30] : memref<324x128xf32, #tpu.memory_space<vmem>>, vector<2x128xf32>
    tpu.vector_store %arg7[%c143, %c0_30], %48 {strides = array<i32>} : memref<324x128xf32, #tpu.memory_space<vmem>>, vector<2x128xf32>,
    %50 = vector.extract_strided_slice %12 {offsets = [7, 0, 0], sizes = [1, 16, 128], strides = [1, 1, 1]} : vector<16x16x128xf32> to vector<1x16x128xf32>
    %51 = vector.shape_cast %50 : vector<1x16x128xf32> to vector<16x128xf32>
    %c145 = arith.constant 145 : index
    %c0_31 = arith.constant 0 : index
    %52 = vector.load %arg7[%c145, %c0_31] : memref<324x128xf32, #tpu.memory_space<vmem>>, vector<16x128xf32>
    tpu.vector_store %arg7[%c145, %c0_31], %51 {strides = array<i32>} : memref<324x128xf32, #tpu.memory_space<vmem>>, vector<16x128xf32>,
    %cst_32 = arith.constant 0.000000e+00 : f32
    %53 = vector.broadcast %cst_32 : f32 to vector<2x128xf32>
    %c161 = arith.constant 161 : index
    %c0_33 = arith.constant 0 : index
    %54 = vector.load %arg7[%c161, %c0_33] : memref<324x128xf32, #tpu.memory_space<vmem>>, vector<2x128xf32>
    tpu.vector_store %arg7[%c161, %c0_33], %53 {strides = array<i32>} : memref<324x128xf32, #tpu.memory_space<vmem>>, vector<2x128xf32>,
    %55 = vector.extract_strided_slice %12 {offsets = [8, 0, 0], sizes = [1, 16, 128], strides = [1, 1, 1]} : vector<16x16x128xf32> to vector<1x16x128xf32>
    %56 = vector.shape_cast %55 : vector<1x16x128xf32> to vector<16x128xf32>
    %c163 = arith.constant 163 : index
    %c0_34 = arith.constant 0 : index
    %57 = vector.load %arg7[%c163, %c0_34] : memref<324x128xf32, #tpu.memory_space<vmem>>, vector<16x128xf32>
    tpu.vector_store %arg7[%c163, %c0_34], %56 {strides = array<i32>} : memref<324x128xf32, #tpu.memory_space<vmem>>, vector<16x128xf32>,
    %cst_35 = arith.constant 0.000000e+00 : f32
    %58 = vector.broadcast %cst_35 : f32 to vector<2x128xf32>
    %c179 = arith.constant 179 : index
    %c0_36 = arith.constant 0 : index
    %59 = vector.load %arg7[%c179, %c0_36] : memref<324x128xf32, #tpu.memory_space<vmem>>, vector<2x128xf32>
    tpu.vector_store %arg7[%c179, %c0_36], %58 {strides = array<i32>} : memref<324x128xf32, #tpu.memory_space<vmem>>, vector<2x128xf32>,
    %60 = vector.extract_strided_slice %12 {offsets = [9, 0, 0], sizes = [1, 16, 128], strides = [1, 1, 1]} : vector<16x16x128xf32> to vector<1x16x128xf32>
    %61 = vector.shape_cast %60 : vector<1x16x128xf32> to vector<16x128xf32>
    %c181 = arith.constant 181 : index
    %c0_37 = arith.constant 0 : index
    %62 = vector.load %arg7[%c181, %c0_37] : memref<324x128xf32, #tpu.memory_space<vmem>>, vector<16x128xf32>
    tpu.vector_store %arg7[%c181, %c0_37], %61 {strides = array<i32>} : memref<324x128xf32, #tpu.memory_space<vmem>>, vector<16x128xf32>,
    %cst_38 = arith.constant 0.000000e+00 : f32
    %63 = vector.broadcast %cst_38 : f32 to vector<2x128xf32>
    %c197 = arith.constant 197 : index
    %c0_39 = arith.constant 0 : index
    %64 = vector.load %arg7[%c197, %c0_39] : memref<324x128xf32, #tpu.memory_space<vmem>>, vector<2x128xf32>
    tpu.vector_store %arg7[%c197, %c0_39], %63 {strides = array<i32>} : memref<324x128xf32, #tpu.memory_space<vmem>>, vector<2x128xf32>,
    %65 = vector.extract_strided_slice %12 {offsets = [10, 0, 0], sizes = [1, 16, 128], strides = [1, 1, 1]} : vector<16x16x128xf32> to vector<1x16x128xf32>
    %66 = vector.shape_cast %65 : vector<1x16x128xf32> to vector<16x128xf32>
    %c199 = arith.constant 199 : index
    %c0_40 = arith.constant 0 : index
    %67 = vector.load %arg7[%c199, %c0_40] : memref<324x128xf32, #tpu.memory_space<vmem>>, vector<16x128xf32>
    tpu.vector_store %arg7[%c199, %c0_40], %66 {strides = array<i32>} : memref<324x128xf32, #tpu.memory_space<vmem>>, vector<16x128xf32>,
    %cst_41 = arith.constant 0.000000e+00 : f32
    %68 = vector.broadcast %cst_41 : f32 to vector<2x128xf32>
    %c215 = arith.constant 215 : index
    %c0_42 = arith.constant 0 : index
    %69 = vector.load %arg7[%c215, %c0_42] : memref<324x128xf32, #tpu.memory_space<vmem>>, vector<2x128xf32>
    tpu.vector_store %arg7[%c215, %c0_42], %68 {strides = array<i32>} : memref<324x128xf32, #tpu.memory_space<vmem>>, vector<2x128xf32>,
    %70 = vector.extract_strided_slice %12 {offsets = [11, 0, 0], sizes = [1, 16, 128], strides = [1, 1, 1]} : vector<16x16x128xf32> to vector<1x16x128xf32>
    %71 = vector.shape_cast %70 : vector<1x16x128xf32> to vector<16x128xf32>
    %c217 = arith.constant 217 : index
    %c0_43 = arith.constant 0 : index
    %72 = vector.load %arg7[%c217, %c0_43] : memref<324x128xf32, #tpu.memory_space<vmem>>, vector<16x128xf32>
    tpu.vector_store %arg7[%c217, %c0_43], %71 {strides = array<i32>} : memref<324x128xf32, #tpu.memory_space<vmem>>, vector<16x128xf32>,
    %cst_44 = arith.constant 0.000000e+00 : f32
    %73 = vector.broadcast %cst_44 : f32 to vector<2x128xf32>
    %c233 = arith.constant 233 : index
    %c0_45 = arith.constant 0 : index
    %74 = vector.load %arg7[%c233, %c0_45] : memref<324x128xf32, #tpu.memory_space<vmem>>, vector<2x128xf32>
    tpu.vector_store %arg7[%c233, %c0_45], %73 {strides = array<i32>} : memref<324x128xf32, #tpu.memory_space<vmem>>, vector<2x128xf32>,
    %75 = vector.extract_strided_slice %12 {offsets = [12, 0, 0], sizes = [1, 16, 128], strides = [1, 1, 1]} : vector<16x16x128xf32> to vector<1x16x128xf32>
    %76 = vector.shape_cast %75 : vector<1x16x128xf32> to vector<16x128xf32>
    %c235 = arith.constant 235 : index
    %c0_46 = arith.constant 0 : index
    %77 = vector.load %arg7[%c235, %c0_46] : memref<324x128xf32, #tpu.memory_space<vmem>>, vector<16x128xf32>
    tpu.vector_store %arg7[%c235, %c0_46], %76 {strides = array<i32>} : memref<324x128xf32, #tpu.memory_space<vmem>>, vector<16x128xf32>,
    %cst_47 = arith.constant 0.000000e+00 : f32
    %78 = vector.broadcast %cst_47 : f32 to vector<2x128xf32>
    %c251 = arith.constant 251 : index
    %c0_48 = arith.constant 0 : index
    %79 = vector.load %arg7[%c251, %c0_48] : memref<324x128xf32, #tpu.memory_space<vmem>>, vector<2x128xf32>
    tpu.vector_store %arg7[%c251, %c0_48], %78 {strides = array<i32>} : memref<324x128xf32, #tpu.memory_space<vmem>>, vector<2x128xf32>,
    %80 = vector.extract_strided_slice %12 {offsets = [13, 0, 0], sizes = [1, 16, 128], strides = [1, 1, 1]} : vector<16x16x128xf32> to vector<1x16x128xf32>
    %81 = vector.shape_cast %80 : vector<1x16x128xf32> to vector<16x128xf32>
    %c253 = arith.constant 253 : index
    %c0_49 = arith.constant 0 : index
    %82 = vector.load %arg7[%c253, %c0_49] : memref<324x128xf32, #tpu.memory_space<vmem>>, vector<16x128xf32>
    tpu.vector_store %arg7[%c253, %c0_49], %81 {strides = array<i32>} : memref<324x128xf32, #tpu.memory_space<vmem>>, vector<16x128xf32>,
    %cst_50 = arith.constant 0.000000e+00 : f32
    %83 = vector.broadcast %cst_50 : f32 to vector<2x128xf32>
    %c269 = arith.constant 269 : index
    %c0_51 = arith.constant 0 : index
    %84 = vector.load %arg7[%c269, %c0_51] : memref<324x128xf32, #tpu.memory_space<vmem>>, vector<2x128xf32>
    tpu.vector_store %arg7[%c269, %c0_51], %83 {strides = array<i32>} : memref<324x128xf32, #tpu.memory_space<vmem>>, vector<2x128xf32>,
    %85 = vector.extract_strided_slice %12 {offsets = [14, 0, 0], sizes = [1, 16, 128], strides = [1, 1, 1]} : vector<16x16x128xf32> to vector<1x16x128xf32>
    %86 = vector.shape_cast %85 : vector<1x16x128xf32> to vector<16x128xf32>
    %c271 = arith.constant 271 : index
    %c0_52 = arith.constant 0 : index
    %87 = vector.load %arg7[%c271, %c0_52] : memref<324x128xf32, #tpu.memory_space<vmem>>, vector<16x128xf32>
    tpu.vector_store %arg7[%c271, %c0_52], %86 {strides = array<i32>} : memref<324x128xf32, #tpu.memory_space<vmem>>, vector<16x128xf32>,
    %cst_53 = arith.constant 0.000000e+00 : f32
    %88 = vector.broadcast %cst_53 : f32 to vector<2x128xf32>
    %c287 = arith.constant 287 : index
    %c0_54 = arith.constant 0 : index
    %89 = vector.load %arg7[%c287, %c0_54] : memref<324x128xf32, #tpu.memory_space<vmem>>, vector<2x128xf32>
    tpu.vector_store %arg7[%c287, %c0_54], %88 {strides = array<i32>} : memref<324x128xf32, #tpu.memory_space<vmem>>, vector<2x128xf32>,
    %90 = vector.extract_strided_slice %12 {offsets = [15, 0, 0], sizes = [1, 16, 128], strides = [1, 1, 1]} : vector<16x16x128xf32> to vector<1x16x128xf32>
    %91 = vector.shape_cast %90 : vector<1x16x128xf32> to vector<16x128xf32>
    %c289 = arith.constant 289 : index
    %c0_55 = arith.constant 0 : index
    %92 = vector.load %arg7[%c289, %c0_55] : memref<324x128xf32, #tpu.memory_space<vmem>>, vector<16x128xf32>
    tpu.vector_store %arg7[%c289, %c0_55], %91 {strides = array<i32>} : memref<324x128xf32, #tpu.memory_space<vmem>>, vector<16x128xf32>,
    %cst_56 = arith.constant 0.000000e+00 : f32
    %93 = vector.broadcast %cst_56 : f32 to vector<19x128xf32>
    %c305 = arith.constant 305 : index
    %c0_57 = arith.constant 0 : index
    %94 = vector.load %arg7[%c305, %c0_57] : memref<324x128xf32, #tpu.memory_space<vmem>>, vector<19x128xf32>
    tpu.vector_store %arg7[%c305, %c0_57], %93 {strides = array<i32>} : memref<324x128xf32, #tpu.memory_space<vmem>>, vector<19x128xf32>,
    %cst_58 = arith.constant 0.000000e+00 : f32
    %95 = vector.broadcast %cst_58 : f32 to vector<134x128xf32>
    %c0_59 = arith.constant 0 : index
    %c0_60 = arith.constant 0 : index
    %96 = tpu.strided_load %arg7[%c0_59, %c0_60] {strides = array<i32: 2, 1>} : memref<324x128xf32, #tpu.memory_space<vmem>>, vector<134x128xf32>
    %97 = arith.truncf %96 : vector<134x128xf32> to vector<134x128xbf16>
    %c0_61 = arith.constant 0 : index
    %c0_62 = arith.constant 0 : index
    %c0_63 = arith.constant 0 : index
    %98 = vector.load %arg2[%c0_61, %c0_62, %c0_63] : memref<9x128x128xbf16, #tpu.memory_space<vmem>>, vector<1x128x128xbf16>
    %99 = vector.shape_cast %98 : vector<1x128x128xbf16> to vector<128x128xbf16>
    %cst_64 = arith.constant dense<0.000000e+00> : vector<134x128xf32>
    %100 = tpu.matmul %97, %99, %cst_64 {dimension_numbers = #tpu.dot_dimension_numbers<[1], [0], [0], [1], [0, 0, 1, 1], [], []>} : vector<134x128xbf16>, vector<128x128xbf16>, vector<134x128xf32> -> vector<134x128xf32>
    %101 = arith.addf %95, %100 : vector<134x128xf32>
    %c1 = arith.constant 1 : index
    %c0_65 = arith.constant 0 : index
    %102 = tpu.strided_load %arg7[%c1, %c0_65] {strides = array<i32: 2, 1>} : memref<324x128xf32, #tpu.memory_space<vmem>>, vector<134x128xf32>
    %103 = arith.truncf %102 : vector<134x128xf32> to vector<134x128xbf16>
    %c1_66 = arith.constant 1 : index
    %c0_67 = arith.constant 0 : index
    %c0_68 = arith.constant 0 : index
    %104 = vector.load %arg2[%c1_66, %c0_67, %c0_68] : memref<9x128x128xbf16, #tpu.memory_space<vmem>>, vector<1x128x128xbf16>
    %105 = vector.shape_cast %104 : vector<1x128x128xbf16> to vector<128x128xbf16>
    %cst_69 = arith.constant dense<0.000000e+00> : vector<134x128xf32>
    %106 = tpu.matmul %103, %105, %cst_69 {dimension_numbers = #tpu.dot_dimension_numbers<[1], [0], [0], [1], [0, 0, 1, 1], [], []>} : vector<134x128xbf16>, vector<128x128xbf16>, vector<134x128xf32> -> vector<134x128xf32>
    %107 = arith.addf %101, %106 : vector<134x128xf32>
    %c2 = arith.constant 2 : index
    %c0_70 = arith.constant 0 : index
    %108 = tpu.strided_load %arg7[%c2, %c0_70] {strides = array<i32: 2, 1>} : memref<324x128xf32, #tpu.memory_space<vmem>>, vector<134x128xf32>
    %109 = arith.truncf %108 : vector<134x128xf32> to vector<134x128xbf16>
    %c2_71 = arith.constant 2 : index
    %c0_72 = arith.constant 0 : index
    %c0_73 = arith.constant 0 : index
    %110 = vector.load %arg2[%c2_71, %c0_72, %c0_73] : memref<9x128x128xbf16, #tpu.memory_space<vmem>>, vector<1x128x128xbf16>
    %111 = vector.shape_cast %110 : vector<1x128x128xbf16> to vector<128x128xbf16>
    %cst_74 = arith.constant dense<0.000000e+00> : vector<134x128xf32>
    %112 = tpu.matmul %109, %111, %cst_74 {dimension_numbers = #tpu.dot_dimension_numbers<[1], [0], [0], [1], [0, 0, 1, 1], [], []>} : vector<134x128xbf16>, vector<128x128xbf16>, vector<134x128xf32> -> vector<134x128xf32>
    %113 = arith.addf %107, %112 : vector<134x128xf32>
    %c18 = arith.constant 18 : index
    %c0_75 = arith.constant 0 : index
    %114 = tpu.strided_load %arg7[%c18, %c0_75] {strides = array<i32: 2, 1>} : memref<324x128xf32, #tpu.memory_space<vmem>>, vector<134x128xf32>
    %115 = arith.truncf %114 : vector<134x128xf32> to vector<134x128xbf16>
    %c3 = arith.constant 3 : index
    %c0_76 = arith.constant 0 : index
    %c0_77 = arith.constant 0 : index
    %116 = vector.load %arg2[%c3, %c0_76, %c0_77] : memref<9x128x128xbf16, #tpu.memory_space<vmem>>, vector<1x128x128xbf16>
    %117 = vector.shape_cast %116 : vector<1x128x128xbf16> to vector<128x128xbf16>
    %cst_78 = arith.constant dense<0.000000e+00> : vector<134x128xf32>
    %118 = tpu.matmul %115, %117, %cst_78 {dimension_numbers = #tpu.dot_dimension_numbers<[1], [0], [0], [1], [0, 0, 1, 1], [], []>} : vector<134x128xbf16>, vector<128x128xbf16>, vector<134x128xf32> -> vector<134x128xf32>
    %119 = arith.addf %113, %118 : vector<134x128xf32>
    %c19_79 = arith.constant 19 : index
    %c0_80 = arith.constant 0 : index
    %120 = tpu.strided_load %arg7[%c19_79, %c0_80] {strides = array<i32: 2, 1>} : memref<324x128xf32, #tpu.memory_space<vmem>>, vector<134x128xf32>
    %121 = arith.truncf %120 : vector<134x128xf32> to vector<134x128xbf16>
    %c4 = arith.constant 4 : index
    %c0_81 = arith.constant 0 : index
    %c0_82 = arith.constant 0 : index
    %122 = vector.load %arg2[%c4, %c0_81, %c0_82] : memref<9x128x128xbf16, #tpu.memory_space<vmem>>, vector<1x128x128xbf16>
    %123 = vector.shape_cast %122 : vector<1x128x128xbf16> to vector<128x128xbf16>
    %cst_83 = arith.constant dense<0.000000e+00> : vector<134x128xf32>
    %124 = tpu.matmul %121, %123, %cst_83 {dimension_numbers = #tpu.dot_dimension_numbers<[1], [0], [0], [1], [0, 0, 1, 1], [], []>} : vector<134x128xbf16>, vector<128x128xbf16>, vector<134x128xf32> -> vector<134x128xf32>
    %125 = arith.addf %119, %124 : vector<134x128xf32>
    %c20 = arith.constant 20 : index
    %c0_84 = arith.constant 0 : index
    %126 = tpu.strided_load %arg7[%c20, %c0_84] {strides = array<i32: 2, 1>} : memref<324x128xf32, #tpu.memory_space<vmem>>, vector<134x128xf32>
    %127 = arith.truncf %126 : vector<134x128xf32> to vector<134x128xbf16>
    %c5 = arith.constant 5 : index
    %c0_85 = arith.constant 0 : index
    %c0_86 = arith.constant 0 : index
    %128 = vector.load %arg2[%c5, %c0_85, %c0_86] : memref<9x128x128xbf16, #tpu.memory_space<vmem>>, vector<1x128x128xbf16>
    %129 = vector.shape_cast %128 : vector<1x128x128xbf16> to vector<128x128xbf16>
    %cst_87 = arith.constant dense<0.000000e+00> : vector<134x128xf32>
    %130 = tpu.matmul %127, %129, %cst_87 {dimension_numbers = #tpu.dot_dimension_numbers<[1], [0], [0], [1], [0, 0, 1, 1], [], []>} : vector<134x128xbf16>, vector<128x128xbf16>, vector<134x128xf32> -> vector<134x128xf32>
    %131 = arith.addf %125, %130 : vector<134x128xf32>
    %c36 = arith.constant 36 : index
    %c0_88 = arith.constant 0 : index
    %132 = tpu.strided_load %arg7[%c36, %c0_88] {strides = array<i32: 2, 1>} : memref<324x128xf32, #tpu.memory_space<vmem>>, vector<134x128xf32>
    %133 = arith.truncf %132 : vector<134x128xf32> to vector<134x128xbf16>
    %c6 = arith.constant 6 : index
    %c0_89 = arith.constant 0 : index
    %c0_90 = arith.constant 0 : index
    %134 = vector.load %arg2[%c6, %c0_89, %c0_90] : memref<9x128x128xbf16, #tpu.memory_space<vmem>>, vector<1x128x128xbf16>
    %135 = vector.shape_cast %134 : vector<1x128x128xbf16> to vector<128x128xbf16>
    %cst_91 = arith.constant dense<0.000000e+00> : vector<134x128xf32>
    %136 = tpu.matmul %133, %135, %cst_91 {dimension_numbers = #tpu.dot_dimension_numbers<[1], [0], [0], [1], [0, 0, 1, 1], [], []>} : vector<134x128xbf16>, vector<128x128xbf16>, vector<134x128xf32> -> vector<134x128xf32>
    %137 = arith.addf %131, %136 : vector<134x128xf32>
    %c37_92 = arith.constant 37 : index
    %c0_93 = arith.constant 0 : index
    %138 = tpu.strided_load %arg7[%c37_92, %c0_93] {strides = array<i32: 2, 1>} : memref<324x128xf32, #tpu.memory_space<vmem>>, vector<134x128xf32>
    %139 = arith.truncf %138 : vector<134x128xf32> to vector<134x128xbf16>
    %c7 = arith.constant 7 : index
    %c0_94 = arith.constant 0 : index
    %c0_95 = arith.constant 0 : index
    %140 = vector.load %arg2[%c7, %c0_94, %c0_95] : memref<9x128x128xbf16, #tpu.memory_space<vmem>>, vector<1x128x128xbf16>
    %141 = vector.shape_cast %140 : vector<1x128x128xbf16> to vector<128x128xbf16>
    %cst_96 = arith.constant dense<0.000000e+00> : vector<134x128xf32>
    %142 = tpu.matmul %139, %141, %cst_96 {dimension_numbers = #tpu.dot_dimension_numbers<[1], [0], [0], [1], [0, 0, 1, 1], [], []>} : vector<134x128xbf16>, vector<128x128xbf16>, vector<134x128xf32> -> vector<134x128xf32>
    %143 = arith.addf %137, %142 : vector<134x128xf32>
    %c38 = arith.constant 38 : index
    %c0_97 = arith.constant 0 : index
    %144 = tpu.strided_load %arg7[%c38, %c0_97] {strides = array<i32: 2, 1>} : memref<324x128xf32, #tpu.memory_space<vmem>>, vector<134x128xf32>
    %145 = arith.truncf %144 : vector<134x128xf32> to vector<134x128xbf16>
    %c8 = arith.constant 8 : index
    %c0_98 = arith.constant 0 : index
    %c0_99 = arith.constant 0 : index
    %146 = vector.load %arg2[%c8, %c0_98, %c0_99] : memref<9x128x128xbf16, #tpu.memory_space<vmem>>, vector<1x128x128xbf16>
    %147 = vector.shape_cast %146 : vector<1x128x128xbf16> to vector<128x128xbf16>
    %cst_100 = arith.constant dense<0.000000e+00> : vector<134x128xf32>
    %148 = tpu.matmul %145, %147, %cst_100 {dimension_numbers = #tpu.dot_dimension_numbers<[1], [0], [0], [1], [0, 0, 1, 1], [], []>} : vector<134x128xbf16>, vector<128x128xbf16>, vector<134x128xf32> -> vector<134x128xf32>
    %149 = arith.addf %143, %148 : vector<134x128xf32>
    %150 = vector.extract_strided_slice %149 {offsets = [0, 0], sizes = [8, 128], strides = [1, 1]} : vector<134x128xf32> to vector<8x128xf32>
    %151 = arith.truncf %150 : vector<8x128xf32> to vector<8x128xbf16>
    %c0_101 = arith.constant 0 : index
    %c0_102 = arith.constant 0 : index
    %c0_103 = arith.constant 0 : index
    %c0_104 = arith.constant 0 : index
    %152 = vector.load %arg5[%c0_101, %c0_102, %c0_103, %c0_104] : memref<1x8x8x128xbf16, #tpu.memory_space<vmem>>, vector<1x1x8x128xbf16>
    %153 = vector.shape_cast %152 : vector<1x1x8x128xbf16> to vector<8x128xbf16>
    %154 = vector.shape_cast %151 : vector<8x128xbf16> to vector<1x1x8x128xbf16>
    tpu.vector_store %arg5[%c0_101, %c0_102, %c0_103, %c0_104], %154 {strides = array<i32>} : memref<1x8x8x128xbf16, #tpu.memory_space<vmem>>, vector<1x1x8x128xbf16>,
    %155 = vector.extract_strided_slice %149 {offsets = [18, 0], sizes = [8, 128], strides = [1, 1]} : vector<134x128xf32> to vector<8x128xf32>
    %156 = arith.truncf %155 : vector<8x128xf32> to vector<8x128xbf16>
    %c0_105 = arith.constant 0 : index
    %c1_106 = arith.constant 1 : index
    %c0_107 = arith.constant 0 : index
    %c0_108 = arith.constant 0 : index
    %157 = vector.load %arg5[%c0_105, %c1_106, %c0_107, %c0_108] : memref<1x8x8x128xbf16, #tpu.memory_space<vmem>>, vector<1x1x8x128xbf16>
    %158 = vector.shape_cast %157 : vector<1x1x8x128xbf16> to vector<8x128xbf16>
    %159 = vector.shape_cast %156 : vector<8x128xbf16> to vector<1x1x8x128xbf16>
    tpu.vector_store %arg5[%c0_105, %c1_106, %c0_107, %c0_108], %159 {strides = array<i32>} : memref<1x8x8x128xbf16, #tpu.memory_space<vmem>>, vector<1x1x8x128xbf16>,
    %160 = vector.extract_strided_slice %149 {offsets = [36, 0], sizes = [8, 128], strides = [1, 1]} : vector<134x128xf32> to vector<8x128xf32>
    %161 = arith.truncf %160 : vector<8x128xf32> to vector<8x128xbf16>
    %c0_109 = arith.constant 0 : index
    %c2_110 = arith.constant 2 : index
    %c0_111 = arith.constant 0 : index
    %c0_112 = arith.constant 0 : index
    %162 = vector.load %arg5[%c0_109, %c2_110, %c0_111, %c0_112] : memref<1x8x8x128xbf16, #tpu.memory_space<vmem>>, vector<1x1x8x128xbf16>
    %163 = vector.shape_cast %162 : vector<1x1x8x128xbf16> to vector<8x128xbf16>
    %164 = vector.shape_cast %161 : vector<8x128xbf16> to vector<1x1x8x128xbf16>
    tpu.vector_store %arg5[%c0_109, %c2_110, %c0_111, %c0_112], %164 {strides = array<i32>} : memref<1x8x8x128xbf16, #tpu.memory_space<vmem>>, vector<1x1x8x128xbf16>,
    %165 = vector.extract_strided_slice %149 {offsets = [54, 0], sizes = [8, 128], strides = [1, 1]} : vector<134x128xf32> to vector<8x128xf32>
    %166 = arith.truncf %165 : vector<8x128xf32> to vector<8x128xbf16>
    %c0_113 = arith.constant 0 : index
    %c3_114 = arith.constant 3 : index
    %c0_115 = arith.constant 0 : index
    %c0_116 = arith.constant 0 : index
    %167 = vector.load %arg5[%c0_113, %c3_114, %c0_115, %c0_116] : memref<1x8x8x128xbf16, #tpu.memory_space<vmem>>, vector<1x1x8x128xbf16>
    %168 = vector.shape_cast %167 : vector<1x1x8x128xbf16> to vector<8x128xbf16>
    %169 = vector.shape_cast %166 : vector<8x128xbf16> to vector<1x1x8x128xbf16>
    tpu.vector_store %arg5[%c0_113, %c3_114, %c0_115, %c0_116], %169 {strides = array<i32>} : memref<1x8x8x128xbf16, #tpu.memory_space<vmem>>, vector<1x1x8x128xbf16>,
    %170 = vector.extract_strided_slice %149 {offsets = [72, 0], sizes = [8, 128], strides = [1, 1]} : vector<134x128xf32> to vector<8x128xf32>
    %171 = arith.truncf %170 : vector<8x128xf32> to vector<8x128xbf16>
    %c0_117 = arith.constant 0 : index
    %c4_118 = arith.constant 4 : index
    %c0_119 = arith.constant 0 : index
    %c0_120 = arith.constant 0 : index
    %172 = vector.load %arg5[%c0_117, %c4_118, %c0_119, %c0_120] : memref<1x8x8x128xbf16, #tpu.memory_space<vmem>>, vector<1x1x8x128xbf16>
    %173 = vector.shape_cast %172 : vector<1x1x8x128xbf16> to vector<8x128xbf16>
    %174 = vector.shape_cast %171 : vector<8x128xbf16> to vector<1x1x8x128xbf16>
    tpu.vector_store %arg5[%c0_117, %c4_118, %c0_119, %c0_120], %174 {strides = array<i32>} : memref<1x8x8x128xbf16, #tpu.memory_space<vmem>>, vector<1x1x8x128xbf16>,
    %175 = vector.extract_strided_slice %149 {offsets = [90, 0], sizes = [8, 128], strides = [1, 1]} : vector<134x128xf32> to vector<8x128xf32>
    %176 = arith.truncf %175 : vector<8x128xf32> to vector<8x128xbf16>
    %c0_121 = arith.constant 0 : index
    %c5_122 = arith.constant 5 : index
    %c0_123 = arith.constant 0 : index
    %c0_124 = arith.constant 0 : index
    %177 = vector.load %arg5[%c0_121, %c5_122, %c0_123, %c0_124] : memref<1x8x8x128xbf16, #tpu.memory_space<vmem>>, vector<1x1x8x128xbf16>
    %178 = vector.shape_cast %177 : vector<1x1x8x128xbf16> to vector<8x128xbf16>
    %179 = vector.shape_cast %176 : vector<8x128xbf16> to vector<1x1x8x128xbf16>
    tpu.vector_store %arg5[%c0_121, %c5_122, %c0_123, %c0_124], %179 {strides = array<i32>} : memref<1x8x8x128xbf16, #tpu.memory_space<vmem>>, vector<1x1x8x128xbf16>,
    %180 = vector.extract_strided_slice %149 {offsets = [108, 0], sizes = [8, 128], strides = [1, 1]} : vector<134x128xf32> to vector<8x128xf32>
    %181 = arith.truncf %180 : vector<8x128xf32> to vector<8x128xbf16>
    %c0_125 = arith.constant 0 : index
    %c6_126 = arith.constant 6 : index
    %c0_127 = arith.constant 0 : index
    %c0_128 = arith.constant 0 : index
    %182 = vector.load %arg5[%c0_125, %c6_126, %c0_127, %c0_128] : memref<1x8x8x128xbf16, #tpu.memory_space<vmem>>, vector<1x1x8x128xbf16>
    %183 = vector.shape_cast %182 : vector<1x1x8x128xbf16> to vector<8x128xbf16>
    %184 = vector.shape_cast %181 : vector<8x128xbf16> to vector<1x1x8x128xbf16>
    tpu.vector_store %arg5[%c0_125, %c6_126, %c0_127, %c0_128], %184 {strides = array<i32>} : memref<1x8x8x128xbf16, #tpu.memory_space<vmem>>, vector<1x1x8x128xbf16>,
    %185 = vector.extract_strided_slice %149 {offsets = [126, 0], sizes = [8, 128], strides = [1, 1]} : vector<134x128xf32> to vector<8x128xf32>
    %186 = arith.truncf %185 : vector<8x128xf32> to vector<8x128xbf16>
    %c0_129 = arith.constant 0 : index
    %c7_130 = arith.constant 7 : index
    %c0_131 = arith.constant 0 : index
    %c0_132 = arith.constant 0 : index
    %187 = vector.load %arg5[%c0_129, %c7_130, %c0_131, %c0_132] : memref<1x8x8x128xbf16, #tpu.memory_space<vmem>>, vector<1x1x8x128xbf16>
    %188 = vector.shape_cast %187 : vector<1x1x8x128xbf16> to vector<8x128xbf16>
    %189 = vector.shape_cast %186 : vector<8x128xbf16> to vector<1x1x8x128xbf16>
    tpu.vector_store %arg5[%c0_129, %c7_130, %c0_131, %c0_132], %189 {strides = array<i32>} : memref<1x8x8x128xbf16, #tpu.memory_space<vmem>>, vector<1x1x8x128xbf16>,
    %c0_133 = arith.constant 0 : index
    %c0_134 = arith.constant 0 : index
    %c0_135 = arith.constant 0 : index
    %c0_136 = arith.constant 0 : index
    %190 = vector.load %arg5[%c0_133, %c0_134, %c0_135, %c0_136] : memref<1x8x8x128xbf16, #tpu.memory_space<vmem>>, vector<1x8x8x128xbf16>
    %191 = vector.shape_cast %190 : vector<1x8x8x128xbf16> to vector<8x8x128xbf16>
    %192 = arith.extf %191 : vector<8x8x128xbf16> to vector<8x8x128xf32>
    %193 = arith.mulf %192, %192 : vector<8x8x128xf32>
    %cst_137 = arith.constant dense<0.000000e+00> : vector<8x128xf32>
    %194 = vector.multi_reduction <add>, %192, %cst_137 [0] : vector<8x8x128xf32> to vector<8x128xf32>
    %cst_138 = arith.constant dense<0.000000e+00> : vector<8x128xf32>
    %195 = vector.multi_reduction <add>, %193, %cst_138 [0] : vector<8x8x128xf32> to vector<8x128xf32>
    %cst_139 = arith.constant dense<0.000000e+00> : vector<128xf32>
    %196 = vector.multi_reduction <add>, %194, %cst_139 [0] : vector<8x128xf32> to vector<128xf32>
    %197 = vector.shape_cast %196 : vector<128xf32> to vector<1x128xf32>
    %cst_140 = arith.constant dense<0.000000e+00> : vector<128xf32>
    %198 = vector.multi_reduction <add>, %195, %cst_140 [0] : vector<8x128xf32> to vector<128xf32>
    %199 = vector.shape_cast %198 : vector<128xf32> to vector<1x128xf32>
    %200 = tpu.iota {dimensions = array<i32: 0>} : vector<8x128xi32>
    %c0_i32 = arith.constant 0 : i32
    %201 = vector.broadcast %c0_i32 : i32 to vector<8x128xi32>
    %202 = arith.cmpi eq, %200, %201 : vector<8x128xi32>
    %c1_i32 = arith.constant 1 : i32
    %203 = vector.broadcast %c1_i32 : i32 to vector<8x128xi32>
    %204 = arith.cmpi eq, %200, %203 : vector<8x128xi32>
    %cst_141 = arith.constant 0.000000e+00 : f32
    %205 = vector.shape_cast %199 : vector<1x128xf32> to vector<1x128xf32>
    %206 = vector.broadcast %205 : vector<1x128xf32> to vector<8x128xf32>
    %207 = vector.broadcast %cst_141 : f32 to vector<8x128xf32>
    %208 = arith.select %204, %206, %207 : vector<8x128xi1>, vector<8x128xf32>
    %209 = vector.shape_cast %197 : vector<1x128xf32> to vector<1x128xf32>
    %210 = vector.broadcast %209 : vector<1x128xf32> to vector<8x128xf32>
    %211 = arith.select %202, %210, %208 : vector<8x128xi1>, vector<8x128xf32>
    %c0_142 = arith.constant 0 : index
    %c0_143 = arith.constant 0 : index
    %c0_144 = arith.constant 0 : index
    %212 = vector.load %arg6[%c0_142, %c0_143, %c0_144] : memref<1x8x128xf32, #tpu.memory_space<vmem>>, vector<1x8x128xf32>
    %213 = vector.shape_cast %212 : vector<1x8x128xf32> to vector<8x128xf32>
    %214 = vector.shape_cast %211 : vector<8x128xf32> to vector<1x8x128xf32>
    tpu.vector_store %arg6[%c0_142, %c0_143, %c0_144], %214 {strides = array<i32>} : memref<1x8x128xf32, #tpu.memory_space<vmem>>, vector<1x8x128xf32>,
    return
  }
  func.func @transform_0(%arg0: i32) -> (i32, i32, i32, i32) {
    %c0_i32 = arith.constant 0 : i32
    %c0_i32_0 = arith.constant 0 : i32
    %c0_i32_1 = arith.constant 0 : i32
    %c0_i32_2 = arith.constant 0 : i32
    return %arg0, %c0_i32, %c0_i32_0, %c0_i32_1 : i32, i32, i32, i32
  }
  func.func @transform_1(%arg0: i32) -> (i32, i32, i32) {
    %c0_i32 = arith.constant 0 : i32
    %c0_i32_0 = arith.constant 0 : i32
    %c0_i32_1 = arith.constant 0 : i32
    %c0_i32_2 = arith.constant 0 : i32
    return %c0_i32, %c0_i32_0, %c0_i32_1 : i32, i32, i32
  }
  func.func @transform_2(%arg0: i32) -> (i32, i32) {
    %c0_i32 = arith.constant 0 : i32
    %c0_i32_0 = arith.constant 0 : i32
    %c0_i32_1 = arith.constant 0 : i32
    return %c0_i32, %c0_i32_0 : i32, i32
  }
  func.func @transform_3(%arg0: i32) -> (i32, i32) {
    %c0_i32 = arith.constant 0 : i32
    %c0_i32_0 = arith.constant 0 : i32
    %c0_i32_1 = arith.constant 0 : i32
    return %c0_i32, %c0_i32_0 : i32, i32
  }
  func.func @transform_4(%arg0: i32) -> (i32, i32, i32, i32) {
    %c0_i32 = arith.constant 0 : i32
    %c0_i32_0 = arith.constant 0 : i32
    %c0_i32_1 = arith.constant 0 : i32
    %c0_i32_2 = arith.constant 0 : i32
    return %arg0, %c0_i32, %c0_i32_0, %c0_i32_1 : i32, i32, i32, i32
  }
  func.func @transform_5(%arg0: i32) -> (i32, i32, i32) {
    %c0_i32 = arith.constant 0 : i32
    %c0_i32_0 = arith.constant 0 : i32
    %c0_i32_1 = arith.constant 0 : i32
    return %arg0, %c0_i32, %c0_i32_0 : i32, i32, i32
  }
}

module attributes {stable_mosaic.version = 11 : i64} {
  func.func @matmul_stats_kernel(%arg0: i32, %arg1: memref<128x128xbf16, #tpu.memory_space<vmem>>, %arg2: memref<128x128xbf16, #tpu.memory_space<vmem>>, %arg3: memref<128x128xbf16, #tpu.memory_space<vmem>>, %arg4: memref<1x8x128xf32, #tpu.memory_space<vmem>>) attributes {dimension_semantics = [#tpu.dimension_semantics<parallel>], iteration_bounds = array<i64: 1>, scalar_prefetch = 0 : i64, scratch_operands = 0 : i64, tpu.core_type = #tpu.core_type<tc>, window_params = [{transform_indices = @transform_0, window_bounds = array<i64: 128, 128>}, {pipeline_mode = #tpu.pipeline_mode<synchronous>, transform_indices = @transform_1, window_bounds = array<i64: 128, 128>}, {transform_indices = @transform_2, window_bounds = array<i64: 128, 128>}, {transform_indices = @transform_3, window_bounds = array<i64: 1, 8, 128>}]} {
    %c0 = arith.constant 0 : index
    %c0_0 = arith.constant 0 : index
    %0 = vector.load %arg1[%c0, %c0_0] : memref<128x128xbf16, #tpu.memory_space<vmem>>, vector<128x128xbf16>
    %c0_1 = arith.constant 0 : index
    %c0_2 = arith.constant 0 : index
    %1 = vector.load %arg2[%c0_1, %c0_2] : memref<128x128xbf16, #tpu.memory_space<vmem>>, vector<128x128xbf16>
    %cst = arith.constant dense<0.000000e+00> : vector<128x128xf32>
    %2 = tpu.matmul %0, %1, %cst {dimension_numbers = #tpu.dot_dimension_numbers<[1], [0], [0], [1], [0, 0, 1, 1], [], []>} : vector<128x128xbf16>, vector<128x128xbf16>, vector<128x128xf32> -> vector<128x128xf32>
    %3 = arith.truncf %2 : vector<128x128xf32> to vector<128x128xbf16>
    %c0_3 = arith.constant 0 : index
    %c0_4 = arith.constant 0 : index
    %4 = vector.load %arg3[%c0_3, %c0_4] : memref<128x128xbf16, #tpu.memory_space<vmem>>, vector<128x128xbf16>
    tpu.vector_store %arg3[%c0_3, %c0_4], %3 {strides = array<i32>} : memref<128x128xbf16, #tpu.memory_space<vmem>>, vector<128x128xbf16>,
    %5 = arith.extf %3 : vector<128x128xbf16> to vector<128x128xf32>
    %6 = arith.mulf %5, %5 : vector<128x128xf32>
    %cst_5 = arith.constant dense<0.000000e+00> : vector<128xf32>
    %7 = vector.multi_reduction <add>, %5, %cst_5 [0] : vector<128x128xf32> to vector<128xf32>
    %8 = vector.shape_cast %7 : vector<128xf32> to vector<1x128xf32>
    %cst_6 = arith.constant dense<0.000000e+00> : vector<128xf32>
    %9 = vector.multi_reduction <add>, %6, %cst_6 [0] : vector<128x128xf32> to vector<128xf32>
    %10 = vector.shape_cast %9 : vector<128xf32> to vector<1x128xf32>
    %11 = tpu.iota {dimensions = array<i32: 0>} : vector<8x128xi32>
    %c0_i32 = arith.constant 0 : i32
    %12 = vector.broadcast %c0_i32 : i32 to vector<8x128xi32>
    %13 = arith.cmpi eq, %11, %12 : vector<8x128xi32>
    %c1_i32 = arith.constant 1 : i32
    %14 = vector.broadcast %c1_i32 : i32 to vector<8x128xi32>
    %15 = arith.cmpi eq, %11, %14 : vector<8x128xi32>
    %cst_7 = arith.constant 0.000000e+00 : f32
    %16 = vector.shape_cast %10 : vector<1x128xf32> to vector<1x128xf32>
    %17 = vector.broadcast %16 : vector<1x128xf32> to vector<8x128xf32>
    %18 = vector.broadcast %cst_7 : f32 to vector<8x128xf32>
    %19 = arith.select %15, %17, %18 : vector<8x128xi1>, vector<8x128xf32>
    %20 = vector.shape_cast %8 : vector<1x128xf32> to vector<1x128xf32>
    %21 = vector.broadcast %20 : vector<1x128xf32> to vector<8x128xf32>
    %22 = arith.select %13, %21, %19 : vector<8x128xi1>, vector<8x128xf32>
    %c0_8 = arith.constant 0 : index
    %c0_9 = arith.constant 0 : index
    %c0_10 = arith.constant 0 : index
    %23 = vector.load %arg4[%c0_8, %c0_9, %c0_10] : memref<1x8x128xf32, #tpu.memory_space<vmem>>, vector<1x8x128xf32>
    %24 = vector.shape_cast %23 : vector<1x8x128xf32> to vector<8x128xf32>
    %25 = vector.shape_cast %22 : vector<8x128xf32> to vector<1x8x128xf32>
    tpu.vector_store %arg4[%c0_8, %c0_9, %c0_10], %25 {strides = array<i32>} : memref<1x8x128xf32, #tpu.memory_space<vmem>>, vector<1x8x128xf32>,
    return
  }
  func.func @transform_0(%arg0: i32) -> (i32, i32) {
    %c0_i32 = arith.constant 0 : i32
    %c0_i32_0 = arith.constant 0 : i32
    return %arg0, %c0_i32 : i32, i32
  }
  func.func @transform_1(%arg0: i32) -> (i32, i32) {
    %c0_i32 = arith.constant 0 : i32
    %c0_i32_0 = arith.constant 0 : i32
    %c0_i32_1 = arith.constant 0 : i32
    return %c0_i32, %c0_i32_0 : i32, i32
  }
  func.func @transform_2(%arg0: i32) -> (i32, i32) {
    %c0_i32 = arith.constant 0 : i32
    %c0_i32_0 = arith.constant 0 : i32
    return %arg0, %c0_i32 : i32, i32
  }
  func.func @transform_3(%arg0: i32) -> (i32, i32, i32) {
    %c0_i32 = arith.constant 0 : i32
    %c0_i32_0 = arith.constant 0 : i32
    %c0_i32_1 = arith.constant 0 : i32
    return %arg0, %c0_i32, %c0_i32_0 : i32, i32, i32
  }
}

module attributes {stable_mosaic.version = 11 : i64} {
  func.func @bn_add_relu_kernel(%arg0: i32, %arg1: memref<128x128xbf16, #tpu.memory_space<vmem>>, %arg2: memref<128x128xbf16, #tpu.memory_space<vmem>>, %arg3: memref<1x128xf32, #tpu.memory_space<vmem>>, %arg4: memref<1x128xf32, #tpu.memory_space<vmem>>, %arg5: memref<1x128xf32, #tpu.memory_space<vmem>>, %arg6: memref<1x128xf32, #tpu.memory_space<vmem>>, %arg7: memref<128x128xbf16, #tpu.memory_space<vmem>>) attributes {dimension_semantics = [#tpu.dimension_semantics<parallel>], iteration_bounds = array<i64: 1>, scalar_prefetch = 0 : i64, scratch_operands = 0 : i64, tpu.core_type = #tpu.core_type<tc>, window_params = [{transform_indices = @transform_0, window_bounds = array<i64: 128, 128>}, {transform_indices = @transform_1, window_bounds = array<i64: 128, 128>}, {pipeline_mode = #tpu.pipeline_mode<synchronous>, transform_indices = @transform_2, window_bounds = array<i64: 1, 128>}, {pipeline_mode = #tpu.pipeline_mode<synchronous>, transform_indices = @transform_3, window_bounds = array<i64: 1, 128>}, {pipeline_mode = #tpu.pipeline_mode<synchronous>, transform_indices = @transform_4, window_bounds = array<i64: 1, 128>}, {pipeline_mode = #tpu.pipeline_mode<synchronous>, transform_indices = @transform_5, window_bounds = array<i64: 1, 128>}, {transform_indices = @transform_6, window_bounds = array<i64: 128, 128>}]} {
    %c0 = arith.constant 0 : index
    %c0_0 = arith.constant 0 : index
    %0 = vector.load %arg1[%c0, %c0_0] : memref<128x128xbf16, #tpu.memory_space<vmem>>, vector<128x128xbf16>
    %1 = arith.extf %0 : vector<128x128xbf16> to vector<128x128xf32>
    %c0_1 = arith.constant 0 : index
    %c0_2 = arith.constant 0 : index
    %2 = vector.load %arg3[%c0_1, %c0_2] : memref<1x128xf32, #tpu.memory_space<vmem>>, vector<1x128xf32>
    %3 = vector.broadcast %2 : vector<1x128xf32> to vector<128x128xf32>
    %4 = arith.mulf %1, %3 : vector<128x128xf32>
    %c0_3 = arith.constant 0 : index
    %c0_4 = arith.constant 0 : index
    %5 = vector.load %arg4[%c0_3, %c0_4] : memref<1x128xf32, #tpu.memory_space<vmem>>, vector<1x128xf32>
    %6 = vector.broadcast %5 : vector<1x128xf32> to vector<128x128xf32>
    %7 = arith.addf %4, %6 : vector<128x128xf32>
    %c0_5 = arith.constant 0 : index
    %c0_6 = arith.constant 0 : index
    %8 = vector.load %arg2[%c0_5, %c0_6] : memref<128x128xbf16, #tpu.memory_space<vmem>>, vector<128x128xbf16>
    %9 = arith.extf %8 : vector<128x128xbf16> to vector<128x128xf32>
    %c0_7 = arith.constant 0 : index
    %c0_8 = arith.constant 0 : index
    %10 = vector.load %arg5[%c0_7, %c0_8] : memref<1x128xf32, #tpu.memory_space<vmem>>, vector<1x128xf32>
    %11 = vector.broadcast %10 : vector<1x128xf32> to vector<128x128xf32>
    %12 = arith.mulf %9, %11 : vector<128x128xf32>
    %c0_9 = arith.constant 0 : index
    %c0_10 = arith.constant 0 : index
    %13 = vector.load %arg6[%c0_9, %c0_10] : memref<1x128xf32, #tpu.memory_space<vmem>>, vector<1x128xf32>
    %14 = vector.broadcast %13 : vector<1x128xf32> to vector<128x128xf32>
    %15 = arith.addf %12, %14 : vector<128x128xf32>
    %16 = arith.addf %7, %15 : vector<128x128xf32>
    %cst = arith.constant 0.000000e+00 : f32
    %17 = vector.broadcast %cst : f32 to vector<128x128xf32>
    %18 = arith.maximumf %16, %17 : vector<128x128xf32>
    %19 = arith.truncf %18 : vector<128x128xf32> to vector<128x128xbf16>
    %c0_11 = arith.constant 0 : index
    %c0_12 = arith.constant 0 : index
    %20 = vector.load %arg7[%c0_11, %c0_12] : memref<128x128xbf16, #tpu.memory_space<vmem>>, vector<128x128xbf16>
    tpu.vector_store %arg7[%c0_11, %c0_12], %19 {strides = array<i32>} : memref<128x128xbf16, #tpu.memory_space<vmem>>, vector<128x128xbf16>,
    return
  }
  func.func @transform_0(%arg0: i32) -> (i32, i32) {
    %c0_i32 = arith.constant 0 : i32
    %c0_i32_0 = arith.constant 0 : i32
    return %arg0, %c0_i32 : i32, i32
  }
  func.func @transform_1(%arg0: i32) -> (i32, i32) {
    %c0_i32 = arith.constant 0 : i32
    %c0_i32_0 = arith.constant 0 : i32
    return %arg0, %c0_i32 : i32, i32
  }
  func.func @transform_2(%arg0: i32) -> (i32, i32) {
    %c0_i32 = arith.constant 0 : i32
    %c0_i32_0 = arith.constant 0 : i32
    %c0_i32_1 = arith.constant 0 : i32
    return %c0_i32, %c0_i32_0 : i32, i32
  }
  func.func @transform_3(%arg0: i32) -> (i32, i32) {
    %c0_i32 = arith.constant 0 : i32
    %c0_i32_0 = arith.constant 0 : i32
    %c0_i32_1 = arith.constant 0 : i32
    return %c0_i32, %c0_i32_0 : i32, i32
  }
  func.func @transform_4(%arg0: i32) -> (i32, i32) {
    %c0_i32 = arith.constant 0 : i32
    %c0_i32_0 = arith.constant 0 : i32
    %c0_i32_1 = arith.constant 0 : i32
    return %c0_i32, %c0_i32_0 : i32, i32
  }
  func.func @transform_5(%arg0: i32) -> (i32, i32) {
    %c0_i32 = arith.constant 0 : i32
    %c0_i32_0 = arith.constant 0 : i32
    %c0_i32_1 = arith.constant 0 : i32
    return %c0_i32, %c0_i32_0 : i32, i32
  }
  func.func @transform_6(%arg0: i32) -> (i32, i32) {
    %c0_i32 = arith.constant 0 : i32
    %c0_i32_0 = arith.constant 0 : i32
    return %arg0, %c0_i32 : i32, i32
  }
}

</mosaic_0001>

<llo_original>
// kernel: bottleneck_forward.8
$region0: #{bottleneck_forward.8}
  #allocation0 [shape = 'u32[]', space=smem, size = 0x4, offset = 0x4, fixed_abs, tag = 'smem constant byte address 0x4 - core index']
  #allocation1 [shape = 'u32[72,128]{1,0:T(1,128)}', space=vmem, size = 0x9000, scoped, tag = 'internal scratch']
  %s0 = inlined_call_operand.vmem [shape: bf16[128,128], index: 0, kind: input, shape index: {}]
  %s1 = inlined_call_operand.vmem [shape: bf16[128,128], index: 1, kind: input, shape index: {}]
  %s2 = inlined_call_operand.vmem [shape: bf16[128,128], index: 2, kind: output, shape index: {0}]
  %s3 = inlined_call_operand.vmem [shape: f32[1,8,128], index: 3, kind: output, shape index: {1}]
  %4 = xla_tuple %s2, %s3
  %s5 = sld [smem:[#allocation0]]
  $region26: #{bottleneck_forward.8} parent=0
    _
  %s7 = ssub.s32 1, %s5
  %s8 = scalar_select 0, %s7, %s5
  // Predicated region
  $region2: #{bottleneck_forward.8} parent=0 // pred_check
    _
  $region3: #{bottleneck_forward.8} parent=0 // pred_check_branch
    %10 = sbr.rel (0) target = $region5
  $region4: #{bottleneck_forward.8} parent=0 // pred_region
    _
  $region5: #{bottleneck_forward.8} parent=0 // pred_fallthru
    _
  // Predicated region
  $region6: #{bottleneck_forward.8} parent=0 // pred_check
    _
  $region7: #{bottleneck_forward.8} parent=0 // pred_check_branch
    %12 = sbr.rel (0) target = $region9
  $region8: #{bottleneck_forward.8} parent=0 // pred_region
    _
  $region9: #{bottleneck_forward.8} parent=0 // pred_fallthru
    _
  %v13 = vld [vmem:[%s0] sm:$0xf]
  %v14 = vld [vmem:[%s0 + $0x4] sm:$0xf]
  %v15 = vld [vmem:[%s0 + $0x8] sm:$0xf]
  %v16 = vld [vmem:[%s0 + $0xc] sm:$0xf]
  %v17 = vld [vmem:[%s0 + $0x10] sm:$0xf]
  %v18 = vld [vmem:[%s0 + $0x14] sm:$0xf]
  %v19 = vld [vmem:[%s0 + $0x18] sm:$0xf]
  %v20 = vld [vmem:[%s0 + $0x1c] sm:$0xf]
  %v21 = vld [vmem:[%s0 + $0x20] sm:$0xf]
  %v22 = vld [vmem:[%s0 + $0x24] sm:$0xf]
  %v23 = vld [vmem:[%s0 + $0x28] sm:$0xf]
  %v24 = vld [vmem:[%s0 + $0x2c] sm:$0xf]
  %v25 = vld [vmem:[%s0 + $0x30] sm:$0xf]
  %v26 = vld [vmem:[%s0 + $0x34] sm:$0xf]
  %v27 = vld [vmem:[%s0 + $0x38] sm:$0xf]
  %v28 = vld [vmem:[%s0 + $0x3c] sm:$0xf]
  %v29 = vld [vmem:[%s1] sm:$0xf]
  %v30 = vld [vmem:[%s1 + $0x4] sm:$0xf]
  %v31 = vld [vmem:[%s1 + $0x8] sm:$0xf]
  %v32 = vld [vmem:[%s1 + $0xc] sm:$0xf]
  %v33 = vld [vmem:[%s1 + $0x10] sm:$0xf]
  %v34 = vld [vmem:[%s1 + $0x14] sm:$0xf]
  %v35 = vld [vmem:[%s1 + $0x18] sm:$0xf]
  %v36 = vld [vmem:[%s1 + $0x1c] sm:$0xf]
  %v37 = vld [vmem:[%s1 + $0x20] sm:$0xf]
  %v38 = vld [vmem:[%s1 + $0x24] sm:$0xf]
  %v39 = vld [vmem:[%s1 + $0x28] sm:$0xf]
  %v40 = vld [vmem:[%s1 + $0x2c] sm:$0xf]
  %v41 = vld [vmem:[%s1 + $0x30] sm:$0xf]
  %v42 = vld [vmem:[%s1 + $0x34] sm:$0xf]
  %v43 = vld [vmem:[%s1 + $0x38] sm:$0xf]
  %v44 = vld [vmem:[%s1 + $0x3c] sm:$0xf]
  %v61 = vunpack.c.l.b16 %v13
  %v62 = vunpack.c.l.b16 %v14
  %v63 = vunpack.c.l.b16 %v15
  %v64 = vunpack.c.l.b16 %v16
  %v65 = vunpack.c.l.b16 %v17
  %v66 = vunpack.c.l.b16 %v18
  %v67 = vunpack.c.l.b16 %v19
  %v68 = vunpack.c.l.b16 %v20
  %v69 = vunpack.c.l.b16 %v21
  %v70 = vunpack.c.l.b16 %v22
  %v71 = vunpack.c.l.b16 %v23
  %v72 = vunpack.c.l.b16 %v24
  %v73 = vunpack.c.l.b16 %v25
  %v74 = vunpack.c.l.b16 %v26
  %v75 = vunpack.c.l.b16 %v27
  %v76 = vunpack.c.l.b16 %v28
  %v77 = vpack.c.b16 %v62, %v61
  %v78 = vpack.c.b16 %v64, %v63
  %v79 = vpack.c.b16 %v66, %v65
  %v80 = vpack.c.b16 %v68, %v67
  %v81 = vpack.c.b16 %v70, %v69
  %v82 = vpack.c.b16 %v72, %v71
  %v83 = vpack.c.b16 %v74, %v73
  %v84 = vpack.c.b16 %v76, %v75
  %v109 = vunpack.c.l.b16 %v29
  %v110 = vunpack.c.l.b16 %v30
  %v111 = vunpack.c.l.b16 %v31
  %v112 = vunpack.c.l.b16 %v32
  %v113 = vunpack.c.l.b16 %v33
  %v114 = vunpack.c.l.b16 %v34
  %v115 = vunpack.c.l.b16 %v35
  %v116 = vunpack.c.l.b16 %v36
  %v117 = vunpack.c.l.b16 %v37
  %v118 = vunpack.c.l.b16 %v38
  %v119 = vunpack.c.l.b16 %v39
  %v120 = vunpack.c.l.b16 %v40
  %v121 = vunpack.c.l.b16 %v41
  %v122 = vunpack.c.l.b16 %v42
  %v123 = vunpack.c.l.b16 %v43
  %v124 = vunpack.c.l.b16 %v44
  %v125 = vpack.c.b16 %v110, %v109
  %v126 = vpack.c.b16 %v112, %v111
  %v127 = vpack.c.b16 %v114, %v113
  %v128 = vpack.c.b16 %v116, %v115
  %v129 = vpack.c.b16 %v118, %v117
  %v130 = vpack.c.b16 %v120, %v119
  %v131 = vpack.c.b16 %v122, %v121
  %v132 = vpack.c.b16 %v124, %v123
  %141 = vmatpush.bf16.msra.mxu0 %v132
  %142 = vmatpush.bf16.msra.mxu0 %v131
  %143 = vmatpush.bf16.msra.mxu0 %v130
  %144 = vmatpush.bf16.msra.mxu0 %v129
  %145 = vmatpush.bf16.msra.mxu0 %v128
  %146 = vmatpush.bf16.msra.mxu0 %v127
  %147 = vmatpush.bf16.msra.mxu0 %v126
  %148 = vmatpush.bf16.msra.mxu0 %v125
  %149 = vmatmul.bf16.gmra.mxu0 %v77
  %v150 = vpop.f32.mrf.mxu0
  %v151 = vadd.f32 0.0, %v150
  %v152 = vpop.f32.mrf.mxu0
  %v153 = vadd.f32 0.0, %v152
  %154 = vmatmul.bf16.gmra.mxu0 %v78
  %v155 = vpop.f32.mrf.mxu0
  %v156 = vadd.f32 0.0, %v155
  %v157 = vpop.f32.mrf.mxu0
  %v158 = vadd.f32 0.0, %v157
  %159 = vmatmul.bf16.gmra.mxu0 %v79
  %v160 = vpop.f32.mrf.mxu0
  %v161 = vadd.f32 0.0, %v160
  %v162 = vpop.f32.mrf.mxu0
  %v163 = vadd.f32 0.0, %v162
  %164 = vmatmul.bf16.gmra.mxu0 %v80
  %v165 = vpop.f32.mrf.mxu0
  %v166 = vadd.f32 0.0, %v165
  %v167 = vpop.f32.mrf.mxu0
  %v168 = vadd.f32 0.0, %v167
  %169 = vmatmul.bf16.gmra.mxu0 %v81
  %v170 = vpop.f32.mrf.mxu0
  %v171 = vadd.f32 0.0, %v170
  %v172 = vpop.f32.mrf.mxu0
  %v173 = vadd.f32 0.0, %v172
  %174 = vmatmul.bf16.gmra.mxu0 %v82
  %v175 = vpop.f32.mrf.mxu0
  %v176 = vadd.f32 0.0, %v175
  %v177 = vpop.f32.mrf.mxu0
  %v178 = vadd.f32 0.0, %v177
  %179 = vmatmul.bf16.gmra.mxu0 %v83
  %v180 = vpop.f32.mrf.mxu0
  %v181 = vadd.f32 0.0, %v180
  %v182 = vpop.f32.mrf.mxu0
  %v183 = vadd.f32 0.0, %v182
  %184 = vmatmul.bf16.gmra.mxu0 %v84
  %v185 = vpop.f32.mrf.mxu0
  %v186 = vadd.f32 0.0, %v185
  %v187 = vpop.f32.mrf.mxu0
  %v188 = vadd.f32 0.0, %v187
  %189 = vdwg.mxu0
  %v190 = vpack.c.bf16 %v151, %v151
  %v191 = vpack.c.bf16 %v153, %v153
  %v192 = vpack.c.bf16 %v156, %v156
  %v193 = vpack.c.bf16 %v158, %v158
  %v194 = vpack.c.bf16 %v161, %v161
  %v195 = vpack.c.bf16 %v163, %v163
  %v196 = vpack.c.bf16 %v166, %v166
  %v197 = vpack.c.bf16 %v168, %v168
  %v198 = vpack.c.bf16 %v171, %v171
  %v199 = vpack.c.bf16 %v173, %v173
  %v200 = vpack.c.bf16 %v176, %v176
  %v201 = vpack.c.bf16 %v178, %v178
  %v202 = vpack.c.bf16 %v181, %v181
  %v203 = vpack.c.bf16 %v183, %v183
  %v204 = vpack.c.bf16 %v186, %v186
  %v205 = vpack.c.bf16 %v188, %v188
  %206 = vst [vmem:[%s2] sm:$0xf] %v190
  %207 = vst [vmem:[%s2 + $0x4] sm:$0xf] %v191
  %208 = vst [vmem:[%s2 + $0x8] sm:$0xf] %v192
  %209 = vst [vmem:[%s2 + $0xc] sm:$0xf] %v193
  %210 = vst [vmem:[%s2 + $0x10] sm:$0xf] %v194
  %211 = vst [vmem:[%s2 + $0x14] sm:$0xf] %v195
  %212 = vst [vmem:[%s2 + $0x18] sm:$0xf] %v196
  %213 = vst [vmem:[%s2 + $0x1c] sm:$0xf] %v197
  %214 = vst [vmem:[%s2 + $0x20] sm:$0xf] %v198
  %215 = vst [vmem:[%s2 + $0x24] sm:$0xf] %v199
  %216 = vst [vmem:[%s2 + $0x28] sm:$0xf] %v200
  %217 = vst [vmem:[%s2 + $0x2c] sm:$0xf] %v201
  %218 = vst [vmem:[%s2 + $0x30] sm:$0xf] %v202
  %219 = vst [vmem:[%s2 + $0x34] sm:$0xf] %v203
  %220 = vst [vmem:[%s2 + $0x38] sm:$0xf] %v204
  %221 = vst [vmem:[%s2 + $0x3c] sm:$0xf] %v205
  %v222 = vunpack.c.l.bf16 %v190
  %v223 = vunpack.c.l.bf16 %v191
  %v224 = vunpack.c.l.bf16 %v192
  %v225 = vunpack.c.l.bf16 %v193
  %v226 = vunpack.c.l.bf16 %v194
  %v227 = vunpack.c.l.bf16 %v195
  %v228 = vunpack.c.l.bf16 %v196
  %v229 = vunpack.c.l.bf16 %v197
  %v230 = vunpack.c.l.bf16 %v198
  %v231 = vunpack.c.l.bf16 %v199
  %v232 = vunpack.c.l.bf16 %v200
  %v233 = vunpack.c.l.bf16 %v201
  %v234 = vunpack.c.l.bf16 %v202
  %v235 = vunpack.c.l.bf16 %v203
  %v236 = vunpack.c.l.bf16 %v204
  %v237 = vunpack.c.l.bf16 %v205
  %v238 = vmul.f32 %v222, %v222
  %v239 = vmul.f32 %v223, %v223
  %v240 = vmul.f32 %v224, %v224
  %v241 = vmul.f32 %v225, %v225
  %v242 = vmul.f32 %v226, %v226
  %v243 = vmul.f32 %v227, %v227
  %v244 = vmul.f32 %v228, %v228
  %v245 = vmul.f32 %v229, %v229
  %v246 = vmul.f32 %v230, %v230
  %v247 = vmul.f32 %v231, %v231
  %v248 = vmul.f32 %v232, %v232
  %v249 = vmul.f32 %v233, %v233
  %v250 = vmul.f32 %v234, %v234
  %v251 = vmul.f32 %v235, %v235
  %v252 = vmul.f32 %v236, %v236
  %v253 = vmul.f32 %v237, %v237
  %v254 = vadd.f32 %v222, %v223
  %v255 = vadd.f32 %v254, %v224
  %v256 = vadd.f32 %v255, %v225
  %v257 = vadd.f32 %v256, %v226
  %v258 = vadd.f32 %v257, %v227
  %v259 = vadd.f32 %v258, %v228
  %v260 = vadd.f32 %v259, %v229
  %v261 = vadd.f32 %v260, %v230
  %v262 = vadd.f32 %v261, %v231
  %v263 = vadd.f32 %v262, %v232
  %v264 = vadd.f32 %v263, %v233
  %v265 = vadd.f32 %v264, %v234
  %v266 = vadd.f32 %v265, %v235
  %v267 = vadd.f32 %v266, %v236
  %v268 = vadd.f32 %v267, %v237
  %v269 = vrot.slane %v268, 4
  %v270 = vadd.f32 %v268, %v269
  %v271 = vrot.slane %v270, 2
  %v272 = vadd.f32 %v270, %v271
  %v273 = vrot.slane %v272, 1
  %v274 = vadd.f32 %v272, %v273
  %v275 = vadd.f32 %v238, %v239
  %v276 = vadd.f32 %v275, %v240
  %v277 = vadd.f32 %v276, %v241
  %v278 = vadd.f32 %v277, %v242
  %v279 = vadd.f32 %v278, %v243
  %v280 = vadd.f32 %v279, %v244
  %v281 = vadd.f32 %v280, %v245
  %v282 = vadd.f32 %v281, %v246
  %v283 = vadd.f32 %v282, %v247
  %v284 = vadd.f32 %v283, %v248
  %v285 = vadd.f32 %v284, %v249
  %v286 = vadd.f32 %v285, %v250
  %v287 = vadd.f32 %v286, %v251
  %v288 = vadd.f32 %v287, %v252
  %v289 = vadd.f32 %v288, %v253
  %v290 = vrot.slane %v289, 4
  %v291 = vadd.f32 %v289, %v290
  %v292 = vrot.slane %v291, 2
  %v293 = vadd.f32 %v291, %v292
  %v294 = vrot.slane %v293, 1
  %v295 = vadd.f32 %v293, %v294
  %v296 = vlaneseq
  %v297 = vshrl.u32 %v296, 7
  %vm298 = vcmp.eq.s32.totalorder %v297, 0
  %vm299 = vcmp.eq.s32.totalorder %v297, 1
  %v300 = vsel %vm299, %v295, 0.0
  %v301 = vsel %vm298, %v274, %v300
  %302 = vst [vmem:[%s3] sm:$0xff] %v301
  // Predicated region
  $region10: #{bottleneck_forward.8} parent=0 // pred_check
    _
  $region11: #{bottleneck_forward.8} parent=0 // pred_check_branch
    %304 = sbr.rel (0) target = $region13
  $region12: #{bottleneck_forward.8} parent=0 // pred_region
    _
  $region13: #{bottleneck_forward.8} parent=0 // pred_fallthru
    _
  // Predicated region
  $region14: #{bottleneck_forward.8} parent=0 // pred_check
    _
  $region15: #{bottleneck_forward.8} parent=0 // pred_check_branch
    %306 = sbr.rel (0) target = $region17
  $region16: #{bottleneck_forward.8} parent=0 // pred_region
    _
  $region17: #{bottleneck_forward.8} parent=0 // pred_fallthru
    _
  // Predicated region
  $region18: #{bottleneck_forward.8} parent=0 // pred_check
    _
  $region19: #{bottleneck_forward.8} parent=0 // pred_check_branch
    %308 = sbr.rel (0) target = $region21
  $region20: #{bottleneck_forward.8} parent=0 // pred_region
    _
  $region21: #{bottleneck_forward.8} parent=0 // pred_fallthru
    _
  // Predicated region
  $region22: #{bottleneck_forward.8} parent=0 // pred_check
    _
  $region23: #{bottleneck_forward.8} parent=0 // pred_check_branch
    %310 = sbr.rel (0) target = $region25
  $region24: #{bottleneck_forward.8} parent=0 // pred_region
    _
  $region25: #{bottleneck_forward.8} parent=0 // pred_fallthru
    _

// kernel: bottleneck_forward.7
$region0: #{bottleneck_forward.7}
  #allocation0 [shape = 'u32[]', space=smem, size = 0x4, offset = 0x4, fixed_abs, tag = 'smem constant byte address 0x4 - core index']
  #allocation1 [shape = 'u32[72,128]{1,0:T(1,128)}', space=vmem, size = 0x9000, scoped, tag = 'internal scratch']
  %s0 = inlined_call_operand.vmem [shape: bf16[128,128], index: 0, kind: input, shape index: {}]
  %s1 = inlined_call_operand.vmem [shape: bf16[128,128], index: 1, kind: input, shape index: {}]
  %s2 = inlined_call_operand.vmem [shape: f32[1,128], index: 2, kind: input, shape index: {}]
  %s3 = inlined_call_operand.vmem [shape: f32[1,128], index: 3, kind: input, shape index: {}]
  %s4 = inlined_call_operand.vmem [shape: bf16[128,128], index: 4, kind: output, shape index: {0}]
  %s5 = inlined_call_operand.vmem [shape: f32[1,8,128], index: 5, kind: output, shape index: {1}]
  %6 = xla_tuple %s4, %s5
  %s7 = sld [smem:[#allocation0]]
  $region34: #{bottleneck_forward.7} parent=0
    _
  %s9 = ssub.s32 1, %s7
  %s10 = scalar_select 0, %s9, %s7
  // Predicated region
  $region2: #{bottleneck_forward.7} parent=0 // pred_check
    _
  $region3: #{bottleneck_forward.7} parent=0 // pred_check_branch
    %12 = sbr.rel (0) target = $region5
  $region4: #{bottleneck_forward.7} parent=0 // pred_region
    _
  $region5: #{bottleneck_forward.7} parent=0 // pred_fallthru
    _
  // Predicated region
  $region6: #{bottleneck_forward.7} parent=0 // pred_check
    _
  $region7: #{bottleneck_forward.7} parent=0 // pred_check_branch
    %14 = sbr.rel (0) target = $region9
  $region8: #{bottleneck_forward.7} parent=0 // pred_region
    _
  $region9: #{bottleneck_forward.7} parent=0 // pred_fallthru
    _
  // Predicated region
  $region10: #{bottleneck_forward.7} parent=0 // pred_check
    _
  $region11: #{bottleneck_forward.7} parent=0 // pred_check_branch
    %16 = sbr.rel (0) target = $region13
  $region12: #{bottleneck_forward.7} parent=0 // pred_region
    _
  $region13: #{bottleneck_forward.7} parent=0 // pred_fallthru
    _
  // Predicated region
  $region14: #{bottleneck_forward.7} parent=0 // pred_check
    _
  $region15: #{bottleneck_forward.7} parent=0 // pred_check_branch
    %18 = sbr.rel (0) target = $region17
  $region16: #{bottleneck_forward.7} parent=0 // pred_region
    _
  $region17: #{bottleneck_forward.7} parent=0 // pred_fallthru
    _
  %v19 = vld [vmem:[%s0] sm:$0xf]
  %v20 = vld [vmem:[%s0 + $0x4] sm:$0xf]
  %v21 = vld [vmem:[%s0 + $0x8] sm:$0xf]
  %v22 = vld [vmem:[%s0 + $0xc] sm:$0xf]
  %v23 = vld [vmem:[%s0 + $0x10] sm:$0xf]
  %v24 = vld [vmem:[%s0 + $0x14] sm:$0xf]
  %v25 = vld [vmem:[%s0 + $0x18] sm:$0xf]
  %v26 = vld [vmem:[%s0 + $0x1c] sm:$0xf]
  %v27 = vld [vmem:[%s0 + $0x20] sm:$0xf]
  %v28 = vld [vmem:[%s0 + $0x24] sm:$0xf]
  %v29 = vld [vmem:[%s0 + $0x28] sm:$0xf]
  %v30 = vld [vmem:[%s0 + $0x2c] sm:$0xf]
  %v31 = vld [vmem:[%s0 + $0x30] sm:$0xf]
  %v32 = vld [vmem:[%s0 + $0x34] sm:$0xf]
  %v33 = vld [vmem:[%s0 + $0x38] sm:$0xf]
  %v34 = vld [vmem:[%s0 + $0x3c] sm:$0xf]
  %v35 = vunpack.c.l.bf16 %v19
  %v36 = vunpack.c.l.bf16 %v20
  %v37 = vunpack.c.l.bf16 %v21
  %v38 = vunpack.c.l.bf16 %v22
  %v39 = vunpack.c.l.bf16 %v23
  %v40 = vunpack.c.l.bf16 %v24
  %v41 = vunpack.c.l.bf16 %v25
  %v42 = vunpack.c.l.bf16 %v26
  %v43 = vunpack.c.l.bf16 %v27
  %v44 = vunpack.c.l.bf16 %v28
  %v45 = vunpack.c.l.bf16 %v29
  %v46 = vunpack.c.l.bf16 %v30
  %v47 = vunpack.c.l.bf16 %v31
  %v48 = vunpack.c.l.bf16 %v32
  %v49 = vunpack.c.l.bf16 %v33
  %v50 = vunpack.c.l.bf16 %v34
  %v51 = vld [vmem:[%s2] sm:$0x1]
  %v53 = vperm.slane %v51, 0
  %v55 = vmul.f32 %v35, %v53
  %v56 = vmul.f32 %v36, %v53
  %v57 = vmul.f32 %v37, %v53
  %v58 = vmul.f32 %v38, %v53
  %v59 = vmul.f32 %v39, %v53
  %v60 = vmul.f32 %v40, %v53
  %v61 = vmul.f32 %v41, %v53
  %v62 = vmul.f32 %v42, %v53
  %v63 = vmul.f32 %v43, %v53
  %v64 = vmul.f32 %v44, %v53
  %v65 = vmul.f32 %v45, %v53
  %v66 = vmul.f32 %v46, %v53
  %v67 = vmul.f32 %v47, %v53
  %v68 = vmul.f32 %v48, %v53
  %v69 = vmul.f32 %v49, %v53
  %v70 = vmul.f32 %v50, %v53
  %v71 = vld [vmem:[%s3] sm:$0x1]
  %v73 = vperm.slane %v71, 0
  %v75 = vadd.f32 %v55, %v73
  %v76 = vadd.f32 %v56, %v73
  %v77 = vadd.f32 %v57, %v73
  %v78 = vadd.f32 %v58, %v73
  %v79 = vadd.f32 %v59, %v73
  %v80 = vadd.f32 %v60, %v73
  %v81 = vadd.f32 %v61, %v73
  %v82 = vadd.f32 %v62, %v73
  %v83 = vadd.f32 %v63, %v73
  %v84 = vadd.f32 %v64, %v73
  %v85 = vadd.f32 %v65, %v73
  %v86 = vadd.f32 %v66, %v73
  %v87 = vadd.f32 %v67, %v73
  %v88 = vadd.f32 %v68, %v73
  %v89 = vadd.f32 %v69, %v73
  %v90 = vadd.f32 %v70, %v73
  %v91 = vmax.f32 %v75, 0.0
  %v92 = vmax.f32 %v76, 0.0
  %v93 = vmax.f32 %v77, 0.0
  %v94 = vmax.f32 %v78, 0.0
  %v95 = vmax.f32 %v79, 0.0
  %v96 = vmax.f32 %v80, 0.0
  %v97 = vmax.f32 %v81, 0.0
  %v98 = vmax.f32 %v82, 0.0
  %v99 = vmax.f32 %v83, 0.0
  %v100 = vmax.f32 %v84, 0.0
  %v101 = vmax.f32 %v85, 0.0
  %v102 = vmax.f32 %v86, 0.0
  %v103 = vmax.f32 %v87, 0.0
  %v104 = vmax.f32 %v88, 0.0
  %v105 = vmax.f32 %v89, 0.0
  %v106 = vmax.f32 %v90, 0.0
  %v107 = vpack.c.bf16 %v92, %v91
  %v108 = vpack.c.bf16 %v94, %v93
  %v109 = vpack.c.bf16 %v96, %v95
  %v110 = vpack.c.bf16 %v98, %v97
  %v111 = vpack.c.bf16 %v100, %v99
  %v112 = vpack.c.bf16 %v102, %v101
  %v113 = vpack.c.bf16 %v104, %v103
  %v114 = vpack.c.bf16 %v106, %v105
  %v115 = vld [vmem:[%s1] sm:$0xf]
  %v116 = vld [vmem:[%s1 + $0x4] sm:$0xf]
  %v117 = vld [vmem:[%s1 + $0x8] sm:$0xf]
  %v118 = vld [vmem:[%s1 + $0xc] sm:$0xf]
  %v119 = vld [vmem:[%s1 + $0x10] sm:$0xf]
  %v120 = vld [vmem:[%s1 + $0x14] sm:$0xf]
  %v121 = vld [vmem:[%s1 + $0x18] sm:$0xf]
  %v122 = vld [vmem:[%s1 + $0x1c] sm:$0xf]
  %v123 = vld [vmem:[%s1 + $0x20] sm:$0xf]
  %v124 = vld [vmem:[%s1 + $0x24] sm:$0xf]
  %v125 = vld [vmem:[%s1 + $0x28] sm:$0xf]
  %v126 = vld [vmem:[%s1 + $0x2c] sm:$0xf]
  %v127 = vld [vmem:[%s1 + $0x30] sm:$0xf]
  %v128 = vld [vmem:[%s1 + $0x34] sm:$0xf]
  %v129 = vld [vmem:[%s1 + $0x38] sm:$0xf]
  %v130 = vld [vmem:[%s1 + $0x3c] sm:$0xf]
  %v147 = vunpack.c.l.b16 %v115
  %v148 = vunpack.c.l.b16 %v116
  %v149 = vunpack.c.l.b16 %v117
  %v150 = vunpack.c.l.b16 %v118
  %v151 = vunpack.c.l.b16 %v119
  %v152 = vunpack.c.l.b16 %v120
  %v153 = vunpack.c.l.b16 %v121
  %v154 = vunpack.c.l.b16 %v122
  %v155 = vunpack.c.l.b16 %v123
  %v156 = vunpack.c.l.b16 %v124
  %v157 = vunpack.c.l.b16 %v125
  %v158 = vunpack.c.l.b16 %v126
  %v159 = vunpack.c.l.b16 %v127
  %v160 = vunpack.c.l.b16 %v128
  %v161 = vunpack.c.l.b16 %v129
  %v162 = vunpack.c.l.b16 %v130
  %v163 = vpack.c.b16 %v148, %v147
  %v164 = vpack.c.b16 %v150, %v149
  %v165 = vpack.c.b16 %v152, %v151
  %v166 = vpack.c.b16 %v154, %v153
  %v167 = vpack.c.b16 %v156, %v155
  %v168 = vpack.c.b16 %v158, %v157
  %v169 = vpack.c.b16 %v160, %v159
  %v170 = vpack.c.b16 %v162, %v161
  %179 = vmatpush.bf16.msra.mxu0 %v170
  %180 = vmatpush.bf16.msra.mxu0 %v169
  %181 = vmatpush.bf16.msra.mxu0 %v168
  %182 = vmatpush.bf16.msra.mxu0 %v167
  %183 = vmatpush.bf16.msra.mxu0 %v166
  %184 = vmatpush.bf16.msra.mxu0 %v165
  %185 = vmatpush.bf16.msra.mxu0 %v164
  %186 = vmatpush.bf16.msra.mxu0 %v163
  %187 = vmatmul.bf16.gmra.mxu0 %v107
  %v188 = vpop.f32.mrf.mxu0
  %v189 = vadd.f32 0.0, %v188
  %v190 = vpop.f32.mrf.mxu0
  %v191 = vadd.f32 0.0, %v190
  %192 = vmatmul.bf16.gmra.mxu0 %v108
  %v193 = vpop.f32.mrf.mxu0
  %v194 = vadd.f32 0.0, %v193
  %v195 = vpop.f32.mrf.mxu0
  %v196 = vadd.f32 0.0, %v195
  %197 = vmatmul.bf16.gmra.mxu0 %v109
  %v198 = vpop.f32.mrf.mxu0
  %v199 = vadd.f32 0.0, %v198
  %v200 = vpop.f32.mrf.mxu0
  %v201 = vadd.f32 0.0, %v200
  %202 = vmatmul.bf16.gmra.mxu0 %v110
  %v203 = vpop.f32.mrf.mxu0
  %v204 = vadd.f32 0.0, %v203
  %v205 = vpop.f32.mrf.mxu0
  %v206 = vadd.f32 0.0, %v205
  %207 = vmatmul.bf16.gmra.mxu0 %v111
  %v208 = vpop.f32.mrf.mxu0
  %v209 = vadd.f32 0.0, %v208
  %v210 = vpop.f32.mrf.mxu0
  %v211 = vadd.f32 0.0, %v210
  %212 = vmatmul.bf16.gmra.mxu0 %v112
  %v213 = vpop.f32.mrf.mxu0
  %v214 = vadd.f32 0.0, %v213
  %v215 = vpop.f32.mrf.mxu0
  %v216 = vadd.f32 0.0, %v215
  %217 = vmatmul.bf16.gmra.mxu0 %v113
  %v218 = vpop.f32.mrf.mxu0
  %v219 = vadd.f32 0.0, %v218
  %v220 = vpop.f32.mrf.mxu0
  %v221 = vadd.f32 0.0, %v220
  %222 = vmatmul.bf16.gmra.mxu0 %v114
  %v223 = vpop.f32.mrf.mxu0
  %v224 = vadd.f32 0.0, %v223
  %v225 = vpop.f32.mrf.mxu0
  %v226 = vadd.f32 0.0, %v225
  %227 = vdwg.mxu0
  %v228 = vpack.c.bf16 %v189, %v189
  %v229 = vpack.c.bf16 %v191, %v191
  %v230 = vpack.c.bf16 %v194, %v194
  %v231 = vpack.c.bf16 %v196, %v196
  %v232 = vpack.c.bf16 %v199, %v199
  %v233 = vpack.c.bf16 %v201, %v201
  %v234 = vpack.c.bf16 %v204, %v204
  %v235 = vpack.c.bf16 %v206, %v206
  %v236 = vpack.c.bf16 %v209, %v209
  %v237 = vpack.c.bf16 %v211, %v211
  %v238 = vpack.c.bf16 %v214, %v214
  %v239 = vpack.c.bf16 %v216, %v216
  %v240 = vpack.c.bf16 %v219, %v219
  %v241 = vpack.c.bf16 %v221, %v221
  %v242 = vpack.c.bf16 %v224, %v224
  %v243 = vpack.c.bf16 %v226, %v226
  %244 = vst [vmem:[%s4] sm:$0xf] %v228
  %245 = vst [vmem:[%s4 + $0x4] sm:$0xf] %v229
  %246 = vst [vmem:[%s4 + $0x8] sm:$0xf] %v230
  %247 = vst [vmem:[%s4 + $0xc] sm:$0xf] %v231
  %248 = vst [vmem:[%s4 + $0x10] sm:$0xf] %v232
  %249 = vst [vmem:[%s4 + $0x14] sm:$0xf] %v233
  %250 = vst [vmem:[%s4 + $0x18] sm:$0xf] %v234
  %251 = vst [vmem:[%s4 + $0x1c] sm:$0xf] %v235
  %252 = vst [vmem:[%s4 + $0x20] sm:$0xf] %v236
  %253 = vst [vmem:[%s4 + $0x24] sm:$0xf] %v237
  %254 = vst [vmem:[%s4 + $0x28] sm:$0xf] %v238
  %255 = vst [vmem:[%s4 + $0x2c] sm:$0xf] %v239
  %256 = vst [vmem:[%s4 + $0x30] sm:$0xf] %v240
  %257 = vst [vmem:[%s4 + $0x34] sm:$0xf] %v241
  %258 = vst [vmem:[%s4 + $0x38] sm:$0xf] %v242
  %259 = vst [vmem:[%s4 + $0x3c] sm:$0xf] %v243
  %v260 = vunpack.c.l.bf16 %v228
  %v261 = vunpack.c.l.bf16 %v229
  %v262 = vunpack.c.l.bf16 %v230
  %v263 = vunpack.c.l.bf16 %v231
  %v264 = vunpack.c.l.bf16 %v232
  %v265 = vunpack.c.l.bf16 %v233
  %v266 = vunpack.c.l.bf16 %v234
  %v267 = vunpack.c.l.bf16 %v235
  %v268 = vunpack.c.l.bf16 %v236
  %v269 = vunpack.c.l.bf16 %v237
  %v270 = vunpack.c.l.bf16 %v238
  %v271 = vunpack.c.l.bf16 %v239
  %v272 = vunpack.c.l.bf16 %v240
  %v273 = vunpack.c.l.bf16 %v241
  %v274 = vunpack.c.l.bf16 %v242
  %v275 = vunpack.c.l.bf16 %v243
  %v276 = vmul.f32 %v260, %v260
  %v277 = vmul.f32 %v261, %v261
  %v278 = vmul.f32 %v262, %v262
  %v279 = vmul.f32 %v263, %v263
  %v280 = vmul.f32 %v264, %v264
  %v281 = vmul.f32 %v265, %v265
  %v282 = vmul.f32 %v266, %v266
  %v283 = vmul.f32 %v267, %v267
  %v284 = vmul.f32 %v268, %v268
  %v285 = vmul.f32 %v269, %v269
  %v286 = vmul.f32 %v270, %v270
  %v287 = vmul.f32 %v271, %v271
  %v288 = vmul.f32 %v272, %v272
  %v289 = vmul.f32 %v273, %v273
  %v290 = vmul.f32 %v274, %v274
  %v291 = vmul.f32 %v275, %v275
  %v292 = vadd.f32 %v260, %v261
  %v293 = vadd.f32 %v292, %v262
  %v294 = vadd.f32 %v293, %v263
  %v295 = vadd.f32 %v294, %v264
  %v296 = vadd.f32 %v295, %v265
  %v297 = vadd.f32 %v296, %v266
  %v298 = vadd.f32 %v297, %v267
  %v299 = vadd.f32 %v298, %v268
  %v300 = vadd.f32 %v299, %v269
  %v301 = vadd.f32 %v300, %v270
  %v302 = vadd.f32 %v301, %v271
  %v303 = vadd.f32 %v302, %v272
  %v304 = vadd.f32 %v303, %v273
  %v305 = vadd.f32 %v304, %v274
  %v306 = vadd.f32 %v305, %v275
  %v307 = vrot.slane %v306, 4
  %v308 = vadd.f32 %v306, %v307
  %v309 = vrot.slane %v308, 2
  %v310 = vadd.f32 %v308, %v309
  %v311 = vrot.slane %v310, 1
  %v312 = vadd.f32 %v310, %v311
  %v313 = vadd.f32 %v276, %v277
  %v314 = vadd.f32 %v313, %v278
  %v315 = vadd.f32 %v314, %v279
  %v316 = vadd.f32 %v315, %v280
  %v317 = vadd.f32 %v316, %v281
  %v318 = vadd.f32 %v317, %v282
  %v319 = vadd.f32 %v318, %v283
  %v320 = vadd.f32 %v319, %v284
  %v321 = vadd.f32 %v320, %v285
  %v322 = vadd.f32 %v321, %v286
  %v323 = vadd.f32 %v322, %v287
  %v324 = vadd.f32 %v323, %v288
  %v325 = vadd.f32 %v324, %v289
  %v326 = vadd.f32 %v325, %v290
  %v327 = vadd.f32 %v326, %v291
  %v328 = vrot.slane %v327, 4
  %v329 = vadd.f32 %v327, %v328
  %v330 = vrot.slane %v329, 2
  %v331 = vadd.f32 %v329, %v330
  %v332 = vrot.slane %v331, 1
  %v333 = vadd.f32 %v331, %v332
  %v334 = vlaneseq
  %v335 = vshrl.u32 %v334, 7
  %vm336 = vcmp.eq.s32.totalorder %v335, 0
  %vm337 = vcmp.eq.s32.totalorder %v335, 1
  %v338 = vsel %vm337, %v333, 0.0
  %v339 = vsel %vm336, %v312, %v338
  %340 = vst [vmem:[%s5] sm:$0xff] %v339
  // Predicated region
  $region18: #{bottleneck_forward.7} parent=0 // pred_check
    _
  $region19: #{bottleneck_forward.7} parent=0 // pred_check_branch
    %342 = sbr.rel (0) target = $region21
  $region20: #{bottleneck_forward.7} parent=0 // pred_region
    _
  $region21: #{bottleneck_forward.7} parent=0 // pred_fallthru
    _
  // Predicated region
  $region22: #{bottleneck_forward.7} parent=0 // pred_check
    _
  $region23: #{bottleneck_forward.7} parent=0 // pred_check_branch
    %344 = sbr.rel (0) target = $region25
  $region24: #{bottleneck_forward.7} parent=0 // pred_region
    _
  $region25: #{bottleneck_forward.7} parent=0 // pred_fallthru
    _
  // Predicated region
  $region26: #{bottleneck_forward.7} parent=0 // pred_check
    _
  $region27: #{bottleneck_forward.7} parent=0 // pred_check_branch
    %346 = sbr.rel (0) target = $region29
  $region28: #{bottleneck_forward.7} parent=0 // pred_region
    _
  $region29: #{bottleneck_forward.7} parent=0 // pred_fallthru
    _
  // Predicated region
  $region30: #{bottleneck_forward.7} parent=0 // pred_check
    _
  $region31: #{bottleneck_forward.7} parent=0 // pred_check_branch
    %348 = sbr.rel (0) target = $region33
  $region32: #{bottleneck_forward.7} parent=0 // pred_region
    _
  $region33: #{bottleneck_forward.7} parent=0 // pred_fallthru
    _

// kernel: bottleneck_forward.5
$region0: #{bottleneck_forward.5}
  #allocation0 [shape = 'u32[]', space=smem, size = 0x4, offset = 0x4, fixed_abs, tag = 'smem constant byte address 0x4 - core index']
  #allocation1 [shape = 'u32[72,128]{1,0:T(1,128)}', space=vmem, size = 0x9000, scoped, tag = 'internal scratch']
  %s0 = inlined_call_operand.vmem [shape: bf16[512,128], index: 0, kind: input, shape index: {}]
  %s1 = inlined_call_operand.vmem [shape: bf16[128,128], index: 1, kind: input, shape index: {}]
  %s2 = inlined_call_operand.vmem [shape: bf16[512,128], index: 2, kind: output, shape index: {0}]
  %s3 = inlined_call_operand.vmem [shape: f32[1,8,128], index: 3, kind: output, shape index: {1}]
  %4 = xla_tuple %s2, %s3
  %s5 = sld [smem:[#allocation0]]
  $region26: #{bottleneck_forward.5} parent=0
    _
  %s7 = ssub.s32 1, %s5
  %s8 = scalar_select 0, %s7, %s5
  // Predicated region
  $region2: #{bottleneck_forward.5} parent=0 // pred_check
    _
  $region3: #{bottleneck_forward.5} parent=0 // pred_check_branch
    %10 = sbr.rel (0) target = $region5
  $region4: #{bottleneck_forward.5} parent=0 // pred_region
    _
  $region5: #{bottleneck_forward.5} parent=0 // pred_fallthru
    _
  // Predicated region
  $region6: #{bottleneck_forward.5} parent=0 // pred_check
    _
  $region7: #{bottleneck_forward.5} parent=0 // pred_check_branch
    %12 = sbr.rel (0) target = $region9
  $region8: #{bottleneck_forward.5} parent=0 // pred_region
    _
  $region9: #{bottleneck_forward.5} parent=0 // pred_fallthru
    _
  %v13 = vld [vmem:[%s0] sm:$0xf]
  %v14 = vld [vmem:[%s0 + $0x4] sm:$0xf]
  %v15 = vld [vmem:[%s0 + $0x8] sm:$0xf]
  %v16 = vld [vmem:[%s0 + $0xc] sm:$0xf]
  %v17 = vld [vmem:[%s0 + $0x10] sm:$0xf]
  %v18 = vld [vmem:[%s0 + $0x14] sm:$0xf]
  %v19 = vld [vmem:[%s0 + $0x18] sm:$0xf]
  %v20 = vld [vmem:[%s0 + $0x1c] sm:$0xf]
  %v21 = vld [vmem:[%s0 + $0x20] sm:$0xf]
  %v22 = vld [vmem:[%s0 + $0x24] sm:$0xf]
  %v23 = vld [vmem:[%s0 + $0x28] sm:$0xf]
  %v24 = vld [vmem:[%s0 + $0x2c] sm:$0xf]
  %v25 = vld [vmem:[%s0 + $0x30] sm:$0xf]
  %v26 = vld [vmem:[%s0 + $0x34] sm:$0xf]
  %v27 = vld [vmem:[%s0 + $0x38] sm:$0xf]
  %v28 = vld [vmem:[%s0 + $0x3c] sm:$0xf]
  %v29 = vld [vmem:[%s0 + $0x40] sm:$0xf]
  %v30 = vld [vmem:[%s0 + $0x44] sm:$0xf]
  %v31 = vld [vmem:[%s0 + $0x48] sm:$0xf]
  %v32 = vld [vmem:[%s0 + $0x4c] sm:$0xf]
  %v33 = vld [vmem:[%s0 + $0x50] sm:$0xf]
  %v34 = vld [vmem:[%s0 + $0x54] sm:$0xf]
  %v35 = vld [vmem:[%s0 + $0x58] sm:$0xf]
  %v36 = vld [vmem:[%s0 + $0x5c] sm:$0xf]
  %v37 = vld [vmem:[%s0 + $0x60] sm:$0xf]
  %v38 = vld [vmem:[%s0 + $0x64] sm:$0xf]
  %v39 = vld [vmem:[%s0 + $0x68] sm:$0xf]
  %v40 = vld [vmem:[%s0 + $0x6c] sm:$0xf]
  %v41 = vld [vmem:[%s0 + $0x70] sm:$0xf]
  %v42 = vld [vmem:[%s0 + $0x74] sm:$0xf]
  %v43 = vld [vmem:[%s0 + $0x78] sm:$0xf]
  %v44 = vld [vmem:[%s0 + $0x7c] sm:$0xf]
  %v45 = vld [vmem:[%s0 + $0x80] sm:$0xf]
  %v46 = vld [vmem:[%s0 + $0x84] sm:$0xf]
  %v47 = vld [vmem:[%s0 + $0x88] sm:$0xf]
  %v48 = vld [vmem:[%s0 + $0x8c] sm:$0xf]
  %v49 = vld [vmem:[%s0 + $0x90] sm:$0xf]
  %v50 = vld [vmem:[%s0 + $0x94] sm:$0xf]
  %v51 = vld [vmem:[%s0 + $0x98] sm:$0xf]
  %v52 = vld [vmem:[%s0 + $0x9c] sm:$0xf]
  %v53 = vld [vmem:[%s0 + $0xa0] sm:$0xf]
  %v54 = vld [vmem:[%s0 + $0xa4] sm:$0xf]
  %v55 = vld [vmem:[%s0 + $0xa8] sm:$0xf]
  %v56 = vld [vmem:[%s0 + $0xac] sm:$0xf]
  %v57 = vld [vmem:[%s0 + $0xb0] sm:$0xf]
  %v58 = vld [vmem:[%s0 + $0xb4] sm:$0xf]
  %v59 = vld [vmem:[%s0 + $0xb8] sm:$0xf]
  %v60 = vld [vmem:[%s0 + $0xbc] sm:$0xf]
  %v61 = vld [vmem:[%s0 + $0xc0] sm:$0xf]
  %v62 = vld [vmem:[%s0 + $0xc4] sm:$0xf]
  %v63 = vld [vmem:[%s0 + $0xc8] sm:$0xf]
  %v64 = vld [vmem:[%s0 + $0xcc] sm:$0xf]
  %v65 = vld [vmem:[%s0 + $0xd0] sm:$0xf]
  %v66 = vld [vmem:[%s0 + $0xd4] sm:$0xf]
  %v67 = vld [vmem:[%s0 + $0xd8] sm:$0xf]
  %v68 = vld [vmem:[%s0 + $0xdc] sm:$0xf]
  %v69 = vld [vmem:[%s0 + $0xe0] sm:$0xf]
  %v70 = vld [vmem:[%s0 + $0xe4] sm:$0xf]
  %v71 = vld [vmem:[%s0 + $0xe8] sm:$0xf]
  %v72 = vld [vmem:[%s0 + $0xec] sm:$0xf]
  %v73 = vld [vmem:[%s0 + $0xf0] sm:$0xf]
  %v74 = vld [vmem:[%s0 + $0xf4] sm:$0xf]
  %v75 = vld [vmem:[%s0 + $0xf8] sm:$0xf]
  %v76 = vld [vmem:[%s0 + $0xfc] sm:$0xf]
  %v77 = vld [vmem:[%s1] sm:$0xf]
  %v78 = vld [vmem:[%s1 + $0x4] sm:$0xf]
  %v79 = vld [vmem:[%s1 + $0x8] sm:$0xf]
  %v80 = vld [vmem:[%s1 + $0xc] sm:$0xf]
  %v81 = vld [vmem:[%s1 + $0x10] sm:$0xf]
  %v82 = vld [vmem:[%s1 + $0x14] sm:$0xf]
  %v83 = vld [vmem:[%s1 + $0x18] sm:$0xf]
  %v84 = vld [vmem:[%s1 + $0x1c] sm:$0xf]
  %v85 = vld [vmem:[%s1 + $0x20] sm:$0xf]
  %v86 = vld [vmem:[%s1 + $0x24] sm:$0xf]
  %v87 = vld [vmem:[%s1 + $0x28] sm:$0xf]
  %v88 = vld [vmem:[%s1 + $0x2c] sm:$0xf]
  %v89 = vld [vmem:[%s1 + $0x30] sm:$0xf]
  %v90 = vld [vmem:[%s1 + $0x34] sm:$0xf]
  %v91 = vld [vmem:[%s1 + $0x38] sm:$0xf]
  %v92 = vld [vmem:[%s1 + $0x3c] sm:$0xf]
  %v157 = vunpack.c.l.b16 %v13
  %v158 = vunpack.c.l.b16 %v14
  %v159 = vunpack.c.l.b16 %v15
  %v160 = vunpack.c.l.b16 %v16
  %v161 = vunpack.c.l.b16 %v17
  %v162 = vunpack.c.l.b16 %v18
  %v163 = vunpack.c.l.b16 %v19
  %v164 = vunpack.c.l.b16 %v20
  %v165 = vunpack.c.l.b16 %v21
  %v166 = vunpack.c.l.b16 %v22
  %v167 = vunpack.c.l.b16 %v23
  %v168 = vunpack.c.l.b16 %v24
  %v169 = vunpack.c.l.b16 %v25
  %v170 = vunpack.c.l.b16 %v26
  %v171 = vunpack.c.l.b16 %v27
  %v172 = vunpack.c.l.b16 %v28
  %v173 = vunpack.c.l.b16 %v29
  %v174 = vunpack.c.l.b16 %v30
  %v175 = vunpack.c.l.b16 %v31
  %v176 = vunpack.c.l.b16 %v32
  %v177 = vunpack.c.l.b16 %v33
  %v178 = vunpack.c.l.b16 %v34
  %v179 = vunpack.c.l.b16 %v35
  %v180 = vunpack.c.l.b16 %v36
  %v181 = vunpack.c.l.b16 %v37
  %v182 = vunpack.c.l.b16 %v38
  %v183 = vunpack.c.l.b16 %v39
  %v184 = vunpack.c.l.b16 %v40
  %v185 = vunpack.c.l.b16 %v41
  %v186 = vunpack.c.l.b16 %v42
  %v187 = vunpack.c.l.b16 %v43
  %v188 = vunpack.c.l.b16 %v44
  %v189 = vunpack.c.l.b16 %v45
  %v190 = vunpack.c.l.b16 %v46
  %v191 = vunpack.c.l.b16 %v47
  %v192 = vunpack.c.l.b16 %v48
  %v193 = vunpack.c.l.b16 %v49
  %v194 = vunpack.c.l.b16 %v50
  %v195 = vunpack.c.l.b16 %v51
  %v196 = vunpack.c.l.b16 %v52
  %v197 = vunpack.c.l.b16 %v53
  %v198 = vunpack.c.l.b16 %v54
  %v199 = vunpack.c.l.b16 %v55
  %v200 = vunpack.c.l.b16 %v56
  %v201 = vunpack.c.l.b16 %v57
  %v202 = vunpack.c.l.b16 %v58
  %v203 = vunpack.c.l.b16 %v59
  %v204 = vunpack.c.l.b16 %v60
  %v205 = vunpack.c.l.b16 %v61
  %v206 = vunpack.c.l.b16 %v62
  %v207 = vunpack.c.l.b16 %v63
  %v208 = vunpack.c.l.b16 %v64
  %v209 = vunpack.c.l.b16 %v65
  %v210 = vunpack.c.l.b16 %v66
  %v211 = vunpack.c.l.b16 %v67
  %v212 = vunpack.c.l.b16 %v68
  %v213 = vunpack.c.l.b16 %v69
  %v214 = vunpack.c.l.b16 %v70
  %v215 = vunpack.c.l.b16 %v71
  %v216 = vunpack.c.l.b16 %v72
  %v217 = vunpack.c.l.b16 %v73
  %v218 = vunpack.c.l.b16 %v74
  %v219 = vunpack.c.l.b16 %v75
  %v220 = vunpack.c.l.b16 %v76
  %v221 = vpack.c.b16 %v158, %v157
  %v222 = vpack.c.b16 %v160, %v159
  %v223 = vpack.c.b16 %v162, %v161
  %v224 = vpack.c.b16 %v164, %v163
  %v225 = vpack.c.b16 %v166, %v165
  %v226 = vpack.c.b16 %v168, %v167
  %v227 = vpack.c.b16 %v170, %v169
  %v228 = vpack.c.b16 %v172, %v171
  %v229 = vpack.c.b16 %v174, %v173
  %v230 = vpack.c.b16 %v176, %v175
  %v231 = vpack.c.b16 %v178, %v177
  %v232 = vpack.c.b16 %v180, %v179
  %v233 = vpack.c.b16 %v182, %v181
  %v234 = vpack.c.b16 %v184, %v183
  %v235 = vpack.c.b16 %v186, %v185
  %v236 = vpack.c.b16 %v188, %v187
  %v237 = vpack.c.b16 %v190, %v189
  %v238 = vpack.c.b16 %v192, %v191
  %v239 = vpack.c.b16 %v194, %v193
  %v240 = vpack.c.b16 %v196, %v195
  %v241 = vpack.c.b16 %v198, %v197
  %v242 = vpack.c.b16 %v200, %v199
  %v243 = vpack.c.b16 %v202, %v201
  %v244 = vpack.c.b16 %v204, %v203
  %v245 = vpack.c.b16 %v206, %v205
  %v246 = vpack.c.b16 %v208, %v207
  %v247 = vpack.c.b16 %v210, %v209
  %v248 = vpack.c.b16 %v212, %v211
  %v249 = vpack.c.b16 %v214, %v213
  %v250 = vpack.c.b16 %v216, %v215
  %v251 = vpack.c.b16 %v218, %v217
  %v252 = vpack.c.b16 %v220, %v219
  %v301 = vunpack.c.l.b16 %v77
  %v302 = vunpack.c.l.b16 %v78
  %v303 = vunpack.c.l.b16 %v79
  %v304 = vunpack.c.l.b16 %v80
  %v305 = vunpack.c.l.b16 %v81
  %v306 = vunpack.c.l.b16 %v82
  %v307 = vunpack.c.l.b16 %v83
  %v308 = vunpack.c.l.b16 %v84
  %v309 = vunpack.c.l.b16 %v85
  %v310 = vunpack.c.l.b16 %v86
  %v311 = vunpack.c.l.b16 %v87
  %v312 = vunpack.c.l.b16 %v88
  %v313 = vunpack.c.l.b16 %v89
  %v314 = vunpack.c.l.b16 %v90
  %v315 = vunpack.c.l.b16 %v91
  %v316 = vunpack.c.l.b16 %v92
  %v317 = vpack.c.b16 %v302, %v301
  %v318 = vpack.c.b16 %v304, %v303
  %v319 = vpack.c.b16 %v306, %v305
  %v320 = vpack.c.b16 %v308, %v307
  %v321 = vpack.c.b16 %v310, %v309
  %v322 = vpack.c.b16 %v312, %v311
  %v323 = vpack.c.b16 %v314, %v313
  %v324 = vpack.c.b16 %v316, %v315
  %333 = vmatpush.bf16.msra.mxu0 %v324
  %334 = vmatpush.bf16.msra.mxu0 %v323
  %335 = vmatpush.bf16.msra.mxu0 %v322
  %336 = vmatpush.bf16.msra.mxu0 %v321
  %337 = vmatpush.bf16.msra.mxu0 %v320
  %338 = vmatpush.bf16.msra.mxu0 %v319
  %339 = vmatpush.bf16.msra.mxu0 %v318
  %340 = vmatpush.bf16.msra.mxu0 %v317
  %341 = vmatmul.bf16.gmra.mxu0 %v221
  %v342 = vpop.f32.mrf.mxu0
  %v343 = vadd.f32 0.0, %v342
  %v344 = vpop.f32.mrf.mxu0
  %v345 = vadd.f32 0.0, %v344
  %346 = vmatmul.bf16.gmra.mxu0 %v222
  %v347 = vpop.f32.mrf.mxu0
  %v348 = vadd.f32 0.0, %v347
  %v349 = vpop.f32.mrf.mxu0
  %v350 = vadd.f32 0.0, %v349
  %351 = vmatmul.bf16.gmra.mxu0 %v223
  %v352 = vpop.f32.mrf.mxu0
  %v353 = vadd.f32 0.0, %v352
  %v354 = vpop.f32.mrf.mxu0
  %v355 = vadd.f32 0.0, %v354
  %356 = vmatmul.bf16.gmra.mxu0 %v224
  %v357 = vpop.f32.mrf.mxu0
  %v358 = vadd.f32 0.0, %v357
  %v359 = vpop.f32.mrf.mxu0
  %v360 = vadd.f32 0.0, %v359
  %361 = vmatmul.bf16.gmra.mxu0 %v225
  %v362 = vpop.f32.mrf.mxu0
  %v363 = vadd.f32 0.0, %v362
  %v364 = vpop.f32.mrf.mxu0
  %v365 = vadd.f32 0.0, %v364
  %366 = vmatmul.bf16.gmra.mxu0 %v226
  %v367 = vpop.f32.mrf.mxu0
  %v368 = vadd.f32 0.0, %v367
  %v369 = vpop.f32.mrf.mxu0
  %v370 = vadd.f32 0.0, %v369
  %371 = vmatmul.bf16.gmra.mxu0 %v227
  %v372 = vpop.f32.mrf.mxu0
  %v373 = vadd.f32 0.0, %v372
  %v374 = vpop.f32.mrf.mxu0
  %v375 = vadd.f32 0.0, %v374
  %376 = vmatmul.bf16.gmra.mxu0 %v228
  %v377 = vpop.f32.mrf.mxu0
  %v378 = vadd.f32 0.0, %v377
  %v379 = vpop.f32.mrf.mxu0
  %v380 = vadd.f32 0.0, %v379
  %381 = vmatmul.bf16.gmra.mxu0 %v229
  %v382 = vpop.f32.mrf.mxu0
  %v383 = vadd.f32 0.0, %v382
  %v384 = vpop.f32.mrf.mxu0
  %v385 = vadd.f32 0.0, %v384
  %386 = vmatmul.bf16.gmra.mxu0 %v230
  %v387 = vpop.f32.mrf.mxu0
  %v388 = vadd.f32 0.0, %v387
  %v389 = vpop.f32.mrf.mxu0
  %v390 = vadd.f32 0.0, %v389
  %391 = vmatmul.bf16.gmra.mxu0 %v231
  %v392 = vpop.f32.mrf.mxu0
  %v393 = vadd.f32 0.0, %v392
  %v394 = vpop.f32.mrf.mxu0
  %v395 = vadd.f32 0.0, %v394
  %396 = vmatmul.bf16.gmra.mxu0 %v232
  %v397 = vpop.f32.mrf.mxu0
  %v398 = vadd.f32 0.0, %v397
  %v399 = vpop.f32.mrf.mxu0
  %v400 = vadd.f32 0.0, %v399
  %401 = vmatmul.bf16.gmra.mxu0 %v233
  %v402 = vpop.f32.mrf.mxu0
  %v403 = vadd.f32 0.0, %v402
  %v404 = vpop.f32.mrf.mxu0
  %v405 = vadd.f32 0.0, %v404
  %406 = vmatmul.bf16.gmra.mxu0 %v234
  %v407 = vpop.f32.mrf.mxu0
  %v408 = vadd.f32 0.0, %v407
  %v409 = vpop.f32.mrf.mxu0
  %v410 = vadd.f32 0.0, %v409
  %411 = vmatmul.bf16.gmra.mxu0 %v235
  %v412 = vpop.f32.mrf.mxu0
  %v413 = vadd.f32 0.0, %v412
  %v414 = vpop.f32.mrf.mxu0
  %v415 = vadd.f32 0.0, %v414
  %416 = vmatmul.bf16.gmra.mxu0 %v236
  %v417 = vpop.f32.mrf.mxu0
  %v418 = vadd.f32 0.0, %v417
  %v419 = vpop.f32.mrf.mxu0
  %v420 = vadd.f32 0.0, %v419
  %421 = vmatmul.bf16.gmra.mxu0 %v237
  %v422 = vpop.f32.mrf.mxu0
  %v423 = vadd.f32 0.0, %v422
  %v424 = vpop.f32.mrf.mxu0
  %v425 = vadd.f32 0.0, %v424
  %426 = vmatmul.bf16.gmra.mxu0 %v238
  %v427 = vpop.f32.mrf.mxu0
  %v428 = vadd.f32 0.0, %v427
  %v429 = vpop.f32.mrf.mxu0
  %v430 = vadd.f32 0.0, %v429
  %431 = vmatmul.bf16.gmra.mxu0 %v239
  %v432 = vpop.f32.mrf.mxu0
  %v433 = vadd.f32 0.0, %v432
  %v434 = vpop.f32.mrf.mxu0
  %v435 = vadd.f32 0.0, %v434
  %436 = vmatmul.bf16.gmra.mxu0 %v240
  %v437 = vpop.f32.mrf.mxu0
  %v438 = vadd.f32 0.0, %v437
  %v439 = vpop.f32.mrf.mxu0
  %v440 = vadd.f32 0.0, %v439
  %441 = vmatmul.bf16.gmra.mxu0 %v241
  %v442 = vpop.f32.mrf.mxu0
  %v443 = vadd.f32 0.0, %v442
  %v444 = vpop.f32.mrf.mxu0
  %v445 = vadd.f32 0.0, %v444
  %446 = vmatmul.bf16.gmra.mxu0 %v242
  %v447 = vpop.f32.mrf.mxu0
  %v448 = vadd.f32 0.0, %v447
  %v449 = vpop.f32.mrf.mxu0
  %v450 = vadd.f32 0.0, %v449
  %451 = vmatmul.bf16.gmra.mxu0 %v243
  %v452 = vpop.f32.mrf.mxu0
  %v453 = vadd.f32 0.0, %v452
  %v454 = vpop.f32.mrf.mxu0
  %v455 = vadd.f32 0.0, %v454
  %456 = vmatmul.bf16.gmra.mxu0 %v244
  %v457 = vpop.f32.mrf.mxu0
  %v458 = vadd.f32 0.0, %v457
  %v459 = vpop.f32.mrf.mxu0
  %v460 = vadd.f32 0.0, %v459
  %461 = vmatmul.bf16.gmra.mxu0 %v245
  %v462 = vpop.f32.mrf.mxu0
  %v463 = vadd.f32 0.0, %v462
  %v464 = vpop.f32.mrf.mxu0
  %v465 = vadd.f32 0.0, %v464
  %466 = vmatmul.bf16.gmra.mxu0 %v246
  %v467 = vpop.f32.mrf.mxu0
  %v468 = vadd.f32 0.0, %v467
  %v469 = vpop.f32.mrf.mxu0
  %v470 = vadd.f32 0.0, %v469
  %471 = vmatmul.bf16.gmra.mxu0 %v247
  %v472 = vpop.f32.mrf.mxu0
  %v473 = vadd.f32 0.0, %v472
  %v474 = vpop.f32.mrf.mxu0
  %v475 = vadd.f32 0.0, %v474
  %476 = vmatmul.bf16.gmra.mxu0 %v248
  %v477 = vpop.f32.mrf.mxu0
  %v478 = vadd.f32 0.0, %v477
  %v479 = vpop.f32.mrf.mxu0
  %v480 = vadd.f32 0.0, %v479
  %481 = vmatmul.bf16.gmra.mxu0 %v249
  %v482 = vpop.f32.mrf.mxu0
  %v483 = vadd.f32 0.0, %v482
  %v484 = vpop.f32.mrf.mxu0
  %v485 = vadd.f32 0.0, %v484
  %486 = vmatmul.bf16.gmra.mxu0 %v250
  %v487 = vpop.f32.mrf.mxu0
  %v488 = vadd.f32 0.0, %v487
  %v489 = vpop.f32.mrf.mxu0
  %v490 = vadd.f32 0.0, %v489
  %491 = vmatmul.bf16.gmra.mxu0 %v251
  %v492 = vpop.f32.mrf.mxu0
  %v493 = vadd.f32 0.0, %v492
  %v494 = vpop.f32.mrf.mxu0
  %v495 = vadd.f32 0.0, %v494
  %496 = vmatmul.bf16.gmra.mxu0 %v252
  %v497 = vpop.f32.mrf.mxu0
  %v498 = vadd.f32 0.0, %v497
  %v499 = vpop.f32.mrf.mxu0
  %v500 = vadd.f32 0.0, %v499
  %501 = vdwg.mxu0
  %v502 = vpack.c.bf16 %v343, %v343
  %v503 = vpack.c.bf16 %v345, %v345
  %v504 = vpack.c.bf16 %v348, %v348
  %v505 = vpack.c.bf16 %v350, %v350
  %v506 = vpack.c.bf16 %v353, %v353
  %v507 = vpack.c.bf16 %v355, %v355
  %v508 = vpack.c.bf16 %v358, %v358
  %v509 = vpack.c.bf16 %v360, %v360
  %v510 = vpack.c.bf16 %v363, %v363
  %v511 = vpack.c.bf16 %v365, %v365
  %v512 = vpack.c.bf16 %v368, %v368
  %v513 = vpack.c.bf16 %v370, %v370
  %v514 = vpack.c.bf16 %v373, %v373
  %v515 = vpack.c.bf16 %v375, %v375
  %v516 = vpack.c.bf16 %v378, %v378
  %v517 = vpack.c.bf16 %v380, %v380
  %v518 = vpack.c.bf16 %v383, %v383
  %v519 = vpack.c.bf16 %v385, %v385
  %v520 = vpack.c.bf16 %v388, %v388
  %v521 = vpack.c.bf16 %v390, %v390
  %v522 = vpack.c.bf16 %v393, %v393
  %v523 = vpack.c.bf16 %v395, %v395
  %v524 = vpack.c.bf16 %v398, %v398
  %v525 = vpack.c.bf16 %v400, %v400
  %v526 = vpack.c.bf16 %v403, %v403
  %v527 = vpack.c.bf16 %v405, %v405
  %v528 = vpack.c.bf16 %v408, %v408
  %v529 = vpack.c.bf16 %v410, %v410
  %v530 = vpack.c.bf16 %v413, %v413
  %v531 = vpack.c.bf16 %v415, %v415
  %v532 = vpack.c.bf16 %v418, %v418
  %v533 = vpack.c.bf16 %v420, %v420
  %v534 = vpack.c.bf16 %v423, %v423
  %v535 = vpack.c.bf16 %v425, %v425
  %v536 = vpack.c.bf16 %v428, %v428
  %v537 = vpack.c.bf16 %v430, %v430
  %v538 = vpack.c.bf16 %v433, %v433
  %v539 = vpack.c.bf16 %v435, %v435
  %v540 = vpack.c.bf16 %v438, %v438
  %v541 = vpack.c.bf16 %v440, %v440
  %v542 = vpack.c.bf16 %v443, %v443
  %v543 = vpack.c.bf16 %v445, %v445
  %v544 = vpack.c.bf16 %v448, %v448
  %v545 = vpack.c.bf16 %v450, %v450
  %v546 = vpack.c.bf16 %v453, %v453
  %v547 = vpack.c.bf16 %v455, %v455
  %v548 = vpack.c.bf16 %v458, %v458
  %v549 = vpack.c.bf16 %v460, %v460
  %v550 = vpack.c.bf16 %v463, %v463
  %v551 = vpack.c.bf16 %v465, %v465
  %v552 = vpack.c.bf16 %v468, %v468
  %v553 = vpack.c.bf16 %v470, %v470
  %v554 = vpack.c.bf16 %v473, %v473
  %v555 = vpack.c.bf16 %v475, %v475
  %v556 = vpack.c.bf16 %v478, %v478
  %v557 = vpack.c.bf16 %v480, %v480
  %v558 = vpack.c.bf16 %v483, %v483
  %v559 = vpack.c.bf16 %v485, %v485
  %v560 = vpack.c.bf16 %v488, %v488
  %v561 = vpack.c.bf16 %v490, %v490
  %v562 = vpack.c.bf16 %v493, %v493
  %v563 = vpack.c.bf16 %v495, %v495
  %v564 = vpack.c.bf16 %v498, %v498
  %v565 = vpack.c.bf16 %v500, %v500
  %566 = vst [vmem:[%s2] sm:$0xf] %v502
  %567 = vst [vmem:[%s2 + $0x4] sm:$0xf] %v503
  %568 = vst [vmem:[%s2 + $0x8] sm:$0xf] %v504
  %569 = vst [vmem:[%s2 + $0xc] sm:$0xf] %v505
  %570 = vst [vmem:[%s2 + $0x10] sm:$0xf] %v506
  %571 = vst [vmem:[%s2 + $0x14] sm:$0xf] %v507
  %572 = vst [vmem:[%s2 + $0x18] sm:$0xf] %v508
  %573 = vst [vmem:[%s2 + $0x1c] sm:$0xf] %v509
  %574 = vst [vmem:[%s2 + $0x20] sm:$0xf] %v510
  %575 = vst [vmem:[%s2 + $0x24] sm:$0xf] %v511
  %576 = vst [vmem:[%s2 + $0x28] sm:$0xf] %v512
  %577 = vst [vmem:[%s2 + $0x2c] sm:$0xf] %v513
  %578 = vst [vmem:[%s2 + $0x30] sm:$0xf] %v514
  %579 = vst [vmem:[%s2 + $0x34] sm:$0xf] %v515
  %580 = vst [vmem:[%s2 + $0x38] sm:$0xf] %v516
  %581 = vst [vmem:[%s2 + $0x3c] sm:$0xf] %v517
  %582 = vst [vmem:[%s2 + $0x40] sm:$0xf] %v518
  %583 = vst [vmem:[%s2 + $0x44] sm:$0xf] %v519
  %584 = vst [vmem:[%s2 + $0x48] sm:$0xf] %v520
  %585 = vst [vmem:[%s2 + $0x4c] sm:$0xf] %v521
  %586 = vst [vmem:[%s2 + $0x50] sm:$0xf] %v522
  %587 = vst [vmem:[%s2 + $0x54] sm:$0xf] %v523
  %588 = vst [vmem:[%s2 + $0x58] sm:$0xf] %v524
  %589 = vst [vmem:[%s2 + $0x5c] sm:$0xf] %v525
  %590 = vst [vmem:[%s2 + $0x60] sm:$0xf] %v526
  %591 = vst [vmem:[%s2 + $0x64] sm:$0xf] %v527
  %592 = vst [vmem:[%s2 + $0x68] sm:$0xf] %v528
  %593 = vst [vmem:[%s2 + $0x6c] sm:$0xf] %v529
  %594 = vst [vmem:[%s2 + $0x70] sm:$0xf] %v530
  %595 = vst [vmem:[%s2 + $0x74] sm:$0xf] %v531
  %596 = vst [vmem:[%s2 + $0x78] sm:$0xf] %v532
  %597 = vst [vmem:[%s2 + $0x7c] sm:$0xf] %v533
  %598 = vst [vmem:[%s2 + $0x80] sm:$0xf] %v534
  %599 = vst [vmem:[%s2 + $0x84] sm:$0xf] %v535
  %600 = vst [vmem:[%s2 + $0x88] sm:$0xf] %v536
  %601 = vst [vmem:[%s2 + $0x8c] sm:$0xf] %v537
  %602 = vst [vmem:[%s2 + $0x90] sm:$0xf] %v538
  %603 = vst [vmem:[%s2 + $0x94] sm:$0xf] %v539
  %604 = vst [vmem:[%s2 + $0x98] sm:$0xf] %v540
  %605 = vst [vmem:[%s2 + $0x9c] sm:$0xf] %v541
  %606 = vst [vmem:[%s2 + $0xa0] sm:$0xf] %v542
  %607 = vst [vmem:[%s2 + $0xa4] sm:$0xf] %v543
  %608 = vst [vmem:[%s2 + $0xa8] sm:$0xf] %v544
  %609 = vst [vmem:[%s2 + $0xac] sm:$0xf] %v545
  %610 = vst [vmem:[%s2 + $0xb0] sm:$0xf] %v546
  %611 = vst [vmem:[%s2 + $0xb4] sm:$0xf] %v547
  %612 = vst [vmem:[%s2 + $0xb8] sm:$0xf] %v548
  %613 = vst [vmem:[%s2 + $0xbc] sm:$0xf] %v549
  %614 = vst [vmem:[%s2 + $0xc0] sm:$0xf] %v550
  %615 = vst [vmem:[%s2 + $0xc4] sm:$0xf] %v551
  %616 = vst [vmem:[%s2 + $0xc8] sm:$0xf] %v552
  %617 = vst [vmem:[%s2 + $0xcc] sm:$0xf] %v553
  %618 = vst [vmem:[%s2 + $0xd0] sm:$0xf] %v554
  %619 = vst [vmem:[%s2 + $0xd4] sm:$0xf] %v555
  %620 = vst [vmem:[%s2 + $0xd8] sm:$0xf] %v556
  %621 = vst [vmem:[%s2 + $0xdc] sm:$0xf] %v557
  %622 = vst [vmem:[%s2 + $0xe0] sm:$0xf] %v558
  %623 = vst [vmem:[%s2 + $0xe4] sm:$0xf] %v559
  %624 = vst [vmem:[%s2 + $0xe8] sm:$0xf] %v560
  %625 = vst [vmem:[%s2 + $0xec] sm:$0xf] %v561
  %626 = vst [vmem:[%s2 + $0xf0] sm:$0xf] %v562
  %627 = vst [vmem:[%s2 + $0xf4] sm:$0xf] %v563
  %628 = vst [vmem:[%s2 + $0xf8] sm:$0xf] %v564
  %629 = vst [vmem:[%s2 + $0xfc] sm:$0xf] %v565
  %v630 = vunpack.c.l.bf16 %v502
  %v631 = vunpack.c.l.bf16 %v503
  %v632 = vunpack.c.l.bf16 %v504
  %v633 = vunpack.c.l.bf16 %v505
  %v634 = vunpack.c.l.bf16 %v506
  %v635 = vunpack.c.l.bf16 %v507
  %v636 = vunpack.c.l.bf16 %v508
  %v637 = vunpack.c.l.bf16 %v509
  %v638 = vunpack.c.l.bf16 %v510
  %v639 = vunpack.c.l.bf16 %v511
  %v640 = vunpack.c.l.bf16 %v512
  %v641 = vunpack.c.l.bf16 %v513
  %v642 = vunpack.c.l.bf16 %v514
  %v643 = vunpack.c.l.bf16 %v515
  %v644 = vunpack.c.l.bf16 %v516
  %v645 = vunpack.c.l.bf16 %v517
  %v646 = vunpack.c.l.bf16 %v518
  %v647 = vunpack.c.l.bf16 %v519
  %v648 = vunpack.c.l.bf16 %v520
  %v649 = vunpack.c.l.bf16 %v521
  %v650 = vunpack.c.l.bf16 %v522
  %v651 = vunpack.c.l.bf16 %v523
  %v652 = vunpack.c.l.bf16 %v524
  %v653 = vunpack.c.l.bf16 %v525
  %v654 = vunpack.c.l.bf16 %v526
  %v655 = vunpack.c.l.bf16 %v527
  %v656 = vunpack.c.l.bf16 %v528
  %v657 = vunpack.c.l.bf16 %v529
  %v658 = vunpack.c.l.bf16 %v530
  %v659 = vunpack.c.l.bf16 %v531
  %v660 = vunpack.c.l.bf16 %v532
  %v661 = vunpack.c.l.bf16 %v533
  %v662 = vunpack.c.l.bf16 %v534
  %v663 = vunpack.c.l.bf16 %v535
  %v664 = vunpack.c.l.bf16 %v536
  %v665 = vunpack.c.l.bf16 %v537
  %v666 = vunpack.c.l.bf16 %v538
  %v667 = vunpack.c.l.bf16 %v539
  %v668 = vunpack.c.l.bf16 %v540
  %v669 = vunpack.c.l.bf16 %v541
  %v670 = vunpack.c.l.bf16 %v542
  %v671 = vunpack.c.l.bf16 %v543
  %v672 = vunpack.c.l.bf16 %v544
  %v673 = vunpack.c.l.bf16 %v545
  %v674 = vunpack.c.l.bf16 %v546
  %v675 = vunpack.c.l.bf16 %v547
  %v676 = vunpack.c.l.bf16 %v548
  %v677 = vunpack.c.l.bf16 %v549
  %v678 = vunpack.c.l.bf16 %v550
  %v679 = vunpack.c.l.bf16 %v551
  %v680 = vunpack.c.l.bf16 %v552
  %v681 = vunpack.c.l.bf16 %v553
  %v682 = vunpack.c.l.bf16 %v554
  %v683 = vunpack.c.l.bf16 %v555
  %v684 = vunpack.c.l.bf16 %v556
  %v685 = vunpack.c.l.bf16 %v557
  %v686 = vunpack.c.l.bf16 %v558
  %v687 = vunpack.c.l.bf16 %v559
  %v688 = vunpack.c.l.bf16 %v560
  %v689 = vunpack.c.l.bf16 %v561
  %v690 = vunpack.c.l.bf16 %v562
  %v691 = vunpack.c.l.bf16 %v563
  %v692 = vunpack.c.l.bf16 %v564
  %v693 = vunpack.c.l.bf16 %v565
  %v694 = vmul.f32 %v630, %v630
  %v695 = vmul.f32 %v631, %v631
  %v696 = vmul.f32 %v632, %v632
  %v697 = vmul.f32 %v633, %v633
  %v698 = vmul.f32 %v634, %v634
  %v699 = vmul.f32 %v635, %v635
  %v700 = vmul.f32 %v636, %v636
  %v701 = vmul.f32 %v637, %v637
  %v702 = vmul.f32 %v638, %v638
  %v703 = vmul.f32 %v639, %v639
  %v704 = vmul.f32 %v640, %v640
  %v705 = vmul.f32 %v641, %v641
  %v706 = vmul.f32 %v642, %v642
  %v707 = vmul.f32 %v643, %v643
  %v708 = vmul.f32 %v644, %v644
  %v709 = vmul.f32 %v645, %v645
  %v710 = vmul.f32 %v646, %v646
  %v711 = vmul.f32 %v647, %v647
  %v712 = vmul.f32 %v648, %v648
  %v713 = vmul.f32 %v649, %v649
  %v714 = vmul.f32 %v650, %v650
  %v715 = vmul.f32 %v651, %v651
  %v716 = vmul.f32 %v652, %v652
  %v717 = vmul.f32 %v653, %v653
  %v718 = vmul.f32 %v654, %v654
  %v719 = vmul.f32 %v655, %v655
  %v720 = vmul.f32 %v656, %v656
  %v721 = vmul.f32 %v657, %v657
  %v722 = vmul.f32 %v658, %v658
  %v723 = vmul.f32 %v659, %v659
  %v724 = vmul.f32 %v660, %v660
  %v725 = vmul.f32 %v661, %v661
  %v726 = vmul.f32 %v662, %v662
  %v727 = vmul.f32 %v663, %v663
  %v728 = vmul.f32 %v664, %v664
  %v729 = vmul.f32 %v665, %v665
  %v730 = vmul.f32 %v666, %v666
  %v731 = vmul.f32 %v667, %v667
  %v732 = vmul.f32 %v668, %v668
  %v733 = vmul.f32 %v669, %v669
  %v734 = vmul.f32 %v670, %v670
  %v735 = vmul.f32 %v671, %v671
  %v736 = vmul.f32 %v672, %v672
  %v737 = vmul.f32 %v673, %v673
  %v738 = vmul.f32 %v674, %v674
  %v739 = vmul.f32 %v675, %v675
  %v740 = vmul.f32 %v676, %v676
  %v741 = vmul.f32 %v677, %v677
  %v742 = vmul.f32 %v678, %v678
  %v743 = vmul.f32 %v679, %v679
  %v744 = vmul.f32 %v680, %v680
  %v745 = vmul.f32 %v681, %v681
  %v746 = vmul.f32 %v682, %v682
  %v747 = vmul.f32 %v683, %v683
  %v748 = vmul.f32 %v684, %v684
  %v749 = vmul.f32 %v685, %v685
  %v750 = vmul.f32 %v686, %v686
  %v751 = vmul.f32 %v687, %v687
  %v752 = vmul.f32 %v688, %v688
  %v753 = vmul.f32 %v689, %v689
  %v754 = vmul.f32 %v690, %v690
  %v755 = vmul.f32 %v691, %v691
  %v756 = vmul.f32 %v692, %v692
  %v757 = vmul.f32 %v693, %v693
  %v758 = vadd.f32 %v630, %v631
  %v759 = vadd.f32 %v758, %v632
  %v760 = vadd.f32 %v759, %v633
  %v761 = vadd.f32 %v760, %v634
  %v762 = vadd.f32 %v761, %v635
  %v763 = vadd.f32 %v762, %v636
  %v764 = vadd.f32 %v763, %v637
  %v765 = vadd.f32 %v764, %v638
  %v766 = vadd.f32 %v765, %v639
  %v767 = vadd.f32 %v766, %v640
  %v768 = vadd.f32 %v767, %v641
  %v769 = vadd.f32 %v768, %v642
  %v770 = vadd.f32 %v769, %v643
  %v771 = vadd.f32 %v770, %v644
  %v772 = vadd.f32 %v771, %v645
  %v773 = vadd.f32 %v772, %v646
  %v774 = vadd.f32 %v773, %v647
  %v775 = vadd.f32 %v774, %v648
  %v776 = vadd.f32 %v775, %v649
  %v777 = vadd.f32 %v776, %v650
  %v778 = vadd.f32 %v777, %v651
  %v779 = vadd.f32 %v778, %v652
  %v780 = vadd.f32 %v779, %v653
  %v781 = vadd.f32 %v780, %v654
  %v782 = vadd.f32 %v781, %v655
  %v783 = vadd.f32 %v782, %v656
  %v784 = vadd.f32 %v783, %v657
  %v785 = vadd.f32 %v784, %v658
  %v786 = vadd.f32 %v785, %v659
  %v787 = vadd.f32 %v786, %v660
  %v788 = vadd.f32 %v787, %v661
  %v789 = vadd.f32 %v788, %v662
  %v790 = vadd.f32 %v789, %v663
  %v791 = vadd.f32 %v790, %v664
  %v792 = vadd.f32 %v791, %v665
  %v793 = vadd.f32 %v792, %v666
  %v794 = vadd.f32 %v793, %v667
  %v795 = vadd.f32 %v794, %v668
  %v796 = vadd.f32 %v795, %v669
  %v797 = vadd.f32 %v796, %v670
  %v798 = vadd.f32 %v797, %v671
  %v799 = vadd.f32 %v798, %v672
  %v800 = vadd.f32 %v799, %v673
  %v801 = vadd.f32 %v800, %v674
  %v802 = vadd.f32 %v801, %v675
  %v803 = vadd.f32 %v802, %v676
  %v804 = vadd.f32 %v803, %v677
  %v805 = vadd.f32 %v804, %v678
  %v806 = vadd.f32 %v805, %v679
  %v807 = vadd.f32 %v806, %v680
  %v808 = vadd.f32 %v807, %v681
  %v809 = vadd.f32 %v808, %v682
  %v810 = vadd.f32 %v809, %v683
  %v811 = vadd.f32 %v810, %v684
  %v812 = vadd.f32 %v811, %v685
  %v813 = vadd.f32 %v812, %v686
  %v814 = vadd.f32 %v813, %v687
  %v815 = vadd.f32 %v814, %v688
  %v816 = vadd.f32 %v815, %v689
  %v817 = vadd.f32 %v816, %v690
  %v818 = vadd.f32 %v817, %v691
  %v819 = vadd.f32 %v818, %v692
  %v820 = vadd.f32 %v819, %v693
  %v821 = vrot.slane %v820, 4
  %v822 = vadd.f32 %v820, %v821
  %v823 = vrot.slane %v822, 2
  %v824 = vadd.f32 %v822, %v823
  %v825 = vrot.slane %v824, 1
  %v826 = vadd.f32 %v824, %v825
  %v827 = vadd.f32 %v694, %v695
  %v828 = vadd.f32 %v827, %v696
  %v829 = vadd.f32 %v828, %v697
  %v830 = vadd.f32 %v829, %v698
  %v831 = vadd.f32 %v830, %v699
  %v832 = vadd.f32 %v831, %v700
  %v833 = vadd.f32 %v832, %v701
  %v834 = vadd.f32 %v833, %v702
  %v835 = vadd.f32 %v834, %v703
  %v836 = vadd.f32 %v835, %v704
  %v837 = vadd.f32 %v836, %v705
  %v838 = vadd.f32 %v837, %v706
  %v839 = vadd.f32 %v838, %v707
  %v840 = vadd.f32 %v839, %v708
  %v841 = vadd.f32 %v840, %v709
  %v842 = vadd.f32 %v841, %v710
  %v843 = vadd.f32 %v842, %v711
  %v844 = vadd.f32 %v843, %v712
  %v845 = vadd.f32 %v844, %v713
  %v846 = vadd.f32 %v845, %v714
  %v847 = vadd.f32 %v846, %v715
  %v848 = vadd.f32 %v847, %v716
  %v849 = vadd.f32 %v848, %v717
  %v850 = vadd.f32 %v849, %v718
  %v851 = vadd.f32 %v850, %v719
  %v852 = vadd.f32 %v851, %v720
  %v853 = vadd.f32 %v852, %v721
  %v854 = vadd.f32 %v853, %v722
  %v855 = vadd.f32 %v854, %v723
  %v856 = vadd.f32 %v855, %v724
  %v857 = vadd.f32 %v856, %v725
  %v858 = vadd.f32 %v857, %v726
  %v859 = vadd.f32 %v858, %v727
  %v860 = vadd.f32 %v859, %v728
  %v861 = vadd.f32 %v860, %v729
  %v862 = vadd.f32 %v861, %v730
  %v863 = vadd.f32 %v862, %v731
  %v864 = vadd.f32 %v863, %v732
  %v865 = vadd.f32 %v864, %v733
  %v866 = vadd.f32 %v865, %v734
  %v867 = vadd.f32 %v866, %v735
  %v868 = vadd.f32 %v867, %v736
  %v869 = vadd.f32 %v868, %v737
  %v870 = vadd.f32 %v869, %v738
  %v871 = vadd.f32 %v870, %v739
  %v872 = vadd.f32 %v871, %v740
  %v873 = vadd.f32 %v872, %v741
  %v874 = vadd.f32 %v873, %v742
  %v875 = vadd.f32 %v874, %v743
  %v876 = vadd.f32 %v875, %v744
  %v877 = vadd.f32 %v876, %v745
  %v878 = vadd.f32 %v877, %v746
  %v879 = vadd.f32 %v878, %v747
  %v880 = vadd.f32 %v879, %v748
  %v881 = vadd.f32 %v880, %v749
  %v882 = vadd.f32 %v881, %v750
  %v883 = vadd.f32 %v882, %v751
  %v884 = vadd.f32 %v883, %v752
  %v885 = vadd.f32 %v884, %v753
  %v886 = vadd.f32 %v885, %v754
  %v887 = vadd.f32 %v886, %v755
  %v888 = vadd.f32 %v887, %v756
  %v889 = vadd.f32 %v888, %v757
  %v890 = vrot.slane %v889, 4
  %v891 = vadd.f32 %v889, %v890
  %v892 = vrot.slane %v891, 2
  %v893 = vadd.f32 %v891, %v892
  %v894 = vrot.slane %v893, 1
  %v895 = vadd.f32 %v893, %v894
  %v896 = vlaneseq
  %v897 = vshrl.u32 %v896, 7
  %vm898 = vcmp.eq.s32.totalorder %v897, 0
  %vm899 = vcmp.eq.s32.totalorder %v897, 1
  %v900 = vsel %vm899, %v895, 0.0
  %v901 = vsel %vm898, %v826, %v900
  %902 = vst [vmem:[%s3] sm:$0xff] %v901
  // Predicated region
  $region10: #{bottleneck_forward.5} parent=0 // pred_check
    _
  $region11: #{bottleneck_forward.5} parent=0 // pred_check_branch
    %904 = sbr.rel (0) target = $region13
  $region12: #{bottleneck_forward.5} parent=0 // pred_region
    _
  $region13: #{bottleneck_forward.5} parent=0 // pred_fallthru
    _
  // Predicated region
  $region14: #{bottleneck_forward.5} parent=0 // pred_check
    _
  $region15: #{bottleneck_forward.5} parent=0 // pred_check_branch
    %906 = sbr.rel (0) target = $region17
  $region16: #{bottleneck_forward.5} parent=0 // pred_region
    _
  $region17: #{bottleneck_forward.5} parent=0 // pred_fallthru
    _
  // Predicated region
  $region18: #{bottleneck_forward.5} parent=0 // pred_check
    _
  $region19: #{bottleneck_forward.5} parent=0 // pred_check_branch
    %908 = sbr.rel (0) target = $region21
  $region20: #{bottleneck_forward.5} parent=0 // pred_region
    _
  $region21: #{bottleneck_forward.5} parent=0 // pred_fallthru
    _
  // Predicated region
  $region22: #{bottleneck_forward.5} parent=0 // pred_check
    _
  $region23: #{bottleneck_forward.5} parent=0 // pred_check_branch
    %910 = sbr.rel (0) target = $region25
  $region24: #{bottleneck_forward.5} parent=0 // pred_region
    _
  $region25: #{bottleneck_forward.5} parent=0 // pred_fallthru
    _

// kernel: bottleneck_forward.6
$region0: #{bottleneck_forward.6}
  #allocation0 [shape = 'u32[]', space=smem, size = 0x4, offset = 0x4, fixed_abs, tag = 'smem constant byte address 0x4 - core index']
  #allocation1 [shape = 'u32[72,128]{1,0:T(1,128)}', space=vmem, size = 0x9000, scoped, tag = 'internal scratch']
  #allocation2 [shape = 'f32[324,128]{1,0:T(8,128)}', space=vmem, size = 0x29000, scoped, tag = 'scratch operand']
  %s0 = inlined_call_operand.vmem [shape: bf16[2,16,16,128], index: 0, kind: input, shape index: {}]
  %s1 = inlined_call_operand.vmem [shape: bf16[9,128,128], index: 1, kind: input, shape index: {}]
  %s2 = inlined_call_operand.vmem [shape: f32[1,128], index: 2, kind: input, shape index: {}]
  %s3 = inlined_call_operand.vmem [shape: f32[1,128], index: 3, kind: input, shape index: {}]
  %s4 = inlined_call_operand.vmem [shape: bf16[2,8,8,128], index: 4, kind: output, shape index: {0}]
  %s5 = inlined_call_operand.vmem [shape: f32[2,8,128], index: 5, kind: output, shape index: {1}]
  %6 = xla_tuple %s4, %s5
  %s7 = sld [smem:[#allocation0]]
  $region57: #{bottleneck_forward.6} parent=0
    _
  %s9 = ssub.s32 1, %s7
  %s10 = scalar_select 0, %s9, %s7
  loop: start=0, step=1, limit=4
  $region2: #{bottleneck_forward.6} parent=0 // loop_pre_header
    _
  $region3: #{bottleneck_forward.6} parent=0 // loop_header
    %s12 = sphi 0, %s16
    %p13 = scmp.ge.s32.totalorder %s12, 4
    %s22 = sphi 0, %s24
    %s25 = sphi 0, %s22
    %s26 = sphi 0, %s25
    %s42 = sphi 0, %s26
    %s46 = sphi 0, %s46
    %s48 = sphi 0, %s46
    %s49 = sphi 0, %s48
    %s63 = sphi 0, %s49
    %s67 = sphi 0, %s67
    %s69 = sphi 0, %s67
    %s70 = sphi 0, %s69
    %s84 = sphi 0, %s70
    %s88 = sphi 0, %s88
    %s90 = sphi 0, %s88
    %s91 = sphi 0, %s90
    %s105 = sphi 0, %s91
    %s111 = sphi 0, %s113
    %s114 = sphi 0, %s111
    %s115 = sphi 0, %s114
    %s131 = sphi 0, %s115
    %s137 = sphi 0, %s139
    %s140 = sphi 0, %s137
    %s141 = sphi 0, %s140
    %s157 = sphi 0, %s141
  $region4: #{bottleneck_forward.6} parent=0 // loop_header_branch
    %15 = sbr.rel (%p13) target = $region8
  $region5: #{bottleneck_forward.6} parent=0 // loop_body
    %s17 = ssub.s32 %s12, 1
    %s18 = ssub.s32 %s12, 2
    %s19 = sadd.s32 %s12, 1
    %s20 = ssub.s32 %s12, %s19
    %p21 = scmp.eq.s32.totalorder %s20, 0
    %s23 = sadd.s32 %s22, 1
    %s24 = scalar_select %p21, %s22, %s23
    %p27 = pneg %p21
    %p28 = scmp.eq.s32.totalorder %s12, 1
    %p29 = por %p27, %p28
    %p30 = scmp.ne.s32.totalorder %s22, %s25
    %p31 = scmp.eq.s32.totalorder %s12, 0
    %p32 = por %p30, %p31
    %p33 = scmp.ne.s32.totalorder %s22, %s25
    %p34 = scmp.eq.s32.totalorder %s17, 1
    %p35 = por %p33, %p34
    %p36 = scmp.ne.s32.totalorder %s25, %s26
    %p37 = scmp.eq.s32.totalorder %s17, 0
    %p38 = por %p36, %p37
    %p39 = scmp.ne.s32.totalorder %s25, %s26
    %p40 = scmp.eq.s32.totalorder %s18, 1
    %p41 = por %p39, %p40
    %p43 = scmp.ne.s32.totalorder %s26, %s42
    %p44 = scmp.eq.s32.totalorder %s18, 0
    %p45 = por %p43, %p44
    %s47 = sadd.s32 %s46, 1
    %p50 = scmp.eq.s32.totalorder %s12, 1
    %p51 = scmp.ne.s32.totalorder %s46, %s48
    %p52 = scmp.eq.s32.totalorder %s12, 0
    %p53 = por %p51, %p52
    %p54 = scmp.ne.s32.totalorder %s46, %s48
    %p55 = scmp.eq.s32.totalorder %s17, 1
    %p56 = por %p54, %p55
    %p57 = scmp.ne.s32.totalorder %s48, %s49
    %p58 = scmp.eq.s32.totalorder %s17, 0
    %p59 = por %p57, %p58
    %p60 = scmp.ne.s32.totalorder %s48, %s49
    %p61 = scmp.eq.s32.totalorder %s18, 1
    %p62 = por %p60, %p61
    %p64 = scmp.ne.s32.totalorder %s49, %s63
    %p65 = scmp.eq.s32.totalorder %s18, 0
    %p66 = por %p64, %p65
    %s68 = sadd.s32 %s67, 1
    %p71 = scmp.eq.s32.totalorder %s12, 1
    %p72 = scmp.ne.s32.totalorder %s67, %s69
    %p73 = scmp.eq.s32.totalorder %s12, 0
    %p74 = por %p72, %p73
    %p75 = scmp.ne.s32.totalorder %s67, %s69
    %p76 = scmp.eq.s32.totalorder %s17, 1
    %p77 = por %p75, %p76
    %p78 = scmp.ne.s32.totalorder %s69, %s70
    %p79 = scmp.eq.s32.totalorder %s17, 0
    %p80 = por %p78, %p79
    %p81 = scmp.ne.s32.totalorder %s69, %s70
    %p82 = scmp.eq.s32.totalorder %s18, 1
    %p83 = por %p81, %p82
    %p85 = scmp.ne.s32.totalorder %s70, %s84
    %p86 = scmp.eq.s32.totalorder %s18, 0
    %p87 = por %p85, %p86
    %s89 = sadd.s32 %s88, 1
    %p92 = scmp.eq.s32.totalorder %s12, 1
    %p93 = scmp.ne.s32.totalorder %s88, %s90
    %p94 = scmp.eq.s32.totalorder %s12, 0
    %p95 = por %p93, %p94
    %p96 = scmp.ne.s32.totalorder %s88, %s90
    %p97 = scmp.eq.s32.totalorder %s17, 1
    %p98 = por %p96, %p97
    %p99 = scmp.ne.s32.totalorder %s90, %s91
    %p100 = scmp.eq.s32.totalorder %s17, 0
    %p101 = por %p99, %p100
    %p102 = scmp.ne.s32.totalorder %s90, %s91
    %p103 = scmp.eq.s32.totalorder %s18, 1
    %p104 = por %p102, %p103
    %p106 = scmp.ne.s32.totalorder %s91, %s105
    %p107 = scmp.eq.s32.totalorder %s18, 0
    %p108 = por %p106, %p107
    %s109 = ssub.s32 %s12, %s19
    %p110 = scmp.eq.s32.totalorder %s109, 0
    %s112 = sadd.s32 %s111, 1
    %s113 = scalar_select %p110, %s111, %s112
    %p116 = pneg %p110
    %p117 = scmp.eq.s32.totalorder %s12, 1
    %p118 = por %p116, %p117
    %p119 = scmp.ne.s32.totalorder %s111, %s114
    %p120 = scmp.eq.s32.totalorder %s12, 0
    %p121 = por %p119, %p120
    %p122 = scmp.ne.s32.totalorder %s111, %s114
    %p123 = scmp.eq.s32.totalorder %s17, 1
    %p124 = por %p122, %p123
    %p125 = scmp.ne.s32.totalorder %s114, %s115
    %p126 = scmp.eq.s32.totalorder %s17, 0
    %p127 = por %p125, %p126
    %p128 = scmp.ne.s32.totalorder %s114, %s115
    %p129 = scmp.eq.s32.totalorder %s18, 1
    %p130 = por %p128, %p129
    %p132 = scmp.ne.s32.totalorder %s115, %s131
    %p133 = scmp.eq.s32.totalorder %s18, 0
    %p134 = por %p132, %p133
    %s135 = ssub.s32 %s12, %s19
    %p136 = scmp.eq.s32.totalorder %s135, 0
    %s138 = sadd.s32 %s137, 1
    %s139 = scalar_select %p136, %s137, %s138
    %p142 = pneg %p136
    %p143 = scmp.eq.s32.totalorder %s12, 1
    %p144 = por %p142, %p143
    %p145 = scmp.ne.s32.totalorder %s137, %s140
    %p146 = scmp.eq.s32.totalorder %s12, 0
    %p147 = por %p145, %p146
    %p148 = scmp.ne.s32.totalorder %s137, %s140
    %p149 = scmp.eq.s32.totalorder %s17, 1
    %p150 = por %p148, %p149
    %p151 = scmp.ne.s32.totalorder %s140, %s141
    %p152 = scmp.eq.s32.totalorder %s17, 0
    %p153 = por %p151, %p152
    %p154 = scmp.ne.s32.totalorder %s140, %s141
    %p155 = scmp.eq.s32.totalorder %s18, 1
    %p156 = por %p154, %p155
    %p158 = scmp.ne.s32.totalorder %s141, %s157
    %p159 = scmp.eq.s32.totalorder %s18, 0
    %p160 = por %p158, %p159
    %p161 = scmp.le.s32.totalorder 1, %s12
    %p162 = scmp.lt.s32.totalorder %s12, 3
    %p163 = pnand %p161, %p162
    %p164 = pneg %p163
    // Predicated region
    $region9: #{bottleneck_forward.6} parent=5 // pred_check
      _
    $region10: #{bottleneck_forward.6} parent=5 // pred_check_branch
      %166 = sbr.rel (%p163) target = $region12
    $region11: #{bottleneck_forward.6} parent=5 // pred_region
      %s167 = ssub.s32 %s12, 1
      // Predicated region
      $region13: #{bottleneck_forward.6} parent=11 // pred_check
        %p168 = pneg %p59
      $region14: #{bottleneck_forward.6} parent=11 // pred_check_branch
        %170 = sbr.rel (%p168) target = $region16
      $region15: #{bottleneck_forward.6} parent=11 // pred_region
        _
      $region16: #{bottleneck_forward.6} parent=11 // pred_fallthru
        _
      // Predicated region
      $region17: #{bottleneck_forward.6} parent=11 // pred_check
        %p171 = pneg %p80
      $region18: #{bottleneck_forward.6} parent=11 // pred_check_branch
        %173 = sbr.rel (%p171) target = $region20
      $region19: #{bottleneck_forward.6} parent=11 // pred_region
        _
      $region20: #{bottleneck_forward.6} parent=11 // pred_fallthru
        _
      // Predicated region
      $region21: #{bottleneck_forward.6} parent=11 // pred_check
        %p174 = pneg %p101
      $region22: #{bottleneck_forward.6} parent=11 // pred_check_branch
        %176 = sbr.rel (%p174) target = $region24
      $region23: #{bottleneck_forward.6} parent=11 // pred_region
        _
      $region24: #{bottleneck_forward.6} parent=11 // pred_fallthru
        _
    $region12: #{bottleneck_forward.6} parent=5 // pred_fallthru
      _
    %p177 = scmp.lt.s32.totalorder %s12, 2
    // Predicated region
    $region25: #{bottleneck_forward.6} parent=5 // pred_check
      %p178 = pneg %p177
    $region26: #{bottleneck_forward.6} parent=5 // pred_check_branch
      %180 = sbr.rel (%p178) target = $region28
    $region27: #{bottleneck_forward.6} parent=5 // pred_region
      // Predicated region
      $region29: #{bottleneck_forward.6} parent=27 // pred_check
        %p181 = pneg %p32
      $region30: #{bottleneck_forward.6} parent=27 // pred_check_branch
        %183 = sbr.rel (%p181) target = $region32
      $region31: #{bottleneck_forward.6} parent=27 // pred_region
        %p184 = scmp.lt.s32.totalorder %s12, 1
        %s185 = scalar_select %p184, %s12, 1
        %s186 = smul.addr %s185, 32
        %s187 = smul.addr %s186, 4
        %s188 = scalar_lea.vmem %s0, %s187
      $region32: #{bottleneck_forward.6} parent=27 // pred_fallthru
        _
    $region28: #{bottleneck_forward.6} parent=5 // pred_fallthru
      _
    %p189 = scmp.le.s32.totalorder 1, %s12
    %p190 = scmp.lt.s32.totalorder %s12, 3
    %p191 = pnand %p189, %p190
    %p192 = pneg %p191
    // Predicated region
    $region33: #{bottleneck_forward.6} parent=5 // pred_check
      _
    $region34: #{bottleneck_forward.6} parent=5 // pred_check_branch
      %194 = sbr.rel (%p191) target = $region36
    $region35: #{bottleneck_forward.6} parent=5 // pred_region
      %s195 = ssub.s32 %s12, 1
      %p196 = scmp.lt.s32.totalorder %s17, 1
      %s197 = scalar_select %p196, %s17, 1
      %s198 = smul.addr %s197, 32
      %s199 = smul.addr %s198, 4
      %s200 = scalar_lea.vmem %s0, %s199
      %p201 = pneg %p38
      %p202 = pneg %p35
      %p203 = pneg %p59
      %p204 = pneg %p56
      %p205 = pneg %p80
      %p206 = pneg %p77
      %p207 = pneg %p101
      %p208 = pneg %p98
      %p209 = pneg %p127
      %p210 = pneg %p124
      %p211 = scmp.lt.s32.totalorder %s17, 1
      %s212 = scalar_select %p211, %s17, 1
      %s213 = smul.addr %s212, 8
      %s214 = smul.addr %s213, 4
      %s215 = scalar_lea.vmem %s4, %s214
      %p216 = pneg %p153
      %p217 = pneg %p150
      %p218 = scmp.lt.s32.totalorder %s17, 1
      %s219 = scalar_select %p218, %s17, 1
      %s220 = smul.addr %s219, 8
      %s221 = scalar_lea.vmem %s5, %s220
      %p222 = scmp.lt.s32.totalorder %s17, 1
      %s223 = scalar_select %p222, %s17, 1
      %s224 = smul.addr %s223, 32
      %s225 = smul.addr %s224, 4
      %s226 = scalar_lea.vmem %s0, %s225
      %p227 = scmp.lt.s32.totalorder %s17, 1
      %s228 = scalar_select %p227, %s17, 1
      %s229 = smul.addr %s228, 8
      %s230 = smul.addr %s229, 4
      %s231 = scalar_lea.vmem %s4, %s230
      %p232 = scmp.lt.s32.totalorder %s17, 1
      %s233 = scalar_select %p232, %s17, 1
      %s234 = smul.addr %s233, 8
      %s235 = scalar_lea.vmem %s5, %s234
      %v236 = vld [vmem:[%s226] sm:$0xf]
      %v237 = vld [vmem:[%s226 + $0x4] sm:$0xf]
      %v238 = vld [vmem:[%s226 + $0x8] sm:$0xf]
      %v239 = vld [vmem:[%s226 + $0xc] sm:$0xf]
      %v240 = vld [vmem:[%s226 + $0x10] sm:$0xf]
      %v241 = vld [vmem:[%s226 + $0x14] sm:$0xf]
      %v242 = vld [vmem:[%s226 + $0x18] sm:$0xf]
      %v243 = vld [vmem:[%s226 + $0x1c] sm:$0xf]
      %v244 = vld [vmem:[%s226 + $0x20] sm:$0xf]
      %v245 = vld [vmem:[%s226 + $0x24] sm:$0xf]
      %v246 = vld [vmem:[%s226 + $0x28] sm:$0xf]
      %v247 = vld [vmem:[%s226 + $0x2c] sm:$0xf]
      %v248 = vld [vmem:[%s226 + $0x30] sm:$0xf]
      %v249 = vld [vmem:[%s226 + $0x34] sm:$0xf]
      %v250 = vld [vmem:[%s226 + $0x38] sm:$0xf]
      %v251 = vld [vmem:[%s226 + $0x3c] sm:$0xf]
      %v252 = vld [vmem:[%s226 + $0x40] sm:$0xf]
      %v253 = vld [vmem:[%s226 + $0x44] sm:$0xf]
      %v254 = vld [vmem:[%s226 + $0x48] sm:$0xf]
      %v255 = vld [vmem:[%s226 + $0x4c] sm:$0xf]
      %v256 = vld [vmem:[%s226 + $0x50] sm:$0xf]
      %v257 = vld [vmem:[%s226 + $0x54] sm:$0xf]
      %v258 = vld [vmem:[%s226 + $0x58] sm:$0xf]
      %v259 = vld [vmem:[%s226 + $0x5c] sm:$0xf]
      %v260 = vld [vmem:[%s226 + $0x60] sm:$0xf]
      %v261 = vld [vmem:[%s226 + $0x64] sm:$0xf]
      %v262 = vld [vmem:[%s226 + $0x68] sm:$0xf]
      %v263 = vld [vmem:[%s226 + $0x6c] sm:$0xf]
      %v264 = vld [vmem:[%s226 + $0x70] sm:$0xf]
      %v265 = vld [vmem:[%s226 + $0x74] sm:$0xf]
      %v266 = vld [vmem:[%s226 + $0x78] sm:$0xf]
      %v267 = vld [vmem:[%s226 + $0x7c] sm:$0xf]
      %v268 = vunpack.c.l.bf16 %v236
      %v269 = vunpack.c.l.bf16 %v237
      %v270 = vunpack.c.l.bf16 %v238
      %v271 = vunpack.c.l.bf16 %v239
      %v272 = vunpack.c.l.bf16 %v240
      %v273 = vunpack.c.l.bf16 %v241
      %v274 = vunpack.c.l.bf16 %v242
      %v275 = vunpack.c.l.bf16 %v243
      %v276 = vunpack.c.l.bf16 %v244
      %v277 = vunpack.c.l.bf16 %v245
      %v278 = vunpack.c.l.bf16 %v246
      %v279 = vunpack.c.l.bf16 %v247
      %v280 = vunpack.c.l.bf16 %v248
      %v281 = vunpack.c.l.bf16 %v249
      %v282 = vunpack.c.l.bf16 %v250
      %v283 = vunpack.c.l.bf16 %v251
      %v284 = vunpack.c.l.bf16 %v252
      %v285 = vunpack.c.l.bf16 %v253
      %v286 = vunpack.c.l.bf16 %v254
      %v287 = vunpack.c.l.bf16 %v255
      %v288 = vunpack.c.l.bf16 %v256
      %v289 = vunpack.c.l.bf16 %v257
      %v290 = vunpack.c.l.bf16 %v258
      %v291 = vunpack.c.l.bf16 %v259
      %v292 = vunpack.c.l.bf16 %v260
      %v293 = vunpack.c.l.bf16 %v261
      %v294 = vunpack.c.l.bf16 %v262
      %v295 = vunpack.c.l.bf16 %v263
      %v296 = vunpack.c.l.bf16 %v264
      %v297 = vunpack.c.l.bf16 %v265
      %v298 = vunpack.c.l.bf16 %v266
      %v299 = vunpack.c.l.bf16 %v267
      %v300 = vld [vmem:[%s2] sm:$0x1]
      %v302 = vperm.slane %v300, 0
      %v304 = vmul.f32 %v268, %v302
      %v305 = vmul.f32 %v269, %v302
      %v306 = vmul.f32 %v270, %v302
      %v307 = vmul.f32 %v271, %v302
      %v308 = vmul.f32 %v272, %v302
      %v309 = vmul.f32 %v273, %v302
      %v310 = vmul.f32 %v274, %v302
      %v311 = vmul.f32 %v275, %v302
      %v312 = vmul.f32 %v276, %v302
      %v313 = vmul.f32 %v277, %v302
      %v314 = vmul.f32 %v278, %v302
      %v315 = vmul.f32 %v279, %v302
      %v316 = vmul.f32 %v280, %v302
      %v317 = vmul.f32 %v281, %v302
      %v318 = vmul.f32 %v282, %v302
      %v319 = vmul.f32 %v283, %v302
      %v320 = vmul.f32 %v284, %v302
      %v321 = vmul.f32 %v285, %v302
      %v322 = vmul.f32 %v286, %v302
      %v323 = vmul.f32 %v287, %v302
      %v324 = vmul.f32 %v288, %v302
      %v325 = vmul.f32 %v289, %v302
      %v326 = vmul.f32 %v290, %v302
      %v327 = vmul.f32 %v291, %v302
      %v328 = vmul.f32 %v292, %v302
      %v329 = vmul.f32 %v293, %v302
      %v330 = vmul.f32 %v294, %v302
      %v331 = vmul.f32 %v295, %v302
      %v332 = vmul.f32 %v296, %v302
      %v333 = vmul.f32 %v297, %v302
      %v334 = vmul.f32 %v298, %v302
      %v335 = vmul.f32 %v299, %v302
      %v336 = vld [vmem:[%s3] sm:$0x1]
      %v338 = vperm.slane %v336, 0
      %v340 = vadd.f32 %v304, %v338
      %v341 = vadd.f32 %v305, %v338
      %v342 = vadd.f32 %v306, %v338
      %v343 = vadd.f32 %v307, %v338
      %v344 = vadd.f32 %v308, %v338
      %v345 = vadd.f32 %v309, %v338
      %v346 = vadd.f32 %v310, %v338
      %v347 = vadd.f32 %v311, %v338
      %v348 = vadd.f32 %v312, %v338
      %v349 = vadd.f32 %v313, %v338
      %v350 = vadd.f32 %v314, %v338
      %v351 = vadd.f32 %v315, %v338
      %v352 = vadd.f32 %v316, %v338
      %v353 = vadd.f32 %v317, %v338
      %v354 = vadd.f32 %v318, %v338
      %v355 = vadd.f32 %v319, %v338
      %v356 = vadd.f32 %v320, %v338
      %v357 = vadd.f32 %v321, %v338
      %v358 = vadd.f32 %v322, %v338
      %v359 = vadd.f32 %v323, %v338
      %v360 = vadd.f32 %v324, %v338
      %v361 = vadd.f32 %v325, %v338
      %v362 = vadd.f32 %v326, %v338
      %v363 = vadd.f32 %v327, %v338
      %v364 = vadd.f32 %v328, %v338
      %v365 = vadd.f32 %v329, %v338
      %v366 = vadd.f32 %v330, %v338
      %v367 = vadd.f32 %v331, %v338
      %v368 = vadd.f32 %v332, %v338
      %v369 = vadd.f32 %v333, %v338
      %v370 = vadd.f32 %v334, %v338
      %v371 = vadd.f32 %v335, %v338
      %v372 = vmax.f32 %v340, 0.0
      %v373 = vmax.f32 %v341, 0.0
      %v374 = vmax.f32 %v342, 0.0
      %v375 = vmax.f32 %v343, 0.0
      %v376 = vmax.f32 %v344, 0.0
      %v377 = vmax.f32 %v345, 0.0
      %v378 = vmax.f32 %v346, 0.0
      %v379 = vmax.f32 %v347, 0.0
      %v380 = vmax.f32 %v348, 0.0
      %v381 = vmax.f32 %v349, 0.0
      %v382 = vmax.f32 %v350, 0.0
      %v383 = vmax.f32 %v351, 0.0
      %v384 = vmax.f32 %v352, 0.0
      %v385 = vmax.f32 %v353, 0.0
      %v386 = vmax.f32 %v354, 0.0
      %v387 = vmax.f32 %v355, 0.0
      %v388 = vmax.f32 %v356, 0.0
      %v389 = vmax.f32 %v357, 0.0
      %v390 = vmax.f32 %v358, 0.0
      %v391 = vmax.f32 %v359, 0.0
      %v392 = vmax.f32 %v360, 0.0
      %v393 = vmax.f32 %v361, 0.0
      %v394 = vmax.f32 %v362, 0.0
      %v395 = vmax.f32 %v363, 0.0
      %v396 = vmax.f32 %v364, 0.0
      %v397 = vmax.f32 %v365, 0.0
      %v398 = vmax.f32 %v366, 0.0
      %v399 = vmax.f32 %v367, 0.0
      %v400 = vmax.f32 %v368, 0.0
      %v401 = vmax.f32 %v369, 0.0
      %v402 = vmax.f32 %v370, 0.0
      %v403 = vmax.f32 %v371, 0.0
      %404 = vst [vmem:[#allocation2] sm:$0xff] 0.0
      %405 = vst [vmem:[#allocation2 + $0x8] sm:$0xff] 0.0
      %406 = vst [vmem:[#allocation2 + $0x10] sm:$0x7] 0.0
      %407 = vst [vmem:[#allocation2 + $0x13] sm:$0xff] %v372
      %408 = vst [vmem:[#allocation2 + $0x1b] sm:$0xff] %v373
      %409 = vst [vmem:[#allocation2 + $0x23] sm:$0x3] 0.0
      %410 = vst [vmem:[#allocation2 + $0x25] sm:$0xff] %v374
      %411 = vst [vmem:[#allocation2 + $0x2d] sm:$0xff] %v375
      %412 = vst [vmem:[#allocation2 + $0x35] sm:$0x3] 0.0
      %413 = vst [vmem:[#allocation2 + $0x37] sm:$0xff] %v376
      %414 = vst [vmem:[#allocation2 + $0x3f] sm:$0xff] %v377
      %415 = vst [vmem:[#allocation2 + $0x47] sm:$0x3] 0.0
      %416 = vst [vmem:[#allocation2 + $0x49] sm:$0xff] %v378
      %417 = vst [vmem:[#allocation2 + $0x51] sm:$0xff] %v379
      %418 = vst [vmem:[#allocation2 + $0x59] sm:$0x3] 0.0
      %419 = vst [vmem:[#allocation2 + $0x5b] sm:$0xff] %v380
      %420 = vst [vmem:[#allocation2 + $0x63] sm:$0xff] %v381
      %421 = vst [vmem:[#allocation2 + $0x6b] sm:$0x3] 0.0
      %422 = vst [vmem:[#allocation2 + $0x6d] sm:$0xff] %v382
      %423 = vst [vmem:[#allocation2 + $0x75] sm:$0xff] %v383
      %424 = vst [vmem:[#allocation2 + $0x7d] sm:$0x3] 0.0
      %425 = vst [vmem:[#allocation2 + $0x7f] sm:$0xff] %v384
      %426 = vst [vmem:[#allocation2 + $0x87] sm:$0xff] %v385
      %427 = vst [vmem:[#allocation2 + $0x8f] sm:$0x3] 0.0
      %428 = vst [vmem:[#allocation2 + $0x91] sm:$0xff] %v386
      %429 = vst [vmem:[#allocation2 + $0x99] sm:$0xff] %v387
      %430 = vst [vmem:[#allocation2 + $0xa1] sm:$0x3] 0.0
      %431 = vst [vmem:[#allocation2 + $0xa3] sm:$0xff] %v388
      %432 = vst [vmem:[#allocation2 + $0xab] sm:$0xff] %v389
      %433 = vst [vmem:[#allocation2 + $0xb3] sm:$0x3] 0.0
      %434 = vst [vmem:[#allocation2 + $0xb5] sm:$0xff] %v390
      %435 = vst [vmem:[#allocation2 + $0xbd] sm:$0xff] %v391
      %436 = vst [vmem:[#allocation2 + $0xc5] sm:$0x3] 0.0
      %437 = vst [vmem:[#allocation2 + $0xc7] sm:$0xff] %v392
      %438 = vst [vmem:[#allocation2 + $0xcf] sm:$0xff] %v393
      %439 = vst [vmem:[#allocation2 + $0xd7] sm:$0x3] 0.0
      %440 = vst [vmem:[#allocation2 + $0xd9] sm:$0xff] %v394
      %441 = vst [vmem:[#allocation2 + $0xe1] sm:$0xff] %v395
      %442 = vst [vmem:[#allocation2 + $0xe9] sm:$0x3] 0.0
      %443 = vst [vmem:[#allocation2 + $0xeb] sm:$0xff] %v396
      %444 = vst [vmem:[#allocation2 + $0xf3] sm:$0xff] %v397
      %445 = vst [vmem:[#allocation2 + $0xfb] sm:$0x3] 0.0
      %446 = vst [vmem:[#allocation2 + $0xfd] sm:$0xff] %v398
      %447 = vst [vmem:[#allocation2 + $0x105] sm:$0xff] %v399
      %448 = vst [vmem:[#allocation2 + $0x10d] sm:$0x3] 0.0
      %449 = vst [vmem:[#allocation2 + $0x10f] sm:$0xff] %v400
      %450 = vst [vmem:[#allocation2 + $0x117] sm:$0xff] %v401
      %451 = vst [vmem:[#allocation2 + $0x11f] sm:$0x3] 0.0
      %452 = vst [vmem:[#allocation2 + $0x121] sm:$0xff] %v402
      %453 = vst [vmem:[#allocation2 + $0x129] sm:$0xff] %v403
      %454 = vst [vmem:[#allocation2 + $0x131] sm:$0xff] 0.0
      %455 = vst [vmem:[#allocation2 + $0x139] sm:$0xff] 0.0
      %456 = vst [vmem:[#allocation2 + $0x141] sm:$0x7] 0.0
      %v457 = vld [vmem:[#allocation2] ss:$2 sm:$0xff]
      %s458 = scalar_lea.vmem [#allocation2], 16
      %v459 = vld [vmem:[%s458] ss:$2 sm:$0xff]
      %s460 = scalar_lea.vmem [#allocation2], 32
      %v461 = vld [vmem:[%s460] ss:$2 sm:$0xff]
      %s462 = scalar_lea.vmem [#allocation2], 48
      %v463 = vld [vmem:[%s462] ss:$2 sm:$0xff]
      %s464 = scalar_lea.vmem [#allocation2], 64
      %v465 = vld [vmem:[%s464] ss:$2 sm:$0xff]
      %s466 = scalar_lea.vmem [#allocation2], 80
      %v467 = vld [vmem:[%s466] ss:$2 sm:$0xff]
      %s468 = scalar_lea.vmem [#allocation2], 96
      %v469 = vld [vmem:[%s468] ss:$2 sm:$0xff]
      %s470 = scalar_lea.vmem [#allocation2], 112
      %v471 = vld [vmem:[%s470] ss:$2 sm:$0xff]
      %s472 = scalar_lea.vmem [#allocation2], 128
      %v473 = vld [vmem:[%s472] ss:$2 sm:$0xff]
      %s474 = scalar_lea.vmem [#allocation2], 144
      %v475 = vld [vmem:[%s474] ss:$2 sm:$0xff]
      %s476 = scalar_lea.vmem [#allocation2], 160
      %v477 = vld [vmem:[%s476] ss:$2 sm:$0xff]
      %s478 = scalar_lea.vmem [#allocation2], 176
      %v479 = vld [vmem:[%s478] ss:$2 sm:$0xff]
      %s480 = scalar_lea.vmem [#allocation2], 192
      %v481 = vld [vmem:[%s480] ss:$2 sm:$0xff]
      %s482 = scalar_lea.vmem [#allocation2], 208
      %v483 = vld [vmem:[%s482] ss:$2 sm:$0xff]
      %s484 = scalar_lea.vmem [#allocation2], 224
      %v485 = vld [vmem:[%s484] ss:$2 sm:$0xff]
      %s486 = scalar_lea.vmem [#allocation2], 240
      %v487 = vld [vmem:[%s486] ss:$2 sm:$0xff]
      %s488 = scalar_lea.vmem [#allocation2], 256
      %v489 = vld [vmem:[%s488] ss:$2 sm:$0x3f]
      %v490 = vpack.c.bf16 %v459, %v457
      %v491 = vpack.c.bf16 %v463, %v461
      %v492 = vpack.c.bf16 %v467, %v465
      %v493 = vpack.c.bf16 %v471, %v469
      %v494 = vpack.c.bf16 %v475, %v473
      %v495 = vpack.c.bf16 %v479, %v477
      %v496 = vpack.c.bf16 %v483, %v481
      %v497 = vpack.c.bf16 %v487, %v485
      %v498 = vpack.c.bf16 %v489, %v489
      %v499 = vld [vmem:[%s1] sm:$0xf]
      %v500 = vld [vmem:[%s1 + $0x4] sm:$0xf]
      %v501 = vld [vmem:[%s1 + $0x8] sm:$0xf]
      %v502 = vld [vmem:[%s1 + $0xc] sm:$0xf]
      %v503 = vld [vmem:[%s1 + $0x10] sm:$0xf]
      %v504 = vld [vmem:[%s1 + $0x14] sm:$0xf]
      %v505 = vld [vmem:[%s1 + $0x18] sm:$0xf]
      %v506 = vld [vmem:[%s1 + $0x1c] sm:$0xf]
      %v507 = vld [vmem:[%s1 + $0x20] sm:$0xf]
      %v508 = vld [vmem:[%s1 + $0x24] sm:$0xf]
      %v509 = vld [vmem:[%s1 + $0x28] sm:$0xf]
      %v510 = vld [vmem:[%s1 + $0x2c] sm:$0xf]
      %v511 = vld [vmem:[%s1 + $0x30] sm:$0xf]
      %v512 = vld [vmem:[%s1 + $0x34] sm:$0xf]
      %v513 = vld [vmem:[%s1 + $0x38] sm:$0xf]
      %v514 = vld [vmem:[%s1 + $0x3c] sm:$0xf]
      %s515 = scalar_lea.vmem [#allocation2], 1
      %v516 = vld [vmem:[%s515] ss:$2 sm:$0xff]
      %s517 = scalar_lea.vmem [#allocation2], 17
      %v518 = vld [vmem:[%s517] ss:$2 sm:$0xff]
      %s519 = scalar_lea.vmem [#allocation2], 33
      %v520 = vld [vmem:[%s519] ss:$2 sm:$0xff]
      %s521 = scalar_lea.vmem [#allocation2], 49
      %v522 = vld [vmem:[%s521] ss:$2 sm:$0xff]
      %s523 = scalar_lea.vmem [#allocation2], 65
      %v524 = vld [vmem:[%s523] ss:$2 sm:$0xff]
      %s525 = scalar_lea.vmem [#allocation2], 81
      %v526 = vld [vmem:[%s525] ss:$2 sm:$0xff]
      %s527 = scalar_lea.vmem [#allocation2], 97
      %v528 = vld [vmem:[%s527] ss:$2 sm:$0xff]
      %s529 = scalar_lea.vmem [#allocation2], 113
      %v530 = vld [vmem:[%s529] ss:$2 sm:$0xff]
      %s531 = scalar_lea.vmem [#allocation2], 129
      %v532 = vld [vmem:[%s531] ss:$2 sm:$0xff]
      %s533 = scalar_lea.vmem [#allocation2], 145
      %v534 = vld [vmem:[%s533] ss:$2 sm:$0xff]
      %s535 = scalar_lea.vmem [#allocation2], 161
      %v536 = vld [vmem:[%s535] ss:$2 sm:$0xff]
      %s537 = scalar_lea.vmem [#allocation2], 177
      %v538 = vld [vmem:[%s537] ss:$2 sm:$0xff]
      %s539 = scalar_lea.vmem [#allocation2], 193
      %v540 = vld [vmem:[%s539] ss:$2 sm:$0xff]
      %s541 = scalar_lea.vmem [#allocation2], 209
      %v542 = vld [vmem:[%s541] ss:$2 sm:$0xff]
      %s543 = scalar_lea.vmem [#allocation2], 225
      %v544 = vld [vmem:[%s543] ss:$2 sm:$0xff]
      %s545 = scalar_lea.vmem [#allocation2], 241
      %v546 = vld [vmem:[%s545] ss:$2 sm:$0xff]
      %s547 = scalar_lea.vmem [#allocation2], 257
      %v548 = vld [vmem:[%s547] ss:$2 sm:$0x3f]
      %v549 = vpack.c.bf16 %v518, %v516
      %v550 = vpack.c.bf16 %v522, %v520
      %v551 = vpack.c.bf16 %v526, %v524
      %v552 = vpack.c.bf16 %v530, %v528
      %v553 = vpack.c.bf16 %v534, %v532
      %v554 = vpack.c.bf16 %v538, %v536
      %v555 = vpack.c.bf16 %v542, %v540
      %v556 = vpack.c.bf16 %v546, %v544
      %v557 = vpack.c.bf16 %v548, %v548
      %s558 = scalar_lea.vmem %s1, 64
      %v559 = vld [vmem:[%s558] sm:$0xf]
      %v560 = vld [vmem:[%s558 + $0x4] sm:$0xf]
      %v561 = vld [vmem:[%s558 + $0x8] sm:$0xf]
      %v562 = vld [vmem:[%s558 + $0xc] sm:$0xf]
      %v563 = vld [vmem:[%s558 + $0x10] sm:$0xf]
      %v564 = vld [vmem:[%s558 + $0x14] sm:$0xf]
      %v565 = vld [vmem:[%s558 + $0x18] sm:$0xf]
      %v566 = vld [vmem:[%s558 + $0x1c] sm:$0xf]
      %v567 = vld [vmem:[%s558 + $0x20] sm:$0xf]
      %v568 = vld [vmem:[%s558 + $0x24] sm:$0xf]
      %v569 = vld [vmem:[%s558 + $0x28] sm:$0xf]
      %v570 = vld [vmem:[%s558 + $0x2c] sm:$0xf]
      %v571 = vld [vmem:[%s558 + $0x30] sm:$0xf]
      %v572 = vld [vmem:[%s558 + $0x34] sm:$0xf]
      %v573 = vld [vmem:[%s558 + $0x38] sm:$0xf]
      %v574 = vld [vmem:[%s558 + $0x3c] sm:$0xf]
      %v591 = vunpack.c.l.b16 %v559
      %v592 = vunpack.c.l.b16 %v560
      %v593 = vunpack.c.l.b16 %v561
      %v594 = vunpack.c.l.b16 %v562
      %v595 = vunpack.c.l.b16 %v563
      %v596 = vunpack.c.l.b16 %v564
      %v597 = vunpack.c.l.b16 %v565
      %v598 = vunpack.c.l.b16 %v566
      %v599 = vunpack.c.l.b16 %v567
      %v600 = vunpack.c.l.b16 %v568
      %v601 = vunpack.c.l.b16 %v569
      %v602 = vunpack.c.l.b16 %v570
      %v603 = vunpack.c.l.b16 %v571
      %v604 = vunpack.c.l.b16 %v572
      %v605 = vunpack.c.l.b16 %v573
      %v606 = vunpack.c.l.b16 %v574
      %v607 = vpack.c.b16 %v592, %v591
      %v608 = vpack.c.b16 %v594, %v593
      %v609 = vpack.c.b16 %v596, %v595
      %v610 = vpack.c.b16 %v598, %v597
      %v611 = vpack.c.b16 %v600, %v599
      %v612 = vpack.c.b16 %v602, %v601
      %v613 = vpack.c.b16 %v604, %v603
      %v614 = vpack.c.b16 %v606, %v605
      %623 = vmatpush.bf16.msra.mxu0 %v614
      %624 = vmatpush.bf16.msra.mxu0 %v613
      %625 = vmatpush.bf16.msra.mxu0 %v612
      %626 = vmatpush.bf16.msra.mxu0 %v611
      %627 = vmatpush.bf16.msra.mxu0 %v610
      %628 = vmatpush.bf16.msra.mxu0 %v609
      %629 = vmatpush.bf16.msra.mxu0 %v608
      %630 = vmatpush.bf16.msra.mxu0 %v607
      %631 = vmatmul.bf16.gmra.mxu0 %v549
      %v632 = vpop.f32.mrf.mxu0
      %v633 = vadd.f32 0.0, %v632
      %v634 = vpop.f32.mrf.mxu0
      %635 = vmatmul.bf16.gmra.mxu0 %v550
      %v636 = vpop.f32.mrf.mxu0
      %v637 = vadd.f32 0.0, %v636
      %v638 = vpop.f32.mrf.mxu0
      %v639 = vadd.f32 0.0, %v638
      %640 = vmatmul.bf16.gmra.mxu0 %v551
      %v641 = vpop.f32.mrf.mxu0
      %v642 = vadd.f32 0.0, %v641
      %v643 = vpop.f32.mrf.mxu0
      %v644 = vadd.f32 0.0, %v643
      %645 = vmatmul.bf16.gmra.mxu0 %v552
      %v646 = vpop.f32.mrf.mxu0
      %v647 = vadd.f32 0.0, %v646
      %v648 = vpop.f32.mrf.mxu0
      %v649 = vadd.f32 0.0, %v648
      %650 = vmatmul.bf16.gmra.mxu0 %v553
      %v651 = vpop.f32.mrf.mxu0
      %v652 = vpop.f32.mrf.mxu0
      %v653 = vadd.f32 0.0, %v652
      %654 = vmatmul.bf16.gmra.mxu0 %v554
      %v655 = vpop.f32.mrf.mxu0
      %v656 = vpop.f32.mrf.mxu0
      %v657 = vadd.f32 0.0, %v656
      %658 = vmatmul.bf16.gmra.mxu0 %v555
      %v659 = vpop.f32.mrf.mxu0
      %v660 = vadd.f32 0.0, %v659
      %v661 = vpop.f32.mrf.mxu0
      %v662 = vadd.f32 0.0, %v661
      %663 = vmatmul.bf16.gmra.mxu0 %v556
      %v664 = vpop.f32.mrf.mxu0
      %v665 = vadd.f32 0.0, %v664
      %v666 = vpop.f32.mrf.mxu0
      %v667 = vadd.f32 0.0, %v666
      %668 = vmatmul.bf16.gmra.mxu0 %v557
      %v669 = vpop.f32.mrf.mxu0
      %v670 = vadd.f32 0.0, %v669
      %v671 = vpop.f32.mrf.mxu0
      %672 = vdwg.mxu0
      %v689 = vunpack.c.l.b16 %v499
      %v690 = vunpack.c.l.b16 %v500
      %v691 = vunpack.c.l.b16 %v501
      %v692 = vunpack.c.l.b16 %v502
      %v693 = vunpack.c.l.b16 %v503
      %v694 = vunpack.c.l.b16 %v504
      %v695 = vunpack.c.l.b16 %v505
      %v696 = vunpack.c.l.b16 %v506
      %v697 = vunpack.c.l.b16 %v507
      %v698 = vunpack.c.l.b16 %v508
      %v699 = vunpack.c.l.b16 %v509
      %v700 = vunpack.c.l.b16 %v510
      %v701 = vunpack.c.l.b16 %v511
      %v702 = vunpack.c.l.b16 %v512
      %v703 = vunpack.c.l.b16 %v513
      %v704 = vunpack.c.l.b16 %v514
      %v705 = vpack.c.b16 %v690, %v689
      %v706 = vpack.c.b16 %v692, %v691
      %v707 = vpack.c.b16 %v694, %v693
      %v708 = vpack.c.b16 %v696, %v695
      %v709 = vpack.c.b16 %v698, %v697
      %v710 = vpack.c.b16 %v700, %v699
      %v711 = vpack.c.b16 %v702, %v701
      %v712 = vpack.c.b16 %v704, %v703
      %721 = vmatpush.bf16.msra.mxu0 %v712
      %722 = vmatpush.bf16.msra.mxu0 %v711
      %723 = vmatpush.bf16.msra.mxu0 %v710
      %724 = vmatpush.bf16.msra.mxu0 %v709
      %725 = vmatpush.bf16.msra.mxu0 %v708
      %726 = vmatpush.bf16.msra.mxu0 %v707
      %727 = vmatpush.bf16.msra.mxu0 %v706
      %728 = vmatpush.bf16.msra.mxu0 %v705
      %729 = vmatmul.bf16.gmra.mxu0 %v490
      %v730 = vpop.f32.mrf.mxu0
      %v731 = vadd.f32 %v633, %v730
      %v732 = vpop.f32.mrf.mxu0
      %733 = vmatmul.bf16.gmra.mxu0 %v491
      %v734 = vpop.f32.mrf.mxu0
      %v735 = vadd.f32 %v637, %v734
      %v736 = vpop.f32.mrf.mxu0
      %v737 = vadd.f32 %v639, %v736
      %738 = vmatmul.bf16.gmra.mxu0 %v492
      %v739 = vpop.f32.mrf.mxu0
      %v740 = vadd.f32 %v642, %v739
      %v741 = vpop.f32.mrf.mxu0
      %v742 = vadd.f32 %v644, %v741
      %743 = vmatmul.bf16.gmra.mxu0 %v493
      %v744 = vpop.f32.mrf.mxu0
      %v745 = vadd.f32 %v647, %v744
      %v746 = vpop.f32.mrf.mxu0
      %v747 = vadd.f32 %v649, %v746
      %748 = vmatmul.bf16.gmra.mxu0 %v494
      %v749 = vpop.f32.mrf.mxu0
      %v750 = vpop.f32.mrf.mxu0
      %v751 = vadd.f32 %v653, %v750
      %752 = vmatmul.bf16.gmra.mxu0 %v495
      %v753 = vpop.f32.mrf.mxu0
      %v754 = vpop.f32.mrf.mxu0
      %v755 = vadd.f32 %v657, %v754
      %756 = vmatmul.bf16.gmra.mxu0 %v496
      %v757 = vpop.f32.mrf.mxu0
      %v758 = vadd.f32 %v660, %v757
      %v759 = vpop.f32.mrf.mxu0
      %v760 = vadd.f32 %v662, %v759
      %761 = vmatmul.bf16.gmra.mxu0 %v497
      %v762 = vpop.f32.mrf.mxu0
      %v763 = vadd.f32 %v665, %v762
      %v764 = vpop.f32.mrf.mxu0
      %v765 = vadd.f32 %v667, %v764
      %766 = vmatmul.bf16.gmra.mxu0 %v498
      %v767 = vpop.f32.mrf.mxu0
      %v768 = vadd.f32 %v670, %v767
      %v769 = vpop.f32.mrf.mxu0
      %770 = vdwg.mxu0
      %s771 = scalar_lea.vmem [#allocation2], 2
      %v772 = vld [vmem:[%s771] ss:$2 sm:$0xff]
      %s773 = scalar_lea.vmem [#allocation2], 18
      %v774 = vld [vmem:[%s773] ss:$2 sm:$0xff]
      %s775 = scalar_lea.vmem [#allocation2], 34
      %v776 = vld [vmem:[%s775] ss:$2 sm:$0xff]
      %s777 = scalar_lea.vmem [#allocation2], 50
      %v778 = vld [vmem:[%s777] ss:$2 sm:$0xff]
      %s779 = scalar_lea.vmem [#allocation2], 66
      %v780 = vld [vmem:[%s779] ss:$2 sm:$0xff]
      %s781 = scalar_lea.vmem [#allocation2], 82
      %v782 = vld [vmem:[%s781] ss:$2 sm:$0xff]
      %s783 = scalar_lea.vmem [#allocation2], 98
      %v784 = vld [vmem:[%s783] ss:$2 sm:$0xff]
      %s785 = scalar_lea.vmem [#allocation2], 114
      %v786 = vld [vmem:[%s785] ss:$2 sm:$0xff]
      %s787 = scalar_lea.vmem [#allocation2], 130
      %v788 = vld [vmem:[%s787] ss:$2 sm:$0xff]
      %s789 = scalar_lea.vmem [#allocation2], 146
      %v790 = vld [vmem:[%s789] ss:$2 sm:$0xff]
      %s791 = scalar_lea.vmem [#allocation2], 162
      %v792 = vld [vmem:[%s791] ss:$2 sm:$0xff]
      %s793 = scalar_lea.vmem [#allocation2], 178
      %v794 = vld [vmem:[%s793] ss:$2 sm:$0xff]
      %s795 = scalar_lea.vmem [#allocation2], 194
      %v796 = vld [vmem:[%s795] ss:$2 sm:$0xff]
      %s797 = scalar_lea.vmem [#allocation2], 210
      %v798 = vld [vmem:[%s797] ss:$2 sm:$0xff]
      %s799 = scalar_lea.vmem [#allocation2], 226
      %v800 = vld [vmem:[%s799] ss:$2 sm:$0xff]
      %s801 = scalar_lea.vmem [#allocation2], 242
      %v802 = vld [vmem:[%s801] ss:$2 sm:$0xff]
      %s803 = scalar_lea.vmem [#allocation2], 258
      %v804 = vld [vmem:[%s803] ss:$2 sm:$0x3f]
      %v805 = vpack.c.bf16 %v774, %v772
      %v806 = vpack.c.bf16 %v778, %v776
      %v807 = vpack.c.bf16 %v782, %v780
      %v808 = vpack.c.bf16 %v786, %v784
      %v809 = vpack.c.bf16 %v790, %v788
      %v810 = vpack.c.bf16 %v794, %v792
      %v811 = vpack.c.bf16 %v798, %v796
      %v812 = vpack.c.bf16 %v802, %v800
      %v813 = vpack.c.bf16 %v804, %v804
      %s814 = scalar_lea.vmem %s1, 128
      %v815 = vld [vmem:[%s814] sm:$0xf]
      %v816 = vld [vmem:[%s814 + $0x4] sm:$0xf]
      %v817 = vld [vmem:[%s814 + $0x8] sm:$0xf]
      %v818 = vld [vmem:[%s814 + $0xc] sm:$0xf]
      %v819 = vld [vmem:[%s814 + $0x10] sm:$0xf]
      %v820 = vld [vmem:[%s814 + $0x14] sm:$0xf]
      %v821 = vld [vmem:[%s814 + $0x18] sm:$0xf]
      %v822 = vld [vmem:[%s814 + $0x1c] sm:$0xf]
      %v823 = vld [vmem:[%s814 + $0x20] sm:$0xf]
      %v824 = vld [vmem:[%s814 + $0x24] sm:$0xf]
      %v825 = vld [vmem:[%s814 + $0x28] sm:$0xf]
      %v826 = vld [vmem:[%s814 + $0x2c] sm:$0xf]
      %v827 = vld [vmem:[%s814 + $0x30] sm:$0xf]
      %v828 = vld [vmem:[%s814 + $0x34] sm:$0xf]
      %v829 = vld [vmem:[%s814 + $0x38] sm:$0xf]
      %v830 = vld [vmem:[%s814 + $0x3c] sm:$0xf]
      %v847 = vunpack.c.l.b16 %v815
      %v848 = vunpack.c.l.b16 %v816
      %v849 = vunpack.c.l.b16 %v817
      %v850 = vunpack.c.l.b16 %v818
      %v851 = vunpack.c.l.b16 %v819
      %v852 = vunpack.c.l.b16 %v820
      %v853 = vunpack.c.l.b16 %v821
      %v854 = vunpack.c.l.b16 %v822
      %v855 = vunpack.c.l.b16 %v823
      %v856 = vunpack.c.l.b16 %v824
      %v857 = vunpack.c.l.b16 %v825
      %v858 = vunpack.c.l.b16 %v826
      %v859 = vunpack.c.l.b16 %v827
      %v860 = vunpack.c.l.b16 %v828
      %v861 = vunpack.c.l.b16 %v829
      %v862 = vunpack.c.l.b16 %v830
      %v863 = vpack.c.b16 %v848, %v847
      %v864 = vpack.c.b16 %v850, %v849
      %v865 = vpack.c.b16 %v852, %v851
      %v866 = vpack.c.b16 %v854, %v853
      %v867 = vpack.c.b16 %v856, %v855
      %v868 = vpack.c.b16 %v858, %v857
      %v869 = vpack.c.b16 %v860, %v859
      %v870 = vpack.c.b16 %v862, %v861
      %879 = vmatpush.bf16.msra.mxu0 %v870
      %880 = vmatpush.bf16.msra.mxu0 %v869
      %881 = vmatpush.bf16.msra.mxu0 %v868
      %882 = vmatpush.bf16.msra.mxu0 %v867
      %883 = vmatpush.bf16.msra.mxu0 %v866
      %884 = vmatpush.bf16.msra.mxu0 %v865
      %885 = vmatpush.bf16.msra.mxu0 %v864
      %886 = vmatpush.bf16.msra.mxu0 %v863
      %887 = vmatmul.bf16.gmra.mxu0 %v805
      %v888 = vpop.f32.mrf.mxu0
      %v889 = vadd.f32 0.0, %v888
      %v890 = vpop.f32.mrf.mxu0
      %891 = vmatmul.bf16.gmra.mxu0 %v806
      %v892 = vpop.f32.mrf.mxu0
      %v893 = vadd.f32 0.0, %v892
      %v894 = vpop.f32.mrf.mxu0
      %v895 = vadd.f32 0.0, %v894
      %896 = vmatmul.bf16.gmra.mxu0 %v807
      %v897 = vpop.f32.mrf.mxu0
      %v898 = vadd.f32 0.0, %v897
      %v899 = vpop.f32.mrf.mxu0
      %v900 = vadd.f32 0.0, %v899
      %901 = vmatmul.bf16.gmra.mxu0 %v808
      %v902 = vpop.f32.mrf.mxu0
      %v903 = vadd.f32 0.0, %v902
      %v904 = vpop.f32.mrf.mxu0
      %v905 = vadd.f32 0.0, %v904
      %906 = vmatmul.bf16.gmra.mxu0 %v809
      %v907 = vpop.f32.mrf.mxu0
      %v908 = vpop.f32.mrf.mxu0
      %v909 = vadd.f32 0.0, %v908
      %910 = vmatmul.bf16.gmra.mxu0 %v810
      %v911 = vpop.f32.mrf.mxu0
      %v912 = vpop.f32.mrf.mxu0
      %v913 = vadd.f32 0.0, %v912
      %914 = vmatmul.bf16.gmra.mxu0 %v811
      %v915 = vpop.f32.mrf.mxu0
      %v916 = vadd.f32 0.0, %v915
      %v917 = vpop.f32.mrf.mxu0
      %v918 = vadd.f32 0.0, %v917
      %919 = vmatmul.bf16.gmra.mxu0 %v812
      %v920 = vpop.f32.mrf.mxu0
      %v921 = vadd.f32 0.0, %v920
      %v922 = vpop.f32.mrf.mxu0
      %v923 = vadd.f32 0.0, %v922
      %924 = vmatmul.bf16.gmra.mxu0 %v813
      %v925 = vpop.f32.mrf.mxu0
      %v926 = vadd.f32 0.0, %v925
      %v927 = vpop.f32.mrf.mxu0
      %928 = vdwg.mxu0
      %v929 = vadd.f32 %v731, %v889
      %v930 = vadd.f32 %v735, %v893
      %v931 = vadd.f32 %v737, %v895
      %v932 = vadd.f32 %v740, %v898
      %v933 = vadd.f32 %v742, %v900
      %v934 = vadd.f32 %v745, %v903
      %v935 = vadd.f32 %v747, %v905
      %v936 = vadd.f32 %v751, %v909
      %v937 = vadd.f32 %v755, %v913
      %v938 = vadd.f32 %v758, %v916
      %v939 = vadd.f32 %v760, %v918
      %v940 = vadd.f32 %v763, %v921
      %v941 = vadd.f32 %v765, %v923
      %v942 = vadd.f32 %v768, %v926
      %v943 = vld [vmem:[%s773] ss:$2 sm:$0xff]
      %v944 = vld [vmem:[%s775] ss:$2 sm:$0xff]
      %v945 = vld [vmem:[%s777] ss:$2 sm:$0xff]
      %v946 = vld [vmem:[%s779] ss:$2 sm:$0xff]
      %v947 = vld [vmem:[%s781] ss:$2 sm:$0xff]
      %v948 = vld [vmem:[%s783] ss:$2 sm:$0xff]
      %v949 = vld [vmem:[%s785] ss:$2 sm:$0xff]
      %v950 = vld [vmem:[%s787] ss:$2 sm:$0xff]
      %v951 = vld [vmem:[%s789] ss:$2 sm:$0xff]
      %v952 = vld [vmem:[%s791] ss:$2 sm:$0xff]
      %v953 = vld [vmem:[%s793] ss:$2 sm:$0xff]
      %v954 = vld [vmem:[%s795] ss:$2 sm:$0xff]
      %v955 = vld [vmem:[%s797] ss:$2 sm:$0xff]
      %v956 = vld [vmem:[%s799] ss:$2 sm:$0xff]
      %v957 = vld [vmem:[%s801] ss:$2 sm:$0xff]
      %v958 = vld [vmem:[%s803] ss:$2 sm:$0xff]
      %s959 = scalar_lea.vmem [#allocation2], 274
      %v960 = vld [vmem:[%s959] ss:$2 sm:$0x3f]
      %v961 = vpack.c.bf16 %v944, %v943
      %v962 = vpack.c.bf16 %v946, %v945
      %v963 = vpack.c.bf16 %v948, %v947
      %v964 = vpack.c.bf16 %v950, %v949
      %v965 = vpack.c.bf16 %v952, %v951
      %v966 = vpack.c.bf16 %v954, %v953
      %v967 = vpack.c.bf16 %v956, %v955
      %v968 = vpack.c.bf16 %v958, %v957
      %v969 = vpack.c.bf16 %v960, %v960
      %s970 = scalar_lea.vmem %s1, 192
      %v971 = vld [vmem:[%s970] sm:$0xf]
      %v972 = vld [vmem:[%s970 + $0x4] sm:$0xf]
      %v973 = vld [vmem:[%s970 + $0x8] sm:$0xf]
      %v974 = vld [vmem:[%s970 + $0xc] sm:$0xf]
      %v975 = vld [vmem:[%s970 + $0x10] sm:$0xf]
      %v976 = vld [vmem:[%s970 + $0x14] sm:$0xf]
      %v977 = vld [vmem:[%s970 + $0x18] sm:$0xf]
      %v978 = vld [vmem:[%s970 + $0x1c] sm:$0xf]
      %v979 = vld [vmem:[%s970 + $0x20] sm:$0xf]
      %v980 = vld [vmem:[%s970 + $0x24] sm:$0xf]
      %v981 = vld [vmem:[%s970 + $0x28] sm:$0xf]
      %v982 = vld [vmem:[%s970 + $0x2c] sm:$0xf]
      %v983 = vld [vmem:[%s970 + $0x30] sm:$0xf]
      %v984 = vld [vmem:[%s970 + $0x34] sm:$0xf]
      %v985 = vld [vmem:[%s970 + $0x38] sm:$0xf]
      %v986 = vld [vmem:[%s970 + $0x3c] sm:$0xf]
      %v1003 = vunpack.c.l.b16 %v971
      %v1004 = vunpack.c.l.b16 %v972
      %v1005 = vunpack.c.l.b16 %v973
      %v1006 = vunpack.c.l.b16 %v974
      %v1007 = vunpack.c.l.b16 %v975
      %v1008 = vunpack.c.l.b16 %v976
      %v1009 = vunpack.c.l.b16 %v977
      %v1010 = vunpack.c.l.b16 %v978
      %v1011 = vunpack.c.l.b16 %v979
      %v1012 = vunpack.c.l.b16 %v980
      %v1013 = vunpack.c.l.b16 %v981
      %v1014 = vunpack.c.l.b16 %v982
      %v1015 = vunpack.c.l.b16 %v983
      %v1016 = vunpack.c.l.b16 %v984
      %v1017 = vunpack.c.l.b16 %v985
      %v1018 = vunpack.c.l.b16 %v986
      %v1019 = vpack.c.b16 %v1004, %v1003
      %v1020 = vpack.c.b16 %v1006, %v1005
      %v1021 = vpack.c.b16 %v1008, %v1007
      %v1022 = vpack.c.b16 %v1010, %v1009
      %v1023 = vpack.c.b16 %v1012, %v1011
      %v1024 = vpack.c.b16 %v1014, %v1013
      %v1025 = vpack.c.b16 %v1016, %v1015
      %v1026 = vpack.c.b16 %v1018, %v1017
      %1035 = vmatpush.bf16.msra.mxu0 %v1026
      %1036 = vmatpush.bf16.msra.mxu0 %v1025
      %1037 = vmatpush.bf16.msra.mxu0 %v1024
      %1038 = vmatpush.bf16.msra.mxu0 %v1023
      %1039 = vmatpush.bf16.msra.mxu0 %v1022
      %1040 = vmatpush.bf16.msra.mxu0 %v1021
      %1041 = vmatpush.bf16.msra.mxu0 %v1020
      %1042 = vmatpush.bf16.msra.mxu0 %v1019
      %1043 = vmatmul.bf16.gmra.mxu0 %v961
      %v1044 = vpop.f32.mrf.mxu0
      %v1045 = vadd.f32 0.0, %v1044
      %v1046 = vpop.f32.mrf.mxu0
      %1047 = vmatmul.bf16.gmra.mxu0 %v962
      %v1048 = vpop.f32.mrf.mxu0
      %v1049 = vadd.f32 0.0, %v1048
      %v1050 = vpop.f32.mrf.mxu0
      %v1051 = vadd.f32 0.0, %v1050
      %1052 = vmatmul.bf16.gmra.mxu0 %v963
      %v1053 = vpop.f32.mrf.mxu0
      %v1054 = vadd.f32 0.0, %v1053
      %v1055 = vpop.f32.mrf.mxu0
      %v1056 = vadd.f32 0.0, %v1055
      %1057 = vmatmul.bf16.gmra.mxu0 %v964
      %v1058 = vpop.f32.mrf.mxu0
      %v1059 = vadd.f32 0.0, %v1058
      %v1060 = vpop.f32.mrf.mxu0
      %v1061 = vadd.f32 0.0, %v1060
      %1062 = vmatmul.bf16.gmra.mxu0 %v965
      %v1063 = vpop.f32.mrf.mxu0
      %v1064 = vpop.f32.mrf.mxu0
      %v1065 = vadd.f32 0.0, %v1064
      %1066 = vmatmul.bf16.gmra.mxu0 %v966
      %v1067 = vpop.f32.mrf.mxu0
      %v1068 = vpop.f32.mrf.mxu0
      %v1069 = vadd.f32 0.0, %v1068
      %1070 = vmatmul.bf16.gmra.mxu0 %v967
      %v1071 = vpop.f32.mrf.mxu0
      %v1072 = vadd.f32 0.0, %v1071
      %v1073 = vpop.f32.mrf.mxu0
      %v1074 = vadd.f32 0.0, %v1073
      %1075 = vmatmul.bf16.gmra.mxu0 %v968
      %v1076 = vpop.f32.mrf.mxu0
      %v1077 = vadd.f32 0.0, %v1076
      %v1078 = vpop.f32.mrf.mxu0
      %v1079 = vadd.f32 0.0, %v1078
      %1080 = vmatmul.bf16.gmra.mxu0 %v969
      %v1081 = vpop.f32.mrf.mxu0
      %v1082 = vadd.f32 0.0, %v1081
      %v1083 = vpop.f32.mrf.mxu0
      %1084 = vdwg.mxu0
      %v1085 = vadd.f32 %v929, %v1045
      %v1086 = vadd.f32 %v930, %v1049
      %v1087 = vadd.f32 %v931, %v1051
      %v1088 = vadd.f32 %v932, %v1054
      %v1089 = vadd.f32 %v933, %v1056
      %v1090 = vadd.f32 %v934, %v1059
      %v1091 = vadd.f32 %v935, %v1061
      %v1092 = vadd.f32 %v936, %v1065
      %v1093 = vadd.f32 %v937, %v1069
      %v1094 = vadd.f32 %v938, %v1072
      %v1095 = vadd.f32 %v939, %v1074
      %v1096 = vadd.f32 %v940, %v1077
      %v1097 = vadd.f32 %v941, %v1079
      %v1098 = vadd.f32 %v942, %v1082
      %s1099 = scalar_lea.vmem [#allocation2], 19
      %v1100 = vld [vmem:[%s1099] ss:$2 sm:$0xff]
      %s1101 = scalar_lea.vmem [#allocation2], 35
      %v1102 = vld [vmem:[%s1101] ss:$2 sm:$0xff]
      %s1103 = scalar_lea.vmem [#allocation2], 51
      %v1104 = vld [vmem:[%s1103] ss:$2 sm:$0xff]
      %s1105 = scalar_lea.vmem [#allocation2], 67
      %v1106 = vld [vmem:[%s1105] ss:$2 sm:$0xff]
      %s1107 = scalar_lea.vmem [#allocation2], 83
      %v1108 = vld [vmem:[%s1107] ss:$2 sm:$0xff]
      %s1109 = scalar_lea.vmem [#allocation2], 99
      %v1110 = vld [vmem:[%s1109] ss:$2 sm:$0xff]
      %s1111 = scalar_lea.vmem [#allocation2], 115
      %v1112 = vld [vmem:[%s1111] ss:$2 sm:$0xff]
      %s1113 = scalar_lea.vmem [#allocation2], 131
      %v1114 = vld [vmem:[%s1113] ss:$2 sm:$0xff]
      %s1115 = scalar_lea.vmem [#allocation2], 147
      %v1116 = vld [vmem:[%s1115] ss:$2 sm:$0xff]
      %s1117 = scalar_lea.vmem [#allocation2], 163
      %v1118 = vld [vmem:[%s1117] ss:$2 sm:$0xff]
      %s1119 = scalar_lea.vmem [#allocation2], 179
      %v1120 = vld [vmem:[%s1119] ss:$2 sm:$0xff]
      %s1121 = scalar_lea.vmem [#allocation2], 195
      %v1122 = vld [vmem:[%s1121] ss:$2 sm:$0xff]
      %s1123 = scalar_lea.vmem [#allocation2], 211
      %v1124 = vld [vmem:[%s1123] ss:$2 sm:$0xff]
      %s1125 = scalar_lea.vmem [#allocation2], 227
      %v1126 = vld [vmem:[%s1125] ss:$2 sm:$0xff]
      %s1127 = scalar_lea.vmem [#allocation2], 243
      %v1128 = vld [vmem:[%s1127] ss:$2 sm:$0xff]
      %s1129 = scalar_lea.vmem [#allocation2], 259
      %v1130 = vld [vmem:[%s1129] ss:$2 sm:$0xff]
      %s1131 = scalar_lea.vmem [#allocation2], 275
      %v1132 = vld [vmem:[%s1131] ss:$2 sm:$0x3f]
      %v1133 = vpack.c.bf16 %v1102, %v1100
      %v1134 = vpack.c.bf16 %v1106, %v1104
      %v1135 = vpack.c.bf16 %v1110, %v1108
      %v1136 = vpack.c.bf16 %v1114, %v1112
      %v1137 = vpack.c.bf16 %v1118, %v1116
      %v1138 = vpack.c.bf16 %v1122, %v1120
      %v1139 = vpack.c.bf16 %v1126, %v1124
      %v1140 = vpack.c.bf16 %v1130, %v1128
      %v1141 = vpack.c.bf16 %v1132, %v1132
      %s1142 = scalar_lea.vmem %s1, 256
      %v1143 = vld [vmem:[%s1142] sm:$0xf]
      %v1144 = vld [vmem:[%s1142 + $0x4] sm:$0xf]
      %v1145 = vld [vmem:[%s1142 + $0x8] sm:$0xf]
      %v1146 = vld [vmem:[%s1142 + $0xc] sm:$0xf]
      %v1147 = vld [vmem:[%s1142 + $0x10] sm:$0xf]
      %v1148 = vld [vmem:[%s1142 + $0x14] sm:$0xf]
      %v1149 = vld [vmem:[%s1142 + $0x18] sm:$0xf]
      %v1150 = vld [vmem:[%s1142 + $0x1c] sm:$0xf]
      %v1151 = vld [vmem:[%s1142 + $0x20] sm:$0xf]
      %v1152 = vld [vmem:[%s1142 + $0x24] sm:$0xf]
      %v1153 = vld [vmem:[%s1142 + $0x28] sm:$0xf]
      %v1154 = vld [vmem:[%s1142 + $0x2c] sm:$0xf]
      %v1155 = vld [vmem:[%s1142 + $0x30] sm:$0xf]
      %v1156 = vld [vmem:[%s1142 + $0x34] sm:$0xf]
      %v1157 = vld [vmem:[%s1142 + $0x38] sm:$0xf]
      %v1158 = vld [vmem:[%s1142 + $0x3c] sm:$0xf]
      %v1175 = vunpack.c.l.b16 %v1143
      %v1176 = vunpack.c.l.b16 %v1144
      %v1177 = vunpack.c.l.b16 %v1145
      %v1178 = vunpack.c.l.b16 %v1146
      %v1179 = vunpack.c.l.b16 %v1147
      %v1180 = vunpack.c.l.b16 %v1148
      %v1181 = vunpack.c.l.b16 %v1149
      %v1182 = vunpack.c.l.b16 %v1150
      %v1183 = vunpack.c.l.b16 %v1151
      %v1184 = vunpack.c.l.b16 %v1152
      %v1185 = vunpack.c.l.b16 %v1153
      %v1186 = vunpack.c.l.b16 %v1154
      %v1187 = vunpack.c.l.b16 %v1155
      %v1188 = vunpack.c.l.b16 %v1156
      %v1189 = vunpack.c.l.b16 %v1157
      %v1190 = vunpack.c.l.b16 %v1158
      %v1191 = vpack.c.b16 %v1176, %v1175
      %v1192 = vpack.c.b16 %v1178, %v1177
      %v1193 = vpack.c.b16 %v1180, %v1179
      %v1194 = vpack.c.b16 %v1182, %v1181
      %v1195 = vpack.c.b16 %v1184, %v1183
      %v1196 = vpack.c.b16 %v1186, %v1185
      %v1197 = vpack.c.b16 %v1188, %v1187
      %v1198 = vpack.c.b16 %v1190, %v1189
      %1207 = vmatpush.bf16.msra.mxu0 %v1198
      %1208 = vmatpush.bf16.msra.mxu0 %v1197
      %1209 = vmatpush.bf16.msra.mxu0 %v1196
      %1210 = vmatpush.bf16.msra.mxu0 %v1195
      %1211 = vmatpush.bf16.msra.mxu0 %v1194
      %1212 = vmatpush.bf16.msra.mxu0 %v1193
      %1213 = vmatpush.bf16.msra.mxu0 %v1192
      %1214 = vmatpush.bf16.msra.mxu0 %v1191
      %1215 = vmatmul.bf16.gmra.mxu0 %v1133
      %v1216 = vpop.f32.mrf.mxu0
      %v1217 = vadd.f32 0.0, %v1216
      %v1218 = vpop.f32.mrf.mxu0
      %1219 = vmatmul.bf16.gmra.mxu0 %v1134
      %v1220 = vpop.f32.mrf.mxu0
      %v1221 = vadd.f32 0.0, %v1220
      %v1222 = vpop.f32.mrf.mxu0
      %v1223 = vadd.f32 0.0, %v1222
      %1224 = vmatmul.bf16.gmra.mxu0 %v1135
      %v1225 = vpop.f32.mrf.mxu0
      %v1226 = vadd.f32 0.0, %v1225
      %v1227 = vpop.f32.mrf.mxu0
      %v1228 = vadd.f32 0.0, %v1227
      %1229 = vmatmul.bf16.gmra.mxu0 %v1136
      %v1230 = vpop.f32.mrf.mxu0
      %v1231 = vadd.f32 0.0, %v1230
      %v1232 = vpop.f32.mrf.mxu0
      %v1233 = vadd.f32 0.0, %v1232
      %1234 = vmatmul.bf16.gmra.mxu0 %v1137
      %v1235 = vpop.f32.mrf.mxu0
      %v1236 = vpop.f32.mrf.mxu0
      %v1237 = vadd.f32 0.0, %v1236
      %1238 = vmatmul.bf16.gmra.mxu0 %v1138
      %v1239 = vpop.f32.mrf.mxu0
      %v1240 = vpop.f32.mrf.mxu0
      %v1241 = vadd.f32 0.0, %v1240
      %1242 = vmatmul.bf16.gmra.mxu0 %v1139
      %v1243 = vpop.f32.mrf.mxu0
      %v1244 = vadd.f32 0.0, %v1243
      %v1245 = vpop.f32.mrf.mxu0
      %v1246 = vadd.f32 0.0, %v1245
      %1247 = vmatmul.bf16.gmra.mxu0 %v1140
      %v1248 = vpop.f32.mrf.mxu0
      %v1249 = vadd.f32 0.0, %v1248
      %v1250 = vpop.f32.mrf.mxu0
      %v1251 = vadd.f32 0.0, %v1250
      %1252 = vmatmul.bf16.gmra.mxu0 %v1141
      %v1253 = vpop.f32.mrf.mxu0
      %v1254 = vadd.f32 0.0, %v1253
      %v1255 = vpop.f32.mrf.mxu0
      %1256 = vdwg.mxu0
      %v1257 = vadd.f32 %v1085, %v1217
      %v1258 = vadd.f32 %v1086, %v1221
      %v1259 = vadd.f32 %v1087, %v1223
      %v1260 = vadd.f32 %v1088, %v1226
      %v1261 = vadd.f32 %v1089, %v1228
      %v1262 = vadd.f32 %v1090, %v1231
      %v1263 = vadd.f32 %v1091, %v1233
      %v1264 = vadd.f32 %v1092, %v1237
      %v1265 = vadd.f32 %v1093, %v1241
      %v1266 = vadd.f32 %v1094, %v1244
      %v1267 = vadd.f32 %v1095, %v1246
      %v1268 = vadd.f32 %v1096, %v1249
      %v1269 = vadd.f32 %v1097, %v1251
      %v1270 = vadd.f32 %v1098, %v1254
      %s1271 = scalar_lea.vmem [#allocation2], 20
      %v1272 = vld [vmem:[%s1271] ss:$2 sm:$0xff]
      %s1273 = scalar_lea.vmem [#allocation2], 36
      %v1274 = vld [vmem:[%s1273] ss:$2 sm:$0xff]
      %s1275 = scalar_lea.vmem [#allocation2], 52
      %v1276 = vld [vmem:[%s1275] ss:$2 sm:$0xff]
      %s1277 = scalar_lea.vmem [#allocation2], 68
      %v1278 = vld [vmem:[%s1277] ss:$2 sm:$0xff]
      %s1279 = scalar_lea.vmem [#allocation2], 84
      %v1280 = vld [vmem:[%s1279] ss:$2 sm:$0xff]
      %s1281 = scalar_lea.vmem [#allocation2], 100
      %v1282 = vld [vmem:[%s1281] ss:$2 sm:$0xff]
      %s1283 = scalar_lea.vmem [#allocation2], 116
      %v1284 = vld [vmem:[%s1283] ss:$2 sm:$0xff]
      %s1285 = scalar_lea.vmem [#allocation2], 132
      %v1286 = vld [vmem:[%s1285] ss:$2 sm:$0xff]
      %s1287 = scalar_lea.vmem [#allocation2], 148
      %v1288 = vld [vmem:[%s1287] ss:$2 sm:$0xff]
      %s1289 = scalar_lea.vmem [#allocation2], 164
      %v1290 = vld [vmem:[%s1289] ss:$2 sm:$0xff]
      %s1291 = scalar_lea.vmem [#allocation2], 180
      %v1292 = vld [vmem:[%s1291] ss:$2 sm:$0xff]
      %s1293 = scalar_lea.vmem [#allocation2], 196
      %v1294 = vld [vmem:[%s1293] ss:$2 sm:$0xff]
      %s1295 = scalar_lea.vmem [#allocation2], 212
      %v1296 = vld [vmem:[%s1295] ss:$2 sm:$0xff]
      %s1297 = scalar_lea.vmem [#allocation2], 228
      %v1298 = vld [vmem:[%s1297] ss:$2 sm:$0xff]
      %s1299 = scalar_lea.vmem [#allocation2], 244
      %v1300 = vld [vmem:[%s1299] ss:$2 sm:$0xff]
      %s1301 = scalar_lea.vmem [#allocation2], 260
      %v1302 = vld [vmem:[%s1301] ss:$2 sm:$0xff]
      %s1303 = scalar_lea.vmem [#allocation2], 276
      %v1304 = vld [vmem:[%s1303] ss:$2 sm:$0x3f]
      %v1305 = vpack.c.bf16 %v1274, %v1272
      %v1306 = vpack.c.bf16 %v1278, %v1276
      %v1307 = vpack.c.bf16 %v1282, %v1280
      %v1308 = vpack.c.bf16 %v1286, %v1284
      %v1309 = vpack.c.bf16 %v1290, %v1288
      %v1310 = vpack.c.bf16 %v1294, %v1292
      %v1311 = vpack.c.bf16 %v1298, %v1296
      %v1312 = vpack.c.bf16 %v1302, %v1300
      %v1313 = vpack.c.bf16 %v1304, %v1304
      %s1314 = scalar_lea.vmem %s1, 320
      %v1315 = vld [vmem:[%s1314] sm:$0xf]
      %v1316 = vld [vmem:[%s1314 + $0x4] sm:$0xf]
      %v1317 = vld [vmem:[%s1314 + $0x8] sm:$0xf]
      %v1318 = vld [vmem:[%s1314 + $0xc] sm:$0xf]
      %v1319 = vld [vmem:[%s1314 + $0x10] sm:$0xf]
      %v1320 = vld [vmem:[%s1314 + $0x14] sm:$0xf]
      %v1321 = vld [vmem:[%s1314 + $0x18] sm:$0xf]
      %v1322 = vld [vmem:[%s1314 + $0x1c] sm:$0xf]
      %v1323 = vld [vmem:[%s1314 + $0x20] sm:$0xf]
      %v1324 = vld [vmem:[%s1314 + $0x24] sm:$0xf]
      %v1325 = vld [vmem:[%s1314 + $0x28] sm:$0xf]
      %v1326 = vld [vmem:[%s1314 + $0x2c] sm:$0xf]
      %v1327 = vld [vmem:[%s1314 + $0x30] sm:$0xf]
      %v1328 = vld [vmem:[%s1314 + $0x34] sm:$0xf]
      %v1329 = vld [vmem:[%s1314 + $0x38] sm:$0xf]
      %v1330 = vld [vmem:[%s1314 + $0x3c] sm:$0xf]
      %v1347 = vunpack.c.l.b16 %v1315
      %v1348 = vunpack.c.l.b16 %v1316
      %v1349 = vunpack.c.l.b16 %v1317
      %v1350 = vunpack.c.l.b16 %v1318
      %v1351 = vunpack.c.l.b16 %v1319
      %v1352 = vunpack.c.l.b16 %v1320
      %v1353 = vunpack.c.l.b16 %v1321
      %v1354 = vunpack.c.l.b16 %v1322
      %v1355 = vunpack.c.l.b16 %v1323
      %v1356 = vunpack.c.l.b16 %v1324
      %v1357 = vunpack.c.l.b16 %v1325
      %v1358 = vunpack.c.l.b16 %v1326
      %v1359 = vunpack.c.l.b16 %v1327
      %v1360 = vunpack.c.l.b16 %v1328
      %v1361 = vunpack.c.l.b16 %v1329
      %v1362 = vunpack.c.l.b16 %v1330
      %v1363 = vpack.c.b16 %v1348, %v1347
      %v1364 = vpack.c.b16 %v1350, %v1349
      %v1365 = vpack.c.b16 %v1352, %v1351
      %v1366 = vpack.c.b16 %v1354, %v1353
      %v1367 = vpack.c.b16 %v1356, %v1355
      %v1368 = vpack.c.b16 %v1358, %v1357
      %v1369 = vpack.c.b16 %v1360, %v1359
      %v1370 = vpack.c.b16 %v1362, %v1361
      %1379 = vmatpush.bf16.msra.mxu0 %v1370
      %1380 = vmatpush.bf16.msra.mxu0 %v1369
      %1381 = vmatpush.bf16.msra.mxu0 %v1368
      %1382 = vmatpush.bf16.msra.mxu0 %v1367
      %1383 = vmatpush.bf16.msra.mxu0 %v1366
      %1384 = vmatpush.bf16.msra.mxu0 %v1365
      %1385 = vmatpush.bf16.msra.mxu0 %v1364
      %1386 = vmatpush.bf16.msra.mxu0 %v1363
      %1387 = vmatmul.bf16.gmra.mxu0 %v1305
      %v1388 = vpop.f32.mrf.mxu0
      %v1389 = vadd.f32 0.0, %v1388
      %v1390 = vpop.f32.mrf.mxu0
      %1391 = vmatmul.bf16.gmra.mxu0 %v1306
      %v1392 = vpop.f32.mrf.mxu0
      %v1393 = vadd.f32 0.0, %v1392
      %v1394 = vpop.f32.mrf.mxu0
      %v1395 = vadd.f32 0.0, %v1394
      %1396 = vmatmul.bf16.gmra.mxu0 %v1307
      %v1397 = vpop.f32.mrf.mxu0
      %v1398 = vadd.f32 0.0, %v1397
      %v1399 = vpop.f32.mrf.mxu0
      %v1400 = vadd.f32 0.0, %v1399
      %1401 = vmatmul.bf16.gmra.mxu0 %v1308
      %v1402 = vpop.f32.mrf.mxu0
      %v1403 = vadd.f32 0.0, %v1402
      %v1404 = vpop.f32.mrf.mxu0
      %v1405 = vadd.f32 0.0, %v1404
      %1406 = vmatmul.bf16.gmra.mxu0 %v1309
      %v1407 = vpop.f32.mrf.mxu0
      %v1408 = vpop.f32.mrf.mxu0
      %v1409 = vadd.f32 0.0, %v1408
      %1410 = vmatmul.bf16.gmra.mxu0 %v1310
      %v1411 = vpop.f32.mrf.mxu0
      %v1412 = vpop.f32.mrf.mxu0
      %v1413 = vadd.f32 0.0, %v1412
      %1414 = vmatmul.bf16.gmra.mxu0 %v1311
      %v1415 = vpop.f32.mrf.mxu0
      %v1416 = vadd.f32 0.0, %v1415
      %v1417 = vpop.f32.mrf.mxu0
      %v1418 = vadd.f32 0.0, %v1417
      %1419 = vmatmul.bf16.gmra.mxu0 %v1312
      %v1420 = vpop.f32.mrf.mxu0
      %v1421 = vadd.f32 0.0, %v1420
      %v1422 = vpop.f32.mrf.mxu0
      %v1423 = vadd.f32 0.0, %v1422
      %1424 = vmatmul.bf16.gmra.mxu0 %v1313
      %v1425 = vpop.f32.mrf.mxu0
      %v1426 = vadd.f32 0.0, %v1425
      %v1427 = vpop.f32.mrf.mxu0
      %1428 = vdwg.mxu0
      %v1429 = vadd.f32 %v1257, %v1389
      %v1430 = vadd.f32 %v1258, %v1393
      %v1431 = vadd.f32 %v1259, %v1395
      %v1432 = vadd.f32 %v1260, %v1398
      %v1433 = vadd.f32 %v1261, %v1400
      %v1434 = vadd.f32 %v1262, %v1403
      %v1435 = vadd.f32 %v1263, %v1405
      %v1436 = vadd.f32 %v1264, %v1409
      %v1437 = vadd.f32 %v1265, %v1413
      %v1438 = vadd.f32 %v1266, %v1416
      %v1439 = vadd.f32 %v1267, %v1418
      %v1440 = vadd.f32 %v1268, %v1421
      %v1441 = vadd.f32 %v1269, %v1423
      %v1442 = vadd.f32 %v1270, %v1426
      %v1443 = vld [vmem:[%s1273] ss:$2 sm:$0xff]
      %v1444 = vld [vmem:[%s1275] ss:$2 sm:$0xff]
      %v1445 = vld [vmem:[%s1277] ss:$2 sm:$0xff]
      %v1446 = vld [vmem:[%s1279] ss:$2 sm:$0xff]
      %v1447 = vld [vmem:[%s1281] ss:$2 sm:$0xff]
      %v1448 = vld [vmem:[%s1283] ss:$2 sm:$0xff]
      %v1449 = vld [vmem:[%s1285] ss:$2 sm:$0xff]
      %v1450 = vld [vmem:[%s1287] ss:$2 sm:$0xff]
      %v1451 = vld [vmem:[%s1289] ss:$2 sm:$0xff]
      %v1452 = vld [vmem:[%s1291] ss:$2 sm:$0xff]
      %v1453 = vld [vmem:[%s1293] ss:$2 sm:$0xff]
      %v1454 = vld [vmem:[%s1295] ss:$2 sm:$0xff]
      %v1455 = vld [vmem:[%s1297] ss:$2 sm:$0xff]
      %v1456 = vld [vmem:[%s1299] ss:$2 sm:$0xff]
      %v1457 = vld [vmem:[%s1301] ss:$2 sm:$0xff]
      %v1458 = vld [vmem:[%s1303] ss:$2 sm:$0xff]
      %s1459 = scalar_lea.vmem [#allocation2], 292
      %v1460 = vld [vmem:[%s1459] ss:$2 sm:$0x3f]
      %v1461 = vpack.c.bf16 %v1444, %v1443
      %v1462 = vpack.c.bf16 %v1446, %v1445
      %v1463 = vpack.c.bf16 %v1448, %v1447
      %v1464 = vpack.c.bf16 %v1450, %v1449
      %v1465 = vpack.c.bf16 %v1452, %v1451
      %v1466 = vpack.c.bf16 %v1454, %v1453
      %v1467 = vpack.c.bf16 %v1456, %v1455
      %v1468 = vpack.c.bf16 %v1458, %v1457
      %v1469 = vpack.c.bf16 %v1460, %v1460
      %s1470 = scalar_lea.vmem %s1, 384
      %v1471 = vld [vmem:[%s1470] sm:$0xf]
      %v1472 = vld [vmem:[%s1470 + $0x4] sm:$0xf]
      %v1473 = vld [vmem:[%s1470 + $0x8] sm:$0xf]
      %v1474 = vld [vmem:[%s1470 + $0xc] sm:$0xf]
      %v1475 = vld [vmem:[%s1470 + $0x10] sm:$0xf]
      %v1476 = vld [vmem:[%s1470 + $0x14] sm:$0xf]
      %v1477 = vld [vmem:[%s1470 + $0x18] sm:$0xf]
      %v1478 = vld [vmem:[%s1470 + $0x1c] sm:$0xf]
      %v1479 = vld [vmem:[%s1470 + $0x20] sm:$0xf]
      %v1480 = vld [vmem:[%s1470 + $0x24] sm:$0xf]
      %v1481 = vld [vmem:[%s1470 + $0x28] sm:$0xf]
      %v1482 = vld [vmem:[%s1470 + $0x2c] sm:$0xf]
      %v1483 = vld [vmem:[%s1470 + $0x30] sm:$0xf]
      %v1484 = vld [vmem:[%s1470 + $0x34] sm:$0xf]
      %v1485 = vld [vmem:[%s1470 + $0x38] sm:$0xf]
      %v1486 = vld [vmem:[%s1470 + $0x3c] sm:$0xf]
      %v1503 = vunpack.c.l.b16 %v1471
      %v1504 = vunpack.c.l.b16 %v1472
      %v1505 = vunpack.c.l.b16 %v1473
      %v1506 = vunpack.c.l.b16 %v1474
      %v1507 = vunpack.c.l.b16 %v1475
      %v1508 = vunpack.c.l.b16 %v1476
      %v1509 = vunpack.c.l.b16 %v1477
      %v1510 = vunpack.c.l.b16 %v1478
      %v1511 = vunpack.c.l.b16 %v1479
      %v1512 = vunpack.c.l.b16 %v1480
      %v1513 = vunpack.c.l.b16 %v1481
      %v1514 = vunpack.c.l.b16 %v1482
      %v1515 = vunpack.c.l.b16 %v1483
      %v1516 = vunpack.c.l.b16 %v1484
      %v1517 = vunpack.c.l.b16 %v1485
      %v1518 = vunpack.c.l.b16 %v1486
      %v1519 = vpack.c.b16 %v1504, %v1503
      %v1520 = vpack.c.b16 %v1506, %v1505
      %v1521 = vpack.c.b16 %v1508, %v1507
      %v1522 = vpack.c.b16 %v1510, %v1509
      %v1523 = vpack.c.b16 %v1512, %v1511
      %v1524 = vpack.c.b16 %v1514, %v1513
      %v1525 = vpack.c.b16 %v1516, %v1515
      %v1526 = vpack.c.b16 %v1518, %v1517
      %1535 = vmatpush.bf16.msra.mxu0 %v1526
      %1536 = vmatpush.bf16.msra.mxu0 %v1525
      %1537 = vmatpush.bf16.msra.mxu0 %v1524
      %1538 = vmatpush.bf16.msra.mxu0 %v1523
      %1539 = vmatpush.bf16.msra.mxu0 %v1522
      %1540 = vmatpush.bf16.msra.mxu0 %v1521
      %1541 = vmatpush.bf16.msra.mxu0 %v1520
      %1542 = vmatpush.bf16.msra.mxu0 %v1519
      %1543 = vmatmul.bf16.gmra.mxu0 %v1461
      %v1544 = vpop.f32.mrf.mxu0
      %v1545 = vadd.f32 0.0, %v1544
      %v1546 = vpop.f32.mrf.mxu0
      %1547 = vmatmul.bf16.gmra.mxu0 %v1462
      %v1548 = vpop.f32.mrf.mxu0
      %v1549 = vadd.f32 0.0, %v1548
      %v1550 = vpop.f32.mrf.mxu0
      %v1551 = vadd.f32 0.0, %v1550
      %1552 = vmatmul.bf16.gmra.mxu0 %v1463
      %v1553 = vpop.f32.mrf.mxu0
      %v1554 = vadd.f32 0.0, %v1553
      %v1555 = vpop.f32.mrf.mxu0
      %v1556 = vadd.f32 0.0, %v1555
      %1557 = vmatmul.bf16.gmra.mxu0 %v1464
      %v1558 = vpop.f32.mrf.mxu0
      %v1559 = vadd.f32 0.0, %v1558
      %v1560 = vpop.f32.mrf.mxu0
      %v1561 = vadd.f32 0.0, %v1560
      %1562 = vmatmul.bf16.gmra.mxu0 %v1465
      %v1563 = vpop.f32.mrf.mxu0
      %v1564 = vpop.f32.mrf.mxu0
      %v1565 = vadd.f32 0.0, %v1564
      %1566 = vmatmul.bf16.gmra.mxu0 %v1466
      %v1567 = vpop.f32.mrf.mxu0
      %v1568 = vpop.f32.mrf.mxu0
      %v1569 = vadd.f32 0.0, %v1568
      %1570 = vmatmul.bf16.gmra.mxu0 %v1467
      %v1571 = vpop.f32.mrf.mxu0
      %v1572 = vadd.f32 0.0, %v1571
      %v1573 = vpop.f32.mrf.mxu0
      %v1574 = vadd.f32 0.0, %v1573
      %1575 = vmatmul.bf16.gmra.mxu0 %v1468
      %v1576 = vpop.f32.mrf.mxu0
      %v1577 = vadd.f32 0.0, %v1576
      %v1578 = vpop.f32.mrf.mxu0
      %v1579 = vadd.f32 0.0, %v1578
      %1580 = vmatmul.bf16.gmra.mxu0 %v1469
      %v1581 = vpop.f32.mrf.mxu0
      %v1582 = vadd.f32 0.0, %v1581
      %v1583 = vpop.f32.mrf.mxu0
      %1584 = vdwg.mxu0
      %v1585 = vadd.f32 %v1429, %v1545
      %v1586 = vadd.f32 %v1430, %v1549
      %v1587 = vadd.f32 %v1431, %v1551
      %v1588 = vadd.f32 %v1432, %v1554
      %v1589 = vadd.f32 %v1433, %v1556
      %v1590 = vadd.f32 %v1434, %v1559
      %v1591 = vadd.f32 %v1435, %v1561
      %v1592 = vadd.f32 %v1436, %v1565
      %v1593 = vadd.f32 %v1437, %v1569
      %v1594 = vadd.f32 %v1438, %v1572
      %v1595 = vadd.f32 %v1439, %v1574
      %v1596 = vadd.f32 %v1440, %v1577
      %v1597 = vadd.f32 %v1441, %v1579
      %v1598 = vadd.f32 %v1442, %v1582
      %s1599 = scalar_lea.vmem [#allocation2], 37
      %v1600 = vld [vmem:[%s1599] ss:$2 sm:$0xff]
      %s1601 = scalar_lea.vmem [#allocation2], 53
      %v1602 = vld [vmem:[%s1601] ss:$2 sm:$0xff]
      %s1603 = scalar_lea.vmem [#allocation2], 69
      %v1604 = vld [vmem:[%s1603] ss:$2 sm:$0xff]
      %s1605 = scalar_lea.vmem [#allocation2], 85
      %v1606 = vld [vmem:[%s1605] ss:$2 sm:$0xff]
      %s1607 = scalar_lea.vmem [#allocation2], 101
      %v1608 = vld [vmem:[%s1607] ss:$2 sm:$0xff]
      %s1609 = scalar_lea.vmem [#allocation2], 117
      %v1610 = vld [vmem:[%s1609] ss:$2 sm:$0xff]
      %s1611 = scalar_lea.vmem [#allocation2], 133
      %v1612 = vld [vmem:[%s1611] ss:$2 sm:$0xff]
      %s1613 = scalar_lea.vmem [#allocation2], 149
      %v1614 = vld [vmem:[%s1613] ss:$2 sm:$0xff]
      %s1615 = scalar_lea.vmem [#allocation2], 165
      %v1616 = vld [vmem:[%s1615] ss:$2 sm:$0xff]
      %s1617 = scalar_lea.vmem [#allocation2], 181
      %v1618 = vld [vmem:[%s1617] ss:$2 sm:$0xff]
      %s1619 = scalar_lea.vmem [#allocation2], 197
      %v1620 = vld [vmem:[%s1619] ss:$2 sm:$0xff]
      %s1621 = scalar_lea.vmem [#allocation2], 213
      %v1622 = vld [vmem:[%s1621] ss:$2 sm:$0xff]
      %s1623 = scalar_lea.vmem [#allocation2], 229
      %v1624 = vld [vmem:[%s1623] ss:$2 sm:$0xff]
      %s1625 = scalar_lea.vmem [#allocation2], 245
      %v1626 = vld [vmem:[%s1625] ss:$2 sm:$0xff]
      %s1627 = scalar_lea.vmem [#allocation2], 261
      %v1628 = vld [vmem:[%s1627] ss:$2 sm:$0xff]
      %s1629 = scalar_lea.vmem [#allocation2], 277
      %v1630 = vld [vmem:[%s1629] ss:$2 sm:$0xff]
      %s1631 = scalar_lea.vmem [#allocation2], 293
      %v1632 = vld [vmem:[%s1631] ss:$2 sm:$0x3f]
      %v1633 = vpack.c.bf16 %v1602, %v1600
      %v1634 = vpack.c.bf16 %v1606, %v1604
      %v1635 = vpack.c.bf16 %v1610, %v1608
      %v1636 = vpack.c.bf16 %v1614, %v1612
      %v1637 = vpack.c.bf16 %v1618, %v1616
      %v1638 = vpack.c.bf16 %v1622, %v1620
      %v1639 = vpack.c.bf16 %v1626, %v1624
      %v1640 = vpack.c.bf16 %v1630, %v1628
      %v1641 = vpack.c.bf16 %v1632, %v1632
      %s1642 = scalar_lea.vmem %s1, 448
      %v1643 = vld [vmem:[%s1642] sm:$0xf]
      %v1644 = vld [vmem:[%s1642 + $0x4] sm:$0xf]
      %v1645 = vld [vmem:[%s1642 + $0x8] sm:$0xf]
      %v1646 = vld [vmem:[%s1642 + $0xc] sm:$0xf]
      %v1647 = vld [vmem:[%s1642 + $0x10] sm:$0xf]
      %v1648 = vld [vmem:[%s1642 + $0x14] sm:$0xf]
      %v1649 = vld [vmem:[%s1642 + $0x18] sm:$0xf]
      %v1650 = vld [vmem:[%s1642 + $0x1c] sm:$0xf]
      %v1651 = vld [vmem:[%s1642 + $0x20] sm:$0xf]
      %v1652 = vld [vmem:[%s1642 + $0x24] sm:$0xf]
      %v1653 = vld [vmem:[%s1642 + $0x28] sm:$0xf]
      %v1654 = vld [vmem:[%s1642 + $0x2c] sm:$0xf]
      %v1655 = vld [vmem:[%s1642 + $0x30] sm:$0xf]
      %v1656 = vld [vmem:[%s1642 + $0x34] sm:$0xf]
      %v1657 = vld [vmem:[%s1642 + $0x38] sm:$0xf]
      %v1658 = vld [vmem:[%s1642 + $0x3c] sm:$0xf]
      %v1675 = vunpack.c.l.b16 %v1643
      %v1676 = vunpack.c.l.b16 %v1644
      %v1677 = vunpack.c.l.b16 %v1645
      %v1678 = vunpack.c.l.b16 %v1646
      %v1679 = vunpack.c.l.b16 %v1647
      %v1680 = vunpack.c.l.b16 %v1648
      %v1681 = vunpack.c.l.b16 %v1649
      %v1682 = vunpack.c.l.b16 %v1650
      %v1683 = vunpack.c.l.b16 %v1651
      %v1684 = vunpack.c.l.b16 %v1652
      %v1685 = vunpack.c.l.b16 %v1653
      %v1686 = vunpack.c.l.b16 %v1654
      %v1687 = vunpack.c.l.b16 %v1655
      %v1688 = vunpack.c.l.b16 %v1656
      %v1689 = vunpack.c.l.b16 %v1657
      %v1690 = vunpack.c.l.b16 %v1658
      %v1691 = vpack.c.b16 %v1676, %v1675
      %v1692 = vpack.c.b16 %v1678, %v1677
      %v1693 = vpack.c.b16 %v1680, %v1679
      %v1694 = vpack.c.b16 %v1682, %v1681
      %v1695 = vpack.c.b16 %v1684, %v1683
      %v1696 = vpack.c.b16 %v1686, %v1685
      %v1697 = vpack.c.b16 %v1688, %v1687
      %v1698 = vpack.c.b16 %v1690, %v1689
      %1707 = vmatpush.bf16.msra.mxu0 %v1698
      %1708 = vmatpush.bf16.msra.mxu0 %v1697
      %1709 = vmatpush.bf16.msra.mxu0 %v1696
      %1710 = vmatpush.bf16.msra.mxu0 %v1695
      %1711 = vmatpush.bf16.msra.mxu0 %v1694
      %1712 = vmatpush.bf16.msra.mxu0 %v1693
      %1713 = vmatpush.bf16.msra.mxu0 %v1692
      %1714 = vmatpush.bf16.msra.mxu0 %v1691
      %1715 = vmatmul.bf16.gmra.mxu0 %v1633
      %v1716 = vpop.f32.mrf.mxu0
      %v1717 = vadd.f32 0.0, %v1716
      %v1718 = vpop.f32.mrf.mxu0
      %1719 = vmatmul.bf16.gmra.mxu0 %v1634
      %v1720 = vpop.f32.mrf.mxu0
      %v1721 = vadd.f32 0.0, %v1720
      %v1722 = vpop.f32.mrf.mxu0
      %v1723 = vadd.f32 0.0, %v1722
      %1724 = vmatmul.bf16.gmra.mxu0 %v1635
      %v1725 = vpop.f32.mrf.mxu0
      %v1726 = vadd.f32 0.0, %v1725
      %v1727 = vpop.f32.mrf.mxu0
      %v1728 = vadd.f32 0.0, %v1727
      %1729 = vmatmul.bf16.gmra.mxu0 %v1636
      %v1730 = vpop.f32.mrf.mxu0
      %v1731 = vadd.f32 0.0, %v1730
      %v1732 = vpop.f32.mrf.mxu0
      %v1733 = vadd.f32 0.0, %v1732
      %1734 = vmatmul.bf16.gmra.mxu0 %v1637
      %v1735 = vpop.f32.mrf.mxu0
      %v1736 = vpop.f32.mrf.mxu0
      %v1737 = vadd.f32 0.0, %v1736
      %1738 = vmatmul.bf16.gmra.mxu0 %v1638
      %v1739 = vpop.f32.mrf.mxu0
      %v1740 = vpop.f32.mrf.mxu0
      %v1741 = vadd.f32 0.0, %v1740
      %1742 = vmatmul.bf16.gmra.mxu0 %v1639
      %v1743 = vpop.f32.mrf.mxu0
      %v1744 = vadd.f32 0.0, %v1743
      %v1745 = vpop.f32.mrf.mxu0
      %v1746 = vadd.f32 0.0, %v1745
      %1747 = vmatmul.bf16.gmra.mxu0 %v1640
      %v1748 = vpop.f32.mrf.mxu0
      %v1749 = vadd.f32 0.0, %v1748
      %v1750 = vpop.f32.mrf.mxu0
      %v1751 = vadd.f32 0.0, %v1750
      %1752 = vmatmul.bf16.gmra.mxu0 %v1641
      %v1753 = vpop.f32.mrf.mxu0
      %v1754 = vadd.f32 0.0, %v1753
      %v1755 = vpop.f32.mrf.mxu0
      %1756 = vdwg.mxu0
      %v1757 = vadd.f32 %v1585, %v1717
      %v1758 = vadd.f32 %v1586, %v1721
      %v1759 = vadd.f32 %v1587, %v1723
      %v1760 = vadd.f32 %v1588, %v1726
      %v1761 = vadd.f32 %v1589, %v1728
      %v1762 = vadd.f32 %v1590, %v1731
      %v1763 = vadd.f32 %v1591, %v1733
      %v1764 = vadd.f32 %v1592, %v1737
      %v1765 = vadd.f32 %v1593, %v1741
      %v1766 = vadd.f32 %v1594, %v1744
      %v1767 = vadd.f32 %v1595, %v1746
      %v1768 = vadd.f32 %v1596, %v1749
      %v1769 = vadd.f32 %v1597, %v1751
      %v1770 = vadd.f32 %v1598, %v1754
      %s1771 = scalar_lea.vmem [#allocation2], 38
      %v1772 = vld [vmem:[%s1771] ss:$2 sm:$0xff]
      %s1773 = scalar_lea.vmem [#allocation2], 54
      %v1774 = vld [vmem:[%s1773] ss:$2 sm:$0xff]
      %s1775 = scalar_lea.vmem [#allocation2], 70
      %v1776 = vld [vmem:[%s1775] ss:$2 sm:$0xff]
      %s1777 = scalar_lea.vmem [#allocation2], 86
      %v1778 = vld [vmem:[%s1777] ss:$2 sm:$0xff]
      %s1779 = scalar_lea.vmem [#allocation2], 102
      %v1780 = vld [vmem:[%s1779] ss:$2 sm:$0xff]
      %s1781 = scalar_lea.vmem [#allocation2], 118
      %v1782 = vld [vmem:[%s1781] ss:$2 sm:$0xff]
      %s1783 = scalar_lea.vmem [#allocation2], 134
      %v1784 = vld [vmem:[%s1783] ss:$2 sm:$0xff]
      %s1785 = scalar_lea.vmem [#allocation2], 150
      %v1786 = vld [vmem:[%s1785] ss:$2 sm:$0xff]
      %s1787 = scalar_lea.vmem [#allocation2], 166
      %v1788 = vld [vmem:[%s1787] ss:$2 sm:$0xff]
      %s1789 = scalar_lea.vmem [#allocation2], 182
      %v1790 = vld [vmem:[%s1789] ss:$2 sm:$0xff]
      %s1791 = scalar_lea.vmem [#allocation2], 198
      %v1792 = vld [vmem:[%s1791] ss:$2 sm:$0xff]
      %s1793 = scalar_lea.vmem [#allocation2], 214
      %v1794 = vld [vmem:[%s1793] ss:$2 sm:$0xff]
      %s1795 = scalar_lea.vmem [#allocation2], 230
      %v1796 = vld [vmem:[%s1795] ss:$2 sm:$0xff]
      %s1797 = scalar_lea.vmem [#allocation2], 246
      %v1798 = vld [vmem:[%s1797] ss:$2 sm:$0xff]
      %s1799 = scalar_lea.vmem [#allocation2], 262
      %v1800 = vld [vmem:[%s1799] ss:$2 sm:$0xff]
      %s1801 = scalar_lea.vmem [#allocation2], 278
      %v1802 = vld [vmem:[%s1801] ss:$2 sm:$0xff]
      %s1803 = scalar_lea.vmem [#allocation2], 294
      %v1804 = vld [vmem:[%s1803] ss:$2 sm:$0x3f]
      %v1805 = vpack.c.bf16 %v1774, %v1772
      %v1806 = vpack.c.bf16 %v1778, %v1776
      %v1807 = vpack.c.bf16 %v1782, %v1780
      %v1808 = vpack.c.bf16 %v1786, %v1784
      %v1809 = vpack.c.bf16 %v1790, %v1788
      %v1810 = vpack.c.bf16 %v1794, %v1792
      %v1811 = vpack.c.bf16 %v1798, %v1796
      %v1812 = vpack.c.bf16 %v1802, %v1800
      %v1813 = vpack.c.bf16 %v1804, %v1804
      %s1814 = scalar_lea.vmem %s1, 512
      %v1815 = vld [vmem:[%s1814] sm:$0xf]
      %v1816 = vld [vmem:[%s1814 + $0x4] sm:$0xf]
      %v1817 = vld [vmem:[%s1814 + $0x8] sm:$0xf]
      %v1818 = vld [vmem:[%s1814 + $0xc] sm:$0xf]
      %v1819 = vld [vmem:[%s1814 + $0x10] sm:$0xf]
      %v1820 = vld [vmem:[%s1814 + $0x14] sm:$0xf]
      %v1821 = vld [vmem:[%s1814 + $0x18] sm:$0xf]
      %v1822 = vld [vmem:[%s1814 + $0x1c] sm:$0xf]
      %v1823 = vld [vmem:[%s1814 + $0x20] sm:$0xf]
      %v1824 = vld [vmem:[%s1814 + $0x24] sm:$0xf]
      %v1825 = vld [vmem:[%s1814 + $0x28] sm:$0xf]
      %v1826 = vld [vmem:[%s1814 + $0x2c] sm:$0xf]
      %v1827 = vld [vmem:[%s1814 + $0x30] sm:$0xf]
      %v1828 = vld [vmem:[%s1814 + $0x34] sm:$0xf]
      %v1829 = vld [vmem:[%s1814 + $0x38] sm:$0xf]
      %v1830 = vld [vmem:[%s1814 + $0x3c] sm:$0xf]
      %v1847 = vunpack.c.l.b16 %v1815
      %v1848 = vunpack.c.l.b16 %v1816
      %v1849 = vunpack.c.l.b16 %v1817
      %v1850 = vunpack.c.l.b16 %v1818
      %v1851 = vunpack.c.l.b16 %v1819
      %v1852 = vunpack.c.l.b16 %v1820
      %v1853 = vunpack.c.l.b16 %v1821
      %v1854 = vunpack.c.l.b16 %v1822
      %v1855 = vunpack.c.l.b16 %v1823
      %v1856 = vunpack.c.l.b16 %v1824
      %v1857 = vunpack.c.l.b16 %v1825
      %v1858 = vunpack.c.l.b16 %v1826
      %v1859 = vunpack.c.l.b16 %v1827
      %v1860 = vunpack.c.l.b16 %v1828
      %v1861 = vunpack.c.l.b16 %v1829
      %v1862 = vunpack.c.l.b16 %v1830
      %v1863 = vpack.c.b16 %v1848, %v1847
      %v1864 = vpack.c.b16 %v1850, %v1849
      %v1865 = vpack.c.b16 %v1852, %v1851
      %v1866 = vpack.c.b16 %v1854, %v1853
      %v1867 = vpack.c.b16 %v1856, %v1855
      %v1868 = vpack.c.b16 %v1858, %v1857
      %v1869 = vpack.c.b16 %v1860, %v1859
      %v1870 = vpack.c.b16 %v1862, %v1861
      %1879 = vmatpush.bf16.msra.mxu0 %v1870
      %1880 = vmatpush.bf16.msra.mxu0 %v1869
      %1881 = vmatpush.bf16.msra.mxu0 %v1868
      %1882 = vmatpush.bf16.msra.mxu0 %v1867
      %1883 = vmatpush.bf16.msra.mxu0 %v1866
      %1884 = vmatpush.bf16.msra.mxu0 %v1865
      %1885 = vmatpush.bf16.msra.mxu0 %v1864
      %1886 = vmatpush.bf16.msra.mxu0 %v1863
      %1887 = vmatmul.bf16.gmra.mxu0 %v1805
      %v1888 = vpop.f32.mrf.mxu0
      %v1889 = vadd.f32 0.0, %v1888
      %v1890 = vpop.f32.mrf.mxu0
      %1891 = vmatmul.bf16.gmra.mxu0 %v1806
      %v1892 = vpop.f32.mrf.mxu0
      %v1893 = vadd.f32 0.0, %v1892
      %v1894 = vpop.f32.mrf.mxu0
      %v1895 = vadd.f32 0.0, %v1894
      %1896 = vmatmul.bf16.gmra.mxu0 %v1807
      %v1897 = vpop.f32.mrf.mxu0
      %v1898 = vadd.f32 0.0, %v1897
      %v1899 = vpop.f32.mrf.mxu0
      %v1900 = vadd.f32 0.0, %v1899
      %1901 = vmatmul.bf16.gmra.mxu0 %v1808
      %v1902 = vpop.f32.mrf.mxu0
      %v1903 = vadd.f32 0.0, %v1902
      %v1904 = vpop.f32.mrf.mxu0
      %v1905 = vadd.f32 0.0, %v1904
      %1906 = vmatmul.bf16.gmra.mxu0 %v1809
      %v1907 = vpop.f32.mrf.mxu0
      %v1908 = vpop.f32.mrf.mxu0
      %v1909 = vadd.f32 0.0, %v1908
      %1910 = vmatmul.bf16.gmra.mxu0 %v1810
      %v1911 = vpop.f32.mrf.mxu0
      %v1912 = vpop.f32.mrf.mxu0
      %v1913 = vadd.f32 0.0, %v1912
      %1914 = vmatmul.bf16.gmra.mxu0 %v1811
      %v1915 = vpop.f32.mrf.mxu0
      %v1916 = vadd.f32 0.0, %v1915
      %v1917 = vpop.f32.mrf.mxu0
      %v1918 = vadd.f32 0.0, %v1917
      %1919 = vmatmul.bf16.gmra.mxu0 %v1812
      %v1920 = vpop.f32.mrf.mxu0
      %v1921 = vadd.f32 0.0, %v1920
      %v1922 = vpop.f32.mrf.mxu0
      %v1923 = vadd.f32 0.0, %v1922
      %1924 = vmatmul.bf16.gmra.mxu0 %v1813
      %v1925 = vpop.f32.mrf.mxu0
      %v1926 = vadd.f32 0.0, %v1925
      %v1927 = vpop.f32.mrf.mxu0
      %1928 = vdwg.mxu0
      %v1929 = vadd.f32 %v1757, %v1889
      %v1930 = vadd.f32 %v1758, %v1893
      %v1931 = vadd.f32 %v1759, %v1895
      %v1932 = vadd.f32 %v1760, %v1898
      %v1933 = vadd.f32 %v1761, %v1900
      %v1934 = vadd.f32 %v1762, %v1903
      %v1935 = vadd.f32 %v1763, %v1905
      %v1936 = vadd.f32 %v1764, %v1909
      %v1937 = vadd.f32 %v1765, %v1913
      %v1938 = vadd.f32 %v1766, %v1916
      %v1939 = vadd.f32 %v1767, %v1918
      %v1940 = vadd.f32 %v1768, %v1921
      %v1941 = vadd.f32 %v1769, %v1923
      %v1942 = vadd.f32 %v1770, %v1926
      %v1943 = vpack.c.bf16 %v1929, %v1929
      %1944 = vst [vmem:[%s231] sm:$0xf] %v1943
      %v1945 = vpack.c.bf16 %v1930, %v1930
      %v1946 = vpack.c.bf16 %v1931, %v1931
      %vm1949 = vcmask 1042432
      %vm1950 = vcmask 1046532
      %vm1951 = vmor %vm1949, %vm1950
      %v1952 = vrot.slane %v1945, 5
      %v1953 = vrot.slane %v1952, 4
      %v1954 = vrot.slane %v1946, 5
      %v1955 = vsel %vm1951, %v1953, %v1954
      %s1957 = scalar_lea.vmem %s231, 4
      %1958 = vst [vmem:[%s1957] sm:$0xf] %v1955
      %v1959 = vpack.c.bf16 %v1932, %v1932
      %v1960 = vpack.c.bf16 %v1933, %v1933
      %vm1963 = vcmask 1041408
      %vm1964 = vcmask 1045508
      %vm1965 = vmor %vm1963, %vm1964
      %v1966 = vrot.slane %v1959, 6
      %v1967 = vrot.slane %v1966, 4
      %v1968 = vrot.slane %v1960, 6
      %v1969 = vsel %vm1965, %v1967, %v1968
      %s1971 = scalar_lea.vmem %s231, 8
      %1972 = vst [vmem:[%s1971] sm:$0xf] %v1969
      %v1973 = vpack.c.bf16 %v1934, %v1934
      %v1974 = vpack.c.bf16 %v1935, %v1935
      %vm1977 = vcmask 1040384
      %vm1978 = vcmask 1044484
      %vm1979 = vmor %vm1977, %vm1978
      %v1980 = vrot.slane %v1973, 7
      %v1981 = vrot.slane %v1980, 4
      %v1982 = vrot.slane %v1974, 7
      %v1983 = vsel %vm1979, %v1981, %v1982
      %s1985 = scalar_lea.vmem %s231, 12
      %1986 = vst [vmem:[%s1985] sm:$0xf] %v1983
      %v1987 = vpack.c.bf16 %v1936, %v1936
      %s1988 = scalar_lea.vmem %s231, 16
      %1989 = vst [vmem:[%s1988] sm:$0xf] %v1987
      %v1990 = vpack.c.bf16 %v1937, %v1937
      %v1991 = vpack.c.bf16 %v1938, %v1938
      %v1994 = vrot.slane %v1990, 5
      %v1995 = vrot.slane %v1994, 4
      %v1996 = vrot.slane %v1991, 5
      %v1997 = vsel %vm1951, %v1995, %v1996
      %s1999 = scalar_lea.vmem %s231, 20
      %2000 = vst [vmem:[%s1999] sm:$0xf] %v1997
      %v2001 = vpack.c.bf16 %v1939, %v1939
      %v2002 = vpack.c.bf16 %v1940, %v1940
      %v2005 = vrot.slane %v2001, 6
      %v2006 = vrot.slane %v2005, 4
      %v2007 = vrot.slane %v2002, 6
      %v2008 = vsel %vm1965, %v2006, %v2007
      %s2010 = scalar_lea.vmem %s231, 24
      %2011 = vst [vmem:[%s2010] sm:$0xf] %v2008
      %v2012 = vpack.c.bf16 %v1941, %v1941
      %v2013 = vpack.c.bf16 %v1942, %v1942
      %v2016 = vrot.slane %v2012, 7
      %v2017 = vrot.slane %v2016, 4
      %v2018 = vrot.slane %v2013, 7
      %v2019 = vsel %vm1979, %v2017, %v2018
      %s2021 = scalar_lea.vmem %s231, 28
      %2022 = vst [vmem:[%s2021] sm:$0xf] %v2019
      %v2023 = vld [vmem:[%s231] sm:$0xf]
      %v2024 = vld [vmem:[%s231 + $0x4] sm:$0xf]
      %v2025 = vld [vmem:[%s231 + $0x8] sm:$0xf]
      %v2026 = vld [vmem:[%s231 + $0xc] sm:$0xf]
      %v2027 = vld [vmem:[%s231 + $0x10] sm:$0xf]
      %v2028 = vld [vmem:[%s231 + $0x14] sm:$0xf]
      %v2029 = vld [vmem:[%s231 + $0x18] sm:$0xf]
      %v2030 = vld [vmem:[%s231 + $0x1c] sm:$0xf]
      %v2031 = vunpack.c.l.bf16 %v2023
      %v2032 = vunpack.c.l.bf16 %v2024
      %v2033 = vunpack.c.l.bf16 %v2025
      %v2034 = vunpack.c.l.bf16 %v2026
      %v2035 = vunpack.c.l.bf16 %v2027
      %v2036 = vunpack.c.l.bf16 %v2028
      %v2037 = vunpack.c.l.bf16 %v2029
      %v2038 = vunpack.c.l.bf16 %v2030
      %v2039 = vmul.f32 %v2031, %v2031
      %v2040 = vmul.f32 %v2032, %v2032
      %v2041 = vmul.f32 %v2033, %v2033
      %v2042 = vmul.f32 %v2034, %v2034
      %v2043 = vmul.f32 %v2035, %v2035
      %v2044 = vmul.f32 %v2036, %v2036
      %v2045 = vmul.f32 %v2037, %v2037
      %v2046 = vmul.f32 %v2038, %v2038
      %v2047 = vadd.f32 %v2031, %v2032
      %v2048 = vadd.f32 %v2047, %v2033
      %v2049 = vadd.f32 %v2048, %v2034
      %v2050 = vadd.f32 %v2049, %v2035
      %v2051 = vadd.f32 %v2050, %v2036
      %v2052 = vadd.f32 %v2051, %v2037
      %v2053 = vadd.f32 %v2052, %v2038
      %v2054 = vadd.f32 %v2039, %v2040
      %v2055 = vadd.f32 %v2054, %v2041
      %v2056 = vadd.f32 %v2055, %v2042
      %v2057 = vadd.f32 %v2056, %v2043
      %v2058 = vadd.f32 %v2057, %v2044
      %v2059 = vadd.f32 %v2058, %v2045
      %v2060 = vadd.f32 %v2059, %v2046
      %v2061 = vrot.slane %v2053, 4
      %v2062 = vadd.f32 %v2053, %v2061
      %v2063 = vrot.slane %v2062, 2
      %v2064 = vadd.f32 %v2062, %v2063
      %v2065 = vrot.slane %v2064, 1
      %v2066 = vadd.f32 %v2064, %v2065
      %v2067 = vrot.slane %v2060, 4
      %v2068 = vadd.f32 %v2060, %v2067
      %v2069 = vrot.slane %v2068, 2
      %v2070 = vadd.f32 %v2068, %v2069
      %v2071 = vrot.slane %v2070, 1
      %v2072 = vadd.f32 %v2070, %v2071
      %v2073 = vlaneseq
      %v2074 = vshrl.u32 %v2073, 7
      %vm2075 = vcmp.eq.s32.totalorder %v2074, 0
      %vm2076 = vcmp.eq.s32.totalorder %v2074, 1
      %v2077 = vsel %vm2076, %v2072, 0.0
      %v2078 = vsel %vm2075, %v2066, %v2077
      %2079 = vst [vmem:[%s235] sm:$0xff] %v2078
      %p2080 = scmp.lt.s32.totalorder %s17, 1
      %s2081 = scalar_select %p2080, %s17, 1
      %s2082 = smul.addr %s2081, 8
      %s2083 = smul.addr %s2082, 4
      %s2084 = scalar_lea.vmem %s4, %s2083
      %p2085 = scmp.lt.s32.totalorder %s17, 1
      %s2086 = scalar_select %p2085, %s17, 1
      %s2087 = smul.addr %s2086, 8
      %s2088 = scalar_lea.vmem %s5, %s2087
      // Predicated region
      $region37: #{bottleneck_forward.6} parent=35 // pred_check
        %p2089 = pneg %p124
      $region38: #{bottleneck_forward.6} parent=35 // pred_check_branch
        %2091 = sbr.rel (%p2089) target = $region40
      $region39: #{bottleneck_forward.6} parent=35 // pred_region
        _
      $region40: #{bottleneck_forward.6} parent=35 // pred_fallthru
        _
      // Predicated region
      $region41: #{bottleneck_forward.6} parent=35 // pred_check
        %p2092 = pneg %p150
      $region42: #{bottleneck_forward.6} parent=35 // pred_check_branch
        %2094 = sbr.rel (%p2092) target = $region44
      $region43: #{bottleneck_forward.6} parent=35 // pred_region
        _
      $region44: #{bottleneck_forward.6} parent=35 // pred_fallthru
        _
    $region36: #{bottleneck_forward.6} parent=5 // pred_fallthru
      _
    %p2095 = scmp.le.s32.totalorder 2, %s12
    // Predicated region
    $region45: #{bottleneck_forward.6} parent=5 // pred_check
      %p2096 = pneg %p2095
    $region46: #{bottleneck_forward.6} parent=5 // pred_check_branch
      %2098 = sbr.rel (%p2096) target = $region48
    $region47: #{bottleneck_forward.6} parent=5 // pred_region
      %s2099 = ssub.s32 %s12, 2
      // Predicated region
      $region49: #{bottleneck_forward.6} parent=47 // pred_check
        %p2100 = pneg %p130
      $region50: #{bottleneck_forward.6} parent=47 // pred_check_branch
        %2102 = sbr.rel (%p2100) target = $region52
      $region51: #{bottleneck_forward.6} parent=47 // pred_region
        %p2103 = scmp.lt.s32.totalorder %s18, 1
        %s2104 = scalar_select %p2103, %s18, 1
        %s2105 = smul.addr %s2104, 8
        %s2106 = smul.addr %s2105, 4
        %s2107 = scalar_lea.vmem %s4, %s2106
      $region52: #{bottleneck_forward.6} parent=47 // pred_fallthru
        _
      // Predicated region
      $region53: #{bottleneck_forward.6} parent=47 // pred_check
        %p2108 = pneg %p156
      $region54: #{bottleneck_forward.6} parent=47 // pred_check_branch
        %2110 = sbr.rel (%p2108) target = $region56
      $region55: #{bottleneck_forward.6} parent=47 // pred_region
        %p2111 = scmp.lt.s32.totalorder %s18, 1
        %s2112 = scalar_select %p2111, %s18, 1
        %s2113 = smul.addr %s2112, 8
        %s2114 = scalar_lea.vmem %s5, %s2113
      $region56: #{bottleneck_forward.6} parent=47 // pred_fallthru
        _
    $region48: #{bottleneck_forward.6} parent=5 // pred_fallthru
      _
  $region6: #{bottleneck_forward.6} parent=0 // loop_footer
    %s16 = sadd.s32 1, %s12
  $region7: #{bottleneck_forward.6} parent=0 // loop_footer_branch
    %11 = sbr.rel target = $region3
  $region8: #{bottleneck_forward.6} parent=0 // loop_exit
    _

// kernel: bottleneck_forward.9
$region0: #{bottleneck_forward.9}
  #allocation0 [shape = 'u32[]', space=smem, size = 0x4, offset = 0x4, fixed_abs, tag = 'smem constant byte address 0x4 - core index']
  #allocation1 [shape = 'u32[72,128]{1,0:T(1,128)}', space=vmem, size = 0x9000, scoped, tag = 'internal scratch']
  %s0 = inlined_call_operand.vmem [shape: bf16[128,128], index: 0, kind: input, shape index: {}]
  %s1 = inlined_call_operand.vmem [shape: bf16[128,128], index: 1, kind: input, shape index: {}]
  %s2 = inlined_call_operand.vmem [shape: f32[1,128], index: 2, kind: input, shape index: {}]
  %s3 = inlined_call_operand.vmem [shape: f32[1,128], index: 3, kind: input, shape index: {}]
  %s4 = inlined_call_operand.vmem [shape: f32[1,128], index: 4, kind: input, shape index: {}]
  %s5 = inlined_call_operand.vmem [shape: f32[1,128], index: 5, kind: input, shape index: {}]
  %s6 = inlined_call_operand.hbm [shape: bf16[128,128], index: 6, kind: output, shape index: {}]
  %s7 = sld [smem:[#allocation0]]
  $region34: #{bottleneck_forward.9} parent=0
    _
  %s9 = ssub.s32 1, %s7
  %s10 = scalar_select 0, %s9, %s7
  $region1: #{bottleneck_forward.9} parent=0
    #allocation2 [shape = 'u8[32768]{0}', space=vmem, size = 0x8000, scoped, tag = 'output window, operand 0, single buffered']
    #allocation3 [shape = 's32[1]{0}', space=sflag, size = 0x4, scoped, tag = 'scoped memory for bottleneck_forward.9']
    %11 = vsyncpa [#allocation3], 0
    // Predicated region
    $region2: #{bottleneck_forward.9} parent=1 // pred_check
      _
    $region3: #{bottleneck_forward.9} parent=1 // pred_check_branch
      %13 = sbr.rel (0) target = $region5
    $region4: #{bottleneck_forward.9} parent=1 // pred_region
      _
    $region5: #{bottleneck_forward.9} parent=1 // pred_fallthru
      _
    // Predicated region
    $region6: #{bottleneck_forward.9} parent=1 // pred_check
      _
    $region7: #{bottleneck_forward.9} parent=1 // pred_check_branch
      %15 = sbr.rel (0) target = $region9
    $region8: #{bottleneck_forward.9} parent=1 // pred_region
      _
    $region9: #{bottleneck_forward.9} parent=1 // pred_fallthru
      _
    // Predicated region
    $region10: #{bottleneck_forward.9} parent=1 // pred_check
      _
    $region11: #{bottleneck_forward.9} parent=1 // pred_check_branch
      %17 = sbr.rel (0) target = $region13
    $region12: #{bottleneck_forward.9} parent=1 // pred_region
      _
    $region13: #{bottleneck_forward.9} parent=1 // pred_fallthru
      _
    // Predicated region
    $region14: #{bottleneck_forward.9} parent=1 // pred_check
      _
    $region15: #{bottleneck_forward.9} parent=1 // pred_check_branch
      %19 = sbr.rel (0) target = $region17
    $region16: #{bottleneck_forward.9} parent=1 // pred_region
      _
    $region17: #{bottleneck_forward.9} parent=1 // pred_fallthru
      _
    // Predicated region
    $region18: #{bottleneck_forward.9} parent=1 // pred_check
      _
    $region19: #{bottleneck_forward.9} parent=1 // pred_check_branch
      %21 = sbr.rel (0) target = $region21
    $region20: #{bottleneck_forward.9} parent=1 // pred_region
      _
    $region21: #{bottleneck_forward.9} parent=1 // pred_fallthru
      _
    // Predicated region
    $region22: #{bottleneck_forward.9} parent=1 // pred_check
      _
    $region23: #{bottleneck_forward.9} parent=1 // pred_check_branch
      %23 = sbr.rel (0) target = $region25
    $region24: #{bottleneck_forward.9} parent=1 // pred_region
      _
    $region25: #{bottleneck_forward.9} parent=1 // pred_fallthru
      _
    %v24 = vld [vmem:[%s0] sm:$0xf]
    %v25 = vld [vmem:[%s0 + $0x4] sm:$0xf]
    %v26 = vld [vmem:[%s0 + $0x8] sm:$0xf]
    %v27 = vld [vmem:[%s0 + $0xc] sm:$0xf]
    %v28 = vld [vmem:[%s0 + $0x10] sm:$0xf]
    %v29 = vld [vmem:[%s0 + $0x14] sm:$0xf]
    %v30 = vld [vmem:[%s0 + $0x18] sm:$0xf]
    %v31 = vld [vmem:[%s0 + $0x1c] sm:$0xf]
    %v32 = vld [vmem:[%s0 + $0x20] sm:$0xf]
    %v33 = vld [vmem:[%s0 + $0x24] sm:$0xf]
    %v34 = vld [vmem:[%s0 + $0x28] sm:$0xf]
    %v35 = vld [vmem:[%s0 + $0x2c] sm:$0xf]
    %v36 = vld [vmem:[%s0 + $0x30] sm:$0xf]
    %v37 = vld [vmem:[%s0 + $0x34] sm:$0xf]
    %v38 = vld [vmem:[%s0 + $0x38] sm:$0xf]
    %v39 = vld [vmem:[%s0 + $0x3c] sm:$0xf]
    %v40 = vunpack.c.l.bf16 %v24
    %v41 = vunpack.c.l.bf16 %v25
    %v42 = vunpack.c.l.bf16 %v26
    %v43 = vunpack.c.l.bf16 %v27
    %v44 = vunpack.c.l.bf16 %v28
    %v45 = vunpack.c.l.bf16 %v29
    %v46 = vunpack.c.l.bf16 %v30
    %v47 = vunpack.c.l.bf16 %v31
    %v48 = vunpack.c.l.bf16 %v32
    %v49 = vunpack.c.l.bf16 %v33
    %v50 = vunpack.c.l.bf16 %v34
    %v51 = vunpack.c.l.bf16 %v35
    %v52 = vunpack.c.l.bf16 %v36
    %v53 = vunpack.c.l.bf16 %v37
    %v54 = vunpack.c.l.bf16 %v38
    %v55 = vunpack.c.l.bf16 %v39
    %v56 = vld [vmem:[%s2] sm:$0x1]
    %v58 = vperm.slane %v56, 0
    %v60 = vmul.f32 %v40, %v58
    %v61 = vmul.f32 %v41, %v58
    %v62 = vmul.f32 %v42, %v58
    %v63 = vmul.f32 %v43, %v58
    %v64 = vmul.f32 %v44, %v58
    %v65 = vmul.f32 %v45, %v58
    %v66 = vmul.f32 %v46, %v58
    %v67 = vmul.f32 %v47, %v58
    %v68 = vmul.f32 %v48, %v58
    %v69 = vmul.f32 %v49, %v58
    %v70 = vmul.f32 %v50, %v58
    %v71 = vmul.f32 %v51, %v58
    %v72 = vmul.f32 %v52, %v58
    %v73 = vmul.f32 %v53, %v58
    %v74 = vmul.f32 %v54, %v58
    %v75 = vmul.f32 %v55, %v58
    %v76 = vld [vmem:[%s3] sm:$0x1]
    %v78 = vperm.slane %v76, 0
    %v80 = vadd.f32 %v60, %v78
    %v81 = vadd.f32 %v61, %v78
    %v82 = vadd.f32 %v62, %v78
    %v83 = vadd.f32 %v63, %v78
    %v84 = vadd.f32 %v64, %v78
    %v85 = vadd.f32 %v65, %v78
    %v86 = vadd.f32 %v66, %v78
    %v87 = vadd.f32 %v67, %v78
    %v88 = vadd.f32 %v68, %v78
    %v89 = vadd.f32 %v69, %v78
    %v90 = vadd.f32 %v70, %v78
    %v91 = vadd.f32 %v71, %v78
    %v92 = vadd.f32 %v72, %v78
    %v93 = vadd.f32 %v73, %v78
    %v94 = vadd.f32 %v74, %v78
    %v95 = vadd.f32 %v75, %v78
    %v96 = vld [vmem:[%s1] sm:$0xf]
    %v97 = vld [vmem:[%s1 + $0x4] sm:$0xf]
    %v98 = vld [vmem:[%s1 + $0x8] sm:$0xf]
    %v99 = vld [vmem:[%s1 + $0xc] sm:$0xf]
    %v100 = vld [vmem:[%s1 + $0x10] sm:$0xf]
    %v101 = vld [vmem:[%s1 + $0x14] sm:$0xf]
    %v102 = vld [vmem:[%s1 + $0x18] sm:$0xf]
    %v103 = vld [vmem:[%s1 + $0x1c] sm:$0xf]
    %v104 = vld [vmem:[%s1 + $0x20] sm:$0xf]
    %v105 = vld [vmem:[%s1 + $0x24] sm:$0xf]
    %v106 = vld [vmem:[%s1 + $0x28] sm:$0xf]
    %v107 = vld [vmem:[%s1 + $0x2c] sm:$0xf]
    %v108 = vld [vmem:[%s1 + $0x30] sm:$0xf]
    %v109 = vld [vmem:[%s1 + $0x34] sm:$0xf]
    %v110 = vld [vmem:[%s1 + $0x38] sm:$0xf]
    %v111 = vld [vmem:[%s1 + $0x3c] sm:$0xf]
    %v112 = vunpack.c.l.bf16 %v96
    %v113 = vunpack.c.l.bf16 %v97
    %v114 = vunpack.c.l.bf16 %v98
    %v115 = vunpack.c.l.bf16 %v99
    %v116 = vunpack.c.l.bf16 %v100
    %v117 = vunpack.c.l.bf16 %v101
    %v118 = vunpack.c.l.bf16 %v102
    %v119 = vunpack.c.l.bf16 %v103
    %v120 = vunpack.c.l.bf16 %v104
    %v121 = vunpack.c.l.bf16 %v105
    %v122 = vunpack.c.l.bf16 %v106
    %v123 = vunpack.c.l.bf16 %v107
    %v124 = vunpack.c.l.bf16 %v108
    %v125 = vunpack.c.l.bf16 %v109
    %v126 = vunpack.c.l.bf16 %v110
    %v127 = vunpack.c.l.bf16 %v111
    %v128 = vld [vmem:[%s4] sm:$0x1]
    %v130 = vperm.slane %v128, 0
    %v132 = vmul.f32 %v112, %v130
    %v133 = vmul.f32 %v113, %v130
    %v134 = vmul.f32 %v114, %v130
    %v135 = vmul.f32 %v115, %v130
    %v136 = vmul.f32 %v116, %v130
    %v137 = vmul.f32 %v117, %v130
    %v138 = vmul.f32 %v118, %v130
    %v139 = vmul.f32 %v119, %v130
    %v140 = vmul.f32 %v120, %v130
    %v141 = vmul.f32 %v121, %v130
    %v142 = vmul.f32 %v122, %v130
    %v143 = vmul.f32 %v123, %v130
    %v144 = vmul.f32 %v124, %v130
    %v145 = vmul.f32 %v125, %v130
    %v146 = vmul.f32 %v126, %v130
    %v147 = vmul.f32 %v127, %v130
    %v148 = vld [vmem:[%s5] sm:$0x1]
    %v150 = vperm.slane %v148, 0
    %v152 = vadd.f32 %v132, %v150
    %v153 = vadd.f32 %v133, %v150
    %v154 = vadd.f32 %v134, %v150
    %v155 = vadd.f32 %v135, %v150
    %v156 = vadd.f32 %v136, %v150
    %v157 = vadd.f32 %v137, %v150
    %v158 = vadd.f32 %v138, %v150
    %v159 = vadd.f32 %v139, %v150
    %v160 = vadd.f32 %v140, %v150
    %v161 = vadd.f32 %v141, %v150
    %v162 = vadd.f32 %v142, %v150
    %v163 = vadd.f32 %v143, %v150
    %v164 = vadd.f32 %v144, %v150
    %v165 = vadd.f32 %v145, %v150
    %v166 = vadd.f32 %v146, %v150
    %v167 = vadd.f32 %v147, %v150
    %v168 = vadd.f32 %v80, %v152
    %v169 = vadd.f32 %v81, %v153
    %v170 = vadd.f32 %v82, %v154
    %v171 = vadd.f32 %v83, %v155
    %v172 = vadd.f32 %v84, %v156
    %v173 = vadd.f32 %v85, %v157
    %v174 = vadd.f32 %v86, %v158
    %v175 = vadd.f32 %v87, %v159
    %v176 = vadd.f32 %v88, %v160
    %v177 = vadd.f32 %v89, %v161
    %v178 = vadd.f32 %v90, %v162
    %v179 = vadd.f32 %v91, %v163
    %v180 = vadd.f32 %v92, %v164
    %v181 = vadd.f32 %v93, %v165
    %v182 = vadd.f32 %v94, %v166
    %v183 = vadd.f32 %v95, %v167
    %v184 = vmax.f32 %v168, 0.0
    %v185 = vmax.f32 %v169, 0.0
    %v186 = vmax.f32 %v170, 0.0
    %v187 = vmax.f32 %v171, 0.0
    %v188 = vmax.f32 %v172, 0.0
    %v189 = vmax.f32 %v173, 0.0
    %v190 = vmax.f32 %v174, 0.0
    %v191 = vmax.f32 %v175, 0.0
    %v192 = vmax.f32 %v176, 0.0
    %v193 = vmax.f32 %v177, 0.0
    %v194 = vmax.f32 %v178, 0.0
    %v195 = vmax.f32 %v179, 0.0
    %v196 = vmax.f32 %v180, 0.0
    %v197 = vmax.f32 %v181, 0.0
    %v198 = vmax.f32 %v182, 0.0
    %v199 = vmax.f32 %v183, 0.0
    %v200 = vpack.c.bf16 %v184, %v184
    %v201 = vpack.c.bf16 %v185, %v185
    %v202 = vpack.c.bf16 %v186, %v186
    %v203 = vpack.c.bf16 %v187, %v187
    %v204 = vpack.c.bf16 %v188, %v188
    %v205 = vpack.c.bf16 %v189, %v189
    %v206 = vpack.c.bf16 %v190, %v190
    %v207 = vpack.c.bf16 %v191, %v191
    %v208 = vpack.c.bf16 %v192, %v192
    %v209 = vpack.c.bf16 %v193, %v193
    %v210 = vpack.c.bf16 %v194, %v194
    %v211 = vpack.c.bf16 %v195, %v195
    %v212 = vpack.c.bf16 %v196, %v196
    %v213 = vpack.c.bf16 %v197, %v197
    %v214 = vpack.c.bf16 %v198, %v198
    %v215 = vpack.c.bf16 %v199, %v199
    %216 = vst [vmem:[#allocation2] sm:$0xf] %v200
    %217 = vst [vmem:[#allocation2 + $0x4] sm:$0xf] %v201
    %218 = vst [vmem:[#allocation2 + $0x8] sm:$0xf] %v202
    %219 = vst [vmem:[#allocation2 + $0xc] sm:$0xf] %v203
    %220 = vst [vmem:[#allocation2 + $0x10] sm:$0xf] %v204
    %221 = vst [vmem:[#allocation2 + $0x14] sm:$0xf] %v205
    %222 = vst [vmem:[#allocation2 + $0x18] sm:$0xf] %v206
    %223 = vst [vmem:[#allocation2 + $0x1c] sm:$0xf] %v207
    %224 = vst [vmem:[#allocation2 + $0x20] sm:$0xf] %v208
    %225 = vst [vmem:[#allocation2 + $0x24] sm:$0xf] %v209
    %226 = vst [vmem:[#allocation2 + $0x28] sm:$0xf] %v210
    %227 = vst [vmem:[#allocation2 + $0x2c] sm:$0xf] %v211
    %228 = vst [vmem:[#allocation2 + $0x30] sm:$0xf] %v212
    %229 = vst [vmem:[#allocation2 + $0x34] sm:$0xf] %v213
    %230 = vst [vmem:[#allocation2 + $0x38] sm:$0xf] %v214
    %231 = vst [vmem:[#allocation2 + $0x3c] sm:$0xf] %v215
    // Predicated region
    $region26: #{bottleneck_forward.9} parent=1 // pred_check
      _
    $region27: #{bottleneck_forward.9} parent=1 // pred_check_branch
      %233 = sbr.rel (0) target = $region29
    $region28: #{bottleneck_forward.9} parent=1 // pred_region
      %235 = vsyncadd [#allocation3], 0
      %s236 = sshll.u32 [#allocation2], 4
      %s237 = int_to_ptr.vmem [resolvable:$true] %s236
      %s238 = sshll.u32 %s6, 4
      %s239 = int_to_ptr.hbm [resolvable:$true] %s238
      %244 = dma.vmem_to_hbm [thread:$0]  %s237, 1024, %s239, [#allocation3], 64, 64, 4
    $region29: #{bottleneck_forward.9} parent=1 // pred_fallthru
      _
    // Predicated region
    $region30: #{bottleneck_forward.9} parent=1 // pred_check
      _
    $region31: #{bottleneck_forward.9} parent=1 // pred_check_branch
      %246 = sbr.rel (0) target = $region33
    $region32: #{bottleneck_forward.9} parent=1 // pred_region
      %248 = dma.done [#allocation3], 1024
    $region33: #{bottleneck_forward.9} parent=1 // pred_fallthru
      _
    %249 = vsyncpa [#allocation3], 1

</llo_original>
